<compile_context>
chip_gen: v7x
topology: tpu7x:2x2x1
jax: 0.10.0
libtpu: 0.0.40
codegen_flags: <defaults>
</compile_context>

<pallas_src>
import math
import functools

import jax
import jax.numpy as jnp
from jax import lax
from jax.experimental import pallas as pl
from jax.experimental.pallas import tpu as pltpu


def _layernorm(x, gamma, beta, eps=1e-5):
    # x: (R, C) f32, gamma/beta: (1, C) f32
    mean = jnp.mean(x, axis=-1, keepdims=True)
    var = jnp.mean(jnp.square(x - mean), axis=-1, keepdims=True)
    return (x - mean) * lax.rsqrt(var + eps) * gamma + beta


def _gelu_exact(x):
    # Matches torch.nn.functional.gelu (erf-based, non-approximate).
    return 0.5 * x * (1.0 + lax.erf(x * (1.0 / math.sqrt(2.0))))


def block_kernel(x_q_ref, x_full_ref,
                 ln1_g_ref, ln1_b_ref, ln2_g_ref, ln2_b_ref,
                 wq_ref, bq_ref, wkv_ref, bkv_ref, wp_ref, bp_ref,
                 w1_ref, b1_ref, w2_ref, b2_ref,
                 out_ref,
                 kv_ref,
                 *, n_head, mlp_tile):
    bf16 = jnp.bfloat16
    f32 = jnp.float32

    x_q = x_q_ref[...].astype(f32)        # (TQ, C)  rows this grid step owns
    TQ, C = x_q.shape
    T = x_full_ref.shape[0]
    hd = C // n_head
    scale = 1.0 / math.sqrt(hd)

    ln1_g = ln1_g_ref[...]
    ln1_b = ln1_b_ref[...]

    qi = pl.program_id(1)

    # ---- K/V for the whole sequence: compute once per batch element and
    #      cache in VMEM scratch (reused by every Q tile of this batch). ----
    @pl.when(qi == 0)
    def _():
        x_f = x_full_ref[...].astype(f32)                       # (T, C)
        h_f = _layernorm(x_f, ln1_g, ln1_b).astype(bf16)        # (T, C)
        kv = jnp.dot(h_f, wkv_ref[...],
                     preferred_element_type=f32) + bkv_ref[...]  # (T, 2C)
        kv_ref[...] = kv.astype(bf16)

    # ---- attention branch (this Q tile) ----
    h_q = _layernorm(x_q, ln1_g, ln1_b).astype(bf16)            # (TQ, C)
    q = jnp.dot(h_q, wq_ref[...],
                preferred_element_type=f32) + bq_ref[...]        # (TQ, C)

    kv = kv_ref[...]                                             # (T, 2C) bf16
    k = kv[:, :C]
    v = kv[:, C:]

    # Causal mask for this Q tile (global row index = tile offset + local row).
    q_row0 = qi * TQ
    rows = q_row0 + lax.broadcasted_iota(jnp.int32, (TQ, T), 0)
    cols = lax.broadcasted_iota(jnp.int32, (TQ, T), 1)
    causal = cols <= rows
    neg_inf = jnp.float32(-1e30)

    ys = []
    for hi in range(n_head):
        sl = slice(hi * hd, (hi + 1) * hd)
        qh = q[:, sl].astype(bf16)                               # (TQ, hd)
        kh = k[:, sl]                                            # (T,  hd)
        vh = v[:, sl]                                            # (T,  hd)

        # q @ k^T without materializing a transpose.
        s = lax.dot_general(qh, kh, (((1,), (1,)), ((), ())),
                            preferred_element_type=f32) * scale  # (TQ, T)
        s = jnp.where(causal, s, neg_inf)
        m = jnp.max(s, axis=-1, keepdims=True)
        p = jnp.exp(s - m)
        denom = jnp.sum(p, axis=-1, keepdims=True)               # (TQ, 1)

        yh = jnp.dot(p.astype(bf16), vh, preferred_element_type=f32)  # (TQ, hd)
        # Normalize the small (TQ, hd) output, not the (TQ, T) probabilities.
        yh = yh * pl.reciprocal(denom, approx=True)
        ys.append(yh.astype(bf16))

    y = ys[0] if n_head == 1 else jnp.concatenate(ys, axis=-1)   # (TQ, C) bf16

    # Single full-width output projection.
    attn_out = jnp.dot(y, wp_ref[...], preferred_element_type=f32) + bp_ref[...]
    x1 = x_q + attn_out                                          # first residual

    # ---- MLP branch (hidden dim processed in tiles) ----
    h2 = _layernorm(x1, ln2_g_ref[...], ln2_b_ref[...]).astype(bf16)  # (TQ, C)
    hidden = w1_ref.shape[1]
    n_tiles = hidden // mlp_tile
    acc = jnp.zeros((TQ, C), f32)
    for j in range(n_tiles):
        csl = slice(j * mlp_tile, (j + 1) * mlp_tile)
        mj = jnp.dot(h2, w1_ref[:, csl], preferred_element_type=f32) + b1_ref[:, csl]
        gj = _gelu_exact(mj).astype(bf16)                        # (TQ, mlp_tile)
        acc = acc + jnp.dot(gj, w2_ref[csl, :], preferred_element_type=f32)

    out_ref[...] = (x1 + acc + b2_ref[...]).astype(out_ref.dtype)


def gpt_block(x, params, n_head, *, q_tile=None, mlp_tile=None,
              single_buffer_weights=True):
    """x: (B, T, C) float32. params: dict of f32 weights (see init_params)."""
    B, T, C = x.shape
    H4 = 4 * C

    if q_tile is None:
        q_tile = T if T <= 256 else 256
    assert T % q_tile == 0, "sequence length must be divisible by the Q tile"
    nq = T // q_tile

    if mlp_tile is None:
        mlp_tile = H4 if H4 <= 2048 else 2048
    assert H4 % mlp_tile == 0

    bf16 = jnp.bfloat16
    f32 = jnp.float32

    # bf16 weights (MXU inputs / DMA bytes); f32 biases & LN params (VPU math).
    wq = params["wq"].astype(bf16)
    wkv = jnp.concatenate([params["wk"], params["wv"]], axis=1).astype(bf16)
    bkv = jnp.concatenate([params["bk"], params["bv"]], axis=1).astype(f32)
    wp = params["wp"].astype(bf16)
    w1 = params["w1"].astype(bf16)
    w2 = params["w2"].astype(bf16)

    # Constant (grid-invariant) blocks: request single buffering when allowed.
    wkwargs = {"pipeline_mode": pl.Buffered(1)} if single_buffer_weights else {}

    def const2d(shape):
        return pl.BlockSpec(shape, lambda b, qi: (0, 0), **wkwargs)

    x_q_spec = pl.BlockSpec((None, q_tile, C), lambda b, qi: (b, qi, 0))
    x_full_spec = pl.BlockSpec((None, T, C), lambda b, qi: (b, 0, 0))
    out_spec = pl.BlockSpec((None, q_tile, C), lambda b, qi: (b, qi, 0))

    in_specs = [
        x_q_spec, x_full_spec,
        const2d((1, C)), const2d((1, C)),                 # ln1 gamma/beta
        const2d((1, C)), const2d((1, C)),                 # ln2 gamma/beta
        const2d((C, C)), const2d((1, C)),                 # Wq, bq
        const2d((C, 2 * C)), const2d((1, 2 * C)),         # Wkv, bkv (fused)
        const2d((C, C)), const2d((1, C)),                 # Wproj, bproj
        const2d((C, H4)), const2d((1, H4)),               # W1, b1
        const2d((H4, C)), const2d((1, C)),                # W2, b2
    ]

    kernel = functools.partial(block_kernel, n_head=n_head, mlp_tile=mlp_tile)

    return pl.pallas_call(
        kernel,
        out_shape=jax.ShapeDtypeStruct((B, T, C), x.dtype),
        grid_spec=pltpu.PrefetchScalarGridSpec(
            num_scalar_prefetch=0,
            grid=(B, nq),
            in_specs=in_specs,
            out_specs=out_spec,
            scratch_shapes=[pltpu.VMEM((T, 2 * C), bf16)],   # cached K/V
        ),
        compiler_params=pltpu.CompilerParams(
            # Q-tile axis must be sequential so the K/V cache (computed at
            # qi == 0) is valid for the later tiles of the same batch element.
            dimension_semantics=("parallel", "arbitrary"),
            vmem_limit_bytes=64 * 1024 * 1024),
    )(x, x,
      params["ln1_g"], params["ln1_b"], params["ln2_g"], params["ln2_b"],
      wq, params["bq"].astype(f32),
      wkv, bkv,
      wp, params["bp"].astype(f32),
      w1, params["b1"].astype(f32),
      w2, params["b2"].astype(f32))


def init_params(key, n_embd):
    C = n_embd
    keys = jax.random.split(key, 12)
    nrm = lambda k, shape: (0.02 * jax.random.normal(k, shape)).astype(jnp.float32)
    return {
        "ln1_g": jnp.ones((1, C), jnp.float32),
        "ln1_b": jnp.zeros((1, C), jnp.float32),
        "ln2_g": jnp.ones((1, C), jnp.float32),
        "ln2_b": jnp.zeros((1, C), jnp.float32),
        "wq": nrm(keys[0], (C, C)), "bq": nrm(keys[1], (1, C)),
        "wk": nrm(keys[2], (C, C)), "bk": nrm(keys[3], (1, C)),
        "wv": nrm(keys[4], (C, C)), "bv": nrm(keys[5], (1, C)),
        "wp": nrm(keys[6], (C, C)), "bp": nrm(keys[7], (1, C)),
        "w1": nrm(keys[8], (C, 4 * C)), "b1": nrm(keys[9], (1, 4 * C)),
        "w2": nrm(keys[10], (4 * C, C)), "b2": nrm(keys[11], (1, C)),
    }


def gpt_block_reference(x, p, n_head):
    """Pure-JAX f32 reference for sanity checking."""
    B, T, C = x.shape
    hd = C // n_head

    def ln(v, g, b):
        mu = jnp.mean(v, -1, keepdims=True)
        var = jnp.mean(jnp.square(v - mu), -1, keepdims=True)
        return (v - mu) / jnp.sqrt(var + 1e-5) * g + b

    h = ln(x, p["ln1_g"], p["ln1_b"])
    q = (h @ p["wq"] + p["bq"]).reshape(B, T, n_head, hd).transpose(0, 2, 1, 3)
    k = (h @ p["wk"] + p["bk"]).reshape(B, T, n_head, hd).transpose(0, 2, 1, 3)
    v = (h @ p["wv"] + p["bv"]).reshape(B, T, n_head, hd).transpose(0, 2, 1, 3)
    att = jnp.einsum("bhqd,bhkd->bhqk", q, k) / math.sqrt(hd)
    mask = jnp.tril(jnp.ones((T, T), bool))
    att = jnp.where(mask, att, -jnp.inf)
    att = jax.nn.softmax(att, axis=-1)
    y = jnp.einsum("bhqk,bhkd->bhqd", att, v).transpose(0, 2, 1, 3).reshape(B, T, C)
    x = x + (y @ p["wp"] + p["bp"])
    h2 = ln(x, p["ln2_g"], p["ln2_b"])
    m = jax.nn.gelu(h2 @ p["w1"] + p["b1"], approximate=False)
    m = m @ p["w2"] + p["b2"]
    return x + m


if __name__ == "__main__":
    B, T, C, n_head = 2, 8, 32, 4
    key = jax.random.PRNGKey(0)
    kx, kp = jax.random.split(key)
    x = jax.random.normal(kx, (B, T, C), jnp.float32)
    params = init_params(kp, C)

    ref = gpt_block_reference(x, params, n_head)

    def run(single_buffer_weights):
        out = gpt_block(x, params, n_head,
                        single_buffer_weights=single_buffer_weights)
        out = jax.block_until_ready(out)
        assert out.shape == (B, T, C)
        # bf16 matmuls + approx reciprocal => looser tolerance than pure f32.
        assert jnp.allclose(out, ref, rtol=2e-2, atol=2e-2), \
            "mismatch vs JAX reference"
        return out

    try:
        out = run(True)     # single-buffered constant weight blocks
    except Exception:
        out = run(False)    # fall back to default double-buffering

    print("KERNEL_OK")
</pallas_src>

<mosaic_0001>
module attributes {stable_mosaic.version = 11 : i64} {
  func.func @block_kernel(%arg0: i32, %arg1: i32, %arg2: memref<1x8x32xf32, #tpu.memory_space<vmem>>, %arg3: memref<1x8x32xf32, #tpu.memory_space<vmem>>, %arg4: memref<1x32xf32, #tpu.memory_space<vmem>>, %arg5: memref<1x32xf32, #tpu.memory_space<vmem>>, %arg6: memref<1x32xf32, #tpu.memory_space<vmem>>, %arg7: memref<1x32xf32, #tpu.memory_space<vmem>>, %arg8: memref<32x32xbf16, #tpu.memory_space<vmem>>, %arg9: memref<1x32xf32, #tpu.memory_space<vmem>>, %arg10: memref<32x64xbf16, #tpu.memory_space<vmem>>, %arg11: memref<1x64xf32, #tpu.memory_space<vmem>>, %arg12: memref<32x32xbf16, #tpu.memory_space<vmem>>, %arg13: memref<1x32xf32, #tpu.memory_space<vmem>>, %arg14: memref<32x128xbf16, #tpu.memory_space<vmem>>, %arg15: memref<1x128xf32, #tpu.memory_space<vmem>>, %arg16: memref<128x32xbf16, #tpu.memory_space<vmem>>, %arg17: memref<1x32xf32, #tpu.memory_space<vmem>>, %arg18: memref<1x8x32xf32, #tpu.memory_space<vmem>>, %arg19: memref<8x64xbf16, #tpu.memory_space<vmem>>) attributes {dimension_semantics = [#tpu.dimension_semantics<parallel>, #tpu.dimension_semantics<arbitrary>], iteration_bounds = array<i64: 2, 1>, scalar_prefetch = 0 : i64, scratch_operands = 1 : i64, tpu.core_type = #tpu.core_type<tc>, window_params = [{transform_indices = @transform_0, window_bounds = array<i64: 1, 8, 32>}, {transform_indices = @transform_1, window_bounds = array<i64: 1, 8, 32>}, {pipeline_mode = #tpu.pipeline_mode<synchronous>, transform_indices = @transform_2, window_bounds = array<i64: 1, 32>}, {pipeline_mode = #tpu.pipeline_mode<synchronous>, transform_indices = @transform_3, window_bounds = array<i64: 1, 32>}, {pipeline_mode = #tpu.pipeline_mode<synchronous>, transform_indices = @transform_4, window_bounds = array<i64: 1, 32>}, {pipeline_mode = #tpu.pipeline_mode<synchronous>, transform_indices = @transform_5, window_bounds = array<i64: 1, 32>}, {pipeline_mode = #tpu.pipeline_mode<synchronous>, transform_indices = @transform_6, window_bounds = array<i64: 32, 32>}, {pipeline_mode = #tpu.pipeline_mode<synchronous>, transform_indices = @transform_7, window_bounds = array<i64: 1, 32>}, {pipeline_mode = #tpu.pipeline_mode<synchronous>, transform_indices = @transform_8, window_bounds = array<i64: 32, 64>}, {pipeline_mode = #tpu.pipeline_mode<synchronous>, transform_indices = @transform_9, window_bounds = array<i64: 1, 64>}, {pipeline_mode = #tpu.pipeline_mode<synchronous>, transform_indices = @transform_10, window_bounds = array<i64: 32, 32>}, {pipeline_mode = #tpu.pipeline_mode<synchronous>, transform_indices = @transform_11, window_bounds = array<i64: 1, 32>}, {pipeline_mode = #tpu.pipeline_mode<synchronous>, transform_indices = @transform_12, window_bounds = array<i64: 32, 128>}, {pipeline_mode = #tpu.pipeline_mode<synchronous>, transform_indices = @transform_13, window_bounds = array<i64: 1, 128>}, {pipeline_mode = #tpu.pipeline_mode<synchronous>, transform_indices = @transform_14, window_bounds = array<i64: 128, 32>}, {pipeline_mode = #tpu.pipeline_mode<synchronous>, transform_indices = @transform_15, window_bounds = array<i64: 1, 32>}, {transform_indices = @transform_16, window_bounds = array<i64: 1, 8, 32>}]} {
    %c0 = arith.constant 0 : index
    %c0_0 = arith.constant 0 : index
    %c0_1 = arith.constant 0 : index
    %0 = vector.load %arg2[%c0, %c0_0, %c0_1] : memref<1x8x32xf32, #tpu.memory_space<vmem>>, vector<1x8x32xf32>
    %1 = vector.shape_cast %0 : vector<1x8x32xf32> to vector<8x32xf32>
    %c0_2 = arith.constant 0 : index
    %c0_3 = arith.constant 0 : index
    %2 = vector.load %arg4[%c0_2, %c0_3] : memref<1x32xf32, #tpu.memory_space<vmem>>, vector<1x32xf32>
    %c0_4 = arith.constant 0 : index
    %c0_5 = arith.constant 0 : index
    %3 = vector.load %arg5[%c0_4, %c0_5] : memref<1x32xf32, #tpu.memory_space<vmem>>, vector<1x32xf32>
    %c0_i32 = arith.constant 0 : i32
    %4 = arith.cmpi eq, %arg1, %c0_i32 : i32
    %5 = arith.extui %4 : i1 to i32
    %c0_i32_6 = arith.constant 0 : i32
    %6 = arith.cmpi ne, %5, %c0_i32_6 : i32
    scf.if %6 {
      %c0_73 = arith.constant 0 : index
      %c0_74 = arith.constant 0 : index
      %c0_75 = arith.constant 0 : index
      %189 = vector.load %arg3[%c0_73, %c0_74, %c0_75] : memref<1x8x32xf32, #tpu.memory_space<vmem>>, vector<1x8x32xf32>
      %190 = vector.shape_cast %189 : vector<1x8x32xf32> to vector<8x32xf32>
      %cst_76 = arith.constant dense<0.000000e+00> : vector<8xf32>
      %191 = vector.multi_reduction <add>, %190, %cst_76 [1] : vector<8x32xf32> to vector<8xf32>
      %192 = vector.shape_cast %191 : vector<8xf32> to vector<8x1xf32>
      %cst_77 = arith.constant 3.200000e+01 : f32
      %193 = vector.broadcast %cst_77 : f32 to vector<8x1xf32>
      %194 = arith.divf %192, %193 : vector<8x1xf32>
      %195 = vector.broadcast %194 : vector<8x1xf32> to vector<8x32xf32>
      %196 = arith.subf %190, %195 : vector<8x32xf32>
      %197 = arith.mulf %196, %196 : vector<8x32xf32>
      %cst_78 = arith.constant dense<0.000000e+00> : vector<8xf32>
      %198 = vector.multi_reduction <add>, %197, %cst_78 [1] : vector<8x32xf32> to vector<8xf32>
      %199 = vector.shape_cast %198 : vector<8xf32> to vector<8x1xf32>
      %cst_79 = arith.constant 3.200000e+01 : f32
      %200 = vector.broadcast %cst_79 : f32 to vector<8x1xf32>
      %201 = arith.divf %199, %200 : vector<8x1xf32>
      %202 = vector.broadcast %194 : vector<8x1xf32> to vector<8x32xf32>
      %203 = arith.subf %190, %202 : vector<8x32xf32>
      %cst_80 = arith.constant 9.99999974E-6 : f32
      %204 = vector.broadcast %cst_80 : f32 to vector<8x1xf32>
      %205 = arith.addf %201, %204 : vector<8x1xf32>
      %206 = math.rsqrt %205 : vector<8x1xf32>
      %207 = vector.broadcast %206 : vector<8x1xf32> to vector<8x32xf32>
      %208 = arith.mulf %203, %207 : vector<8x32xf32>
      %209 = vector.broadcast %2 : vector<1x32xf32> to vector<8x32xf32>
      %210 = arith.mulf %208, %209 : vector<8x32xf32>
      %211 = vector.broadcast %3 : vector<1x32xf32> to vector<8x32xf32>
      %212 = arith.addf %210, %211 : vector<8x32xf32>
      %213 = arith.truncf %212 : vector<8x32xf32> to vector<8x32xbf16>
      %c0_81 = arith.constant 0 : index
      %c0_82 = arith.constant 0 : index
      %214 = vector.load %arg10[%c0_81, %c0_82] : memref<32x64xbf16, #tpu.memory_space<vmem>>, vector<32x64xbf16>
      %cst_83 = arith.constant dense<0.000000e+00> : vector<8x64xf32>
      %215 = tpu.matmul %213, %214, %cst_83 {dimension_numbers = #tpu.dot_dimension_numbers<[1], [0], [0], [1], [0, 0, 1, 1], [], []>} : vector<8x32xbf16>, vector<32x64xbf16>, vector<8x64xf32> -> vector<8x64xf32>
      %c0_84 = arith.constant 0 : index
      %c0_85 = arith.constant 0 : index
      %216 = vector.load %arg11[%c0_84, %c0_85] : memref<1x64xf32, #tpu.memory_space<vmem>>, vector<1x64xf32>
      %217 = vector.broadcast %216 : vector<1x64xf32> to vector<8x64xf32>
      %218 = arith.addf %215, %217 : vector<8x64xf32>
      %219 = arith.truncf %218 : vector<8x64xf32> to vector<8x64xbf16>
      %c0_86 = arith.constant 0 : index
      %c0_87 = arith.constant 0 : index
      %220 = vector.load %arg19[%c0_86, %c0_87] : memref<8x64xbf16, #tpu.memory_space<vmem>>, vector<8x64xbf16>
      tpu.vector_store %arg19[%c0_86, %c0_87], %219 {strides = array<i32>} : memref<8x64xbf16, #tpu.memory_space<vmem>>, vector<8x64xbf16>,
    } else {
    }
    %cst = arith.constant dense<0.000000e+00> : vector<8xf32>
    %7 = vector.multi_reduction <add>, %1, %cst [1] : vector<8x32xf32> to vector<8xf32>
    %8 = vector.shape_cast %7 : vector<8xf32> to vector<8x1xf32>
    %cst_7 = arith.constant 3.200000e+01 : f32
    %9 = vector.broadcast %cst_7 : f32 to vector<8x1xf32>
    %10 = arith.divf %8, %9 : vector<8x1xf32>
    %11 = vector.broadcast %10 : vector<8x1xf32> to vector<8x32xf32>
    %12 = arith.subf %1, %11 : vector<8x32xf32>
    %13 = arith.mulf %12, %12 : vector<8x32xf32>
    %cst_8 = arith.constant dense<0.000000e+00> : vector<8xf32>
    %14 = vector.multi_reduction <add>, %13, %cst_8 [1] : vector<8x32xf32> to vector<8xf32>
    %15 = vector.shape_cast %14 : vector<8xf32> to vector<8x1xf32>
    %cst_9 = arith.constant 3.200000e+01 : f32
    %16 = vector.broadcast %cst_9 : f32 to vector<8x1xf32>
    %17 = arith.divf %15, %16 : vector<8x1xf32>
    %18 = vector.broadcast %10 : vector<8x1xf32> to vector<8x32xf32>
    %19 = arith.subf %1, %18 : vector<8x32xf32>
    %cst_10 = arith.constant 9.99999974E-6 : f32
    %20 = vector.broadcast %cst_10 : f32 to vector<8x1xf32>
    %21 = arith.addf %17, %20 : vector<8x1xf32>
    %22 = math.rsqrt %21 : vector<8x1xf32>
    %23 = vector.broadcast %22 : vector<8x1xf32> to vector<8x32xf32>
    %24 = arith.mulf %19, %23 : vector<8x32xf32>
    %25 = vector.broadcast %2 : vector<1x32xf32> to vector<8x32xf32>
    %26 = arith.mulf %24, %25 : vector<8x32xf32>
    %27 = vector.broadcast %3 : vector<1x32xf32> to vector<8x32xf32>
    %28 = arith.addf %26, %27 : vector<8x32xf32>
    %29 = arith.truncf %28 : vector<8x32xf32> to vector<8x32xbf16>
    %c0_11 = arith.constant 0 : index
    %c0_12 = arith.constant 0 : index
    %30 = vector.load %arg8[%c0_11, %c0_12] : memref<32x32xbf16, #tpu.memory_space<vmem>>, vector<32x32xbf16>
    %cst_13 = arith.constant dense<0.000000e+00> : vector<8x32xf32>
    %31 = tpu.matmul %29, %30, %cst_13 {dimension_numbers = #tpu.dot_dimension_numbers<[1], [0], [0], [1], [0, 0, 1, 1], [], []>} : vector<8x32xbf16>, vector<32x32xbf16>, vector<8x32xf32> -> vector<8x32xf32>
    %c0_14 = arith.constant 0 : index
    %c0_15 = arith.constant 0 : index
    %32 = vector.load %arg9[%c0_14, %c0_15] : memref<1x32xf32, #tpu.memory_space<vmem>>, vector<1x32xf32>
    %33 = vector.broadcast %32 : vector<1x32xf32> to vector<8x32xf32>
    %34 = arith.addf %31, %33 : vector<8x32xf32>
    %c0_16 = arith.constant 0 : index
    %c0_17 = arith.constant 0 : index
    %35 = vector.load %arg19[%c0_16, %c0_17] : memref<8x64xbf16, #tpu.memory_space<vmem>>, vector<8x64xbf16>
    %36 = vector.extract_strided_slice %35 {offsets = [0, 0], sizes = [8, 32], strides = [1, 1]} : vector<8x64xbf16> to vector<8x32xbf16>
    %37 = vector.extract_strided_slice %35 {offsets = [0, 32], sizes = [8, 32], strides = [1, 1]} : vector<8x64xbf16> to vector<8x32xbf16>
    %c8_i32 = arith.constant 8 : i32
    %38 = arith.muli %arg1, %c8_i32 : i32
    %39 = tpu.iota {dimensions = array<i32: 0>} : vector<8x8xi32>
    %40 = vector.broadcast %38 : i32 to vector<8x8xi32>
    %41 = arith.addi %40, %39 : vector<8x8xi32>
    %42 = tpu.iota {dimensions = array<i32: 1>} : vector<8x8xi32>
    %43 = arith.cmpi sle, %42, %41 : vector<8x8xi32>
    %44 = vector.extract_strided_slice %34 {offsets = [0, 0], sizes = [8, 8], strides = [1, 1]} : vector<8x32xf32> to vector<8x8xf32>
    %45 = arith.truncf %44 : vector<8x8xf32> to vector<8x8xbf16>
    %46 = vector.extract_strided_slice %36 {offsets = [0, 0], sizes = [8, 8], strides = [1, 1]} : vector<8x32xbf16> to vector<8x8xbf16>
    %47 = vector.extract_strided_slice %37 {offsets = [0, 0], sizes = [8, 8], strides = [1, 1]} : vector<8x32xbf16> to vector<8x8xbf16>
    %cst_18 = arith.constant dense<0.000000e+00> : vector<8x8xf32>
    %48 = tpu.matmul %45, %46, %cst_18 {dimension_numbers = #tpu.dot_dimension_numbers<[1], [1], [0], [0], [0, 0, 1, 0], [], []>} : vector<8x8xbf16>, vector<8x8xbf16>, vector<8x8xf32> -> vector<8x8xf32>
    %cst_19 = arith.constant 0.353553385 : f32
    %49 = vector.broadcast %cst_19 : f32 to vector<8x8xf32>
    %50 = arith.mulf %48, %49 : vector<8x8xf32>
    %cst_20 = arith.constant -1.000000e+30 : f32
    %51 = vector.broadcast %cst_20 : f32 to vector<8x8xf32>
    %52 = arith.select %43, %50, %51 : vector<8x8xi1>, vector<8x8xf32>
    %cst_21 = arith.constant dense<0xFF800000> : vector<8xf32>
    %53 = vector.multi_reduction <maximumf>, %52, %cst_21 [1] : vector<8x8xf32> to vector<8xf32>
    %54 = vector.shape_cast %53 : vector<8xf32> to vector<8x1xf32>
    %55 = vector.broadcast %54 : vector<8x1xf32> to vector<8x8xf32>
    %56 = arith.subf %52, %55 : vector<8x8xf32>
    %57 = math.exp %56 : vector<8x8xf32>
    %cst_22 = arith.constant dense<0.000000e+00> : vector<8xf32>
    %58 = vector.multi_reduction <add>, %57, %cst_22 [1] : vector<8x8xf32> to vector<8xf32>
    %59 = vector.shape_cast %58 : vector<8xf32> to vector<8x1xf32>
    %60 = arith.truncf %57 : vector<8x8xf32> to vector<8x8xbf16>
    %cst_23 = arith.constant dense<0.000000e+00> : vector<8x8xf32>
    %61 = tpu.matmul %60, %47, %cst_23 {dimension_numbers = #tpu.dot_dimension_numbers<[1], [0], [0], [1], [0, 0, 1, 1], [], []>} : vector<8x8xbf16>, vector<8x8xbf16>, vector<8x8xf32> -> vector<8x8xf32>
    %62 = tpu.reciprocal %59 {approx = true} : vector<8x1xf32> -> vector<8x1xf32>
    %63 = vector.broadcast %62 : vector<8x1xf32> to vector<8x8xf32>
    %64 = arith.mulf %61, %63 : vector<8x8xf32>
    %65 = arith.truncf %64 : vector<8x8xf32> to vector<8x8xbf16>
    %66 = vector.extract_strided_slice %34 {offsets = [0, 8], sizes = [8, 8], strides = [1, 1]} : vector<8x32xf32> to vector<8x8xf32>
    %67 = arith.truncf %66 : vector<8x8xf32> to vector<8x8xbf16>
    %68 = vector.extract_strided_slice %36 {offsets = [0, 8], sizes = [8, 8], strides = [1, 1]} : vector<8x32xbf16> to vector<8x8xbf16>
    %69 = vector.extract_strided_slice %37 {offsets = [0, 8], sizes = [8, 8], strides = [1, 1]} : vector<8x32xbf16> to vector<8x8xbf16>
    %cst_24 = arith.constant dense<0.000000e+00> : vector<8x8xf32>
    %70 = tpu.matmul %67, %68, %cst_24 {dimension_numbers = #tpu.dot_dimension_numbers<[1], [1], [0], [0], [0, 0, 1, 0], [], []>} : vector<8x8xbf16>, vector<8x8xbf16>, vector<8x8xf32> -> vector<8x8xf32>
    %cst_25 = arith.constant 0.353553385 : f32
    %71 = vector.broadcast %cst_25 : f32 to vector<8x8xf32>
    %72 = arith.mulf %70, %71 : vector<8x8xf32>
    %cst_26 = arith.constant -1.000000e+30 : f32
    %73 = vector.broadcast %cst_26 : f32 to vector<8x8xf32>
    %74 = arith.select %43, %72, %73 : vector<8x8xi1>, vector<8x8xf32>
    %cst_27 = arith.constant dense<0xFF800000> : vector<8xf32>
    %75 = vector.multi_reduction <maximumf>, %74, %cst_27 [1] : vector<8x8xf32> to vector<8xf32>
    %76 = vector.shape_cast %75 : vector<8xf32> to vector<8x1xf32>
    %77 = vector.broadcast %76 : vector<8x1xf32> to vector<8x8xf32>
    %78 = arith.subf %74, %77 : vector<8x8xf32>
    %79 = math.exp %78 : vector<8x8xf32>
    %cst_28 = arith.constant dense<0.000000e+00> : vector<8xf32>
    %80 = vector.multi_reduction <add>, %79, %cst_28 [1] : vector<8x8xf32> to vector<8xf32>
    %81 = vector.shape_cast %80 : vector<8xf32> to vector<8x1xf32>
    %82 = arith.truncf %79 : vector<8x8xf32> to vector<8x8xbf16>
    %cst_29 = arith.constant dense<0.000000e+00> : vector<8x8xf32>
    %83 = tpu.matmul %82, %69, %cst_29 {dimension_numbers = #tpu.dot_dimension_numbers<[1], [0], [0], [1], [0, 0, 1, 1], [], []>} : vector<8x8xbf16>, vector<8x8xbf16>, vector<8x8xf32> -> vector<8x8xf32>
    %84 = tpu.reciprocal %81 {approx = true} : vector<8x1xf32> -> vector<8x1xf32>
    %85 = vector.broadcast %84 : vector<8x1xf32> to vector<8x8xf32>
    %86 = arith.mulf %83, %85 : vector<8x8xf32>
    %87 = arith.truncf %86 : vector<8x8xf32> to vector<8x8xbf16>
    %88 = vector.extract_strided_slice %34 {offsets = [0, 16], sizes = [8, 8], strides = [1, 1]} : vector<8x32xf32> to vector<8x8xf32>
    %89 = arith.truncf %88 : vector<8x8xf32> to vector<8x8xbf16>
    %90 = vector.extract_strided_slice %36 {offsets = [0, 16], sizes = [8, 8], strides = [1, 1]} : vector<8x32xbf16> to vector<8x8xbf16>
    %91 = vector.extract_strided_slice %37 {offsets = [0, 16], sizes = [8, 8], strides = [1, 1]} : vector<8x32xbf16> to vector<8x8xbf16>
    %cst_30 = arith.constant dense<0.000000e+00> : vector<8x8xf32>
    %92 = tpu.matmul %89, %90, %cst_30 {dimension_numbers = #tpu.dot_dimension_numbers<[1], [1], [0], [0], [0, 0, 1, 0], [], []>} : vector<8x8xbf16>, vector<8x8xbf16>, vector<8x8xf32> -> vector<8x8xf32>
    %cst_31 = arith.constant 0.353553385 : f32
    %93 = vector.broadcast %cst_31 : f32 to vector<8x8xf32>
    %94 = arith.mulf %92, %93 : vector<8x8xf32>
    %cst_32 = arith.constant -1.000000e+30 : f32
    %95 = vector.broadcast %cst_32 : f32 to vector<8x8xf32>
    %96 = arith.select %43, %94, %95 : vector<8x8xi1>, vector<8x8xf32>
    %cst_33 = arith.constant dense<0xFF800000> : vector<8xf32>
    %97 = vector.multi_reduction <maximumf>, %96, %cst_33 [1] : vector<8x8xf32> to vector<8xf32>
    %98 = vector.shape_cast %97 : vector<8xf32> to vector<8x1xf32>
    %99 = vector.broadcast %98 : vector<8x1xf32> to vector<8x8xf32>
    %100 = arith.subf %96, %99 : vector<8x8xf32>
    %101 = math.exp %100 : vector<8x8xf32>
    %cst_34 = arith.constant dense<0.000000e+00> : vector<8xf32>
    %102 = vector.multi_reduction <add>, %101, %cst_34 [1] : vector<8x8xf32> to vector<8xf32>
    %103 = vector.shape_cast %102 : vector<8xf32> to vector<8x1xf32>
    %104 = arith.truncf %101 : vector<8x8xf32> to vector<8x8xbf16>
    %cst_35 = arith.constant dense<0.000000e+00> : vector<8x8xf32>
    %105 = tpu.matmul %104, %91, %cst_35 {dimension_numbers = #tpu.dot_dimension_numbers<[1], [0], [0], [1], [0, 0, 1, 1], [], []>} : vector<8x8xbf16>, vector<8x8xbf16>, vector<8x8xf32> -> vector<8x8xf32>
    %106 = tpu.reciprocal %103 {approx = true} : vector<8x1xf32> -> vector<8x1xf32>
    %107 = vector.broadcast %106 : vector<8x1xf32> to vector<8x8xf32>
    %108 = arith.mulf %105, %107 : vector<8x8xf32>
    %109 = arith.truncf %108 : vector<8x8xf32> to vector<8x8xbf16>
    %110 = vector.extract_strided_slice %34 {offsets = [0, 24], sizes = [8, 8], strides = [1, 1]} : vector<8x32xf32> to vector<8x8xf32>
    %111 = arith.truncf %110 : vector<8x8xf32> to vector<8x8xbf16>
    %112 = vector.extract_strided_slice %36 {offsets = [0, 24], sizes = [8, 8], strides = [1, 1]} : vector<8x32xbf16> to vector<8x8xbf16>
    %113 = vector.extract_strided_slice %37 {offsets = [0, 24], sizes = [8, 8], strides = [1, 1]} : vector<8x32xbf16> to vector<8x8xbf16>
    %cst_36 = arith.constant dense<0.000000e+00> : vector<8x8xf32>
    %114 = tpu.matmul %111, %112, %cst_36 {dimension_numbers = #tpu.dot_dimension_numbers<[1], [1], [0], [0], [0, 0, 1, 0], [], []>} : vector<8x8xbf16>, vector<8x8xbf16>, vector<8x8xf32> -> vector<8x8xf32>
    %cst_37 = arith.constant 0.353553385 : f32
    %115 = vector.broadcast %cst_37 : f32 to vector<8x8xf32>
    %116 = arith.mulf %114, %115 : vector<8x8xf32>
    %cst_38 = arith.constant -1.000000e+30 : f32
    %117 = vector.broadcast %cst_38 : f32 to vector<8x8xf32>
    %118 = arith.select %43, %116, %117 : vector<8x8xi1>, vector<8x8xf32>
    %cst_39 = arith.constant dense<0xFF800000> : vector<8xf32>
    %119 = vector.multi_reduction <maximumf>, %118, %cst_39 [1] : vector<8x8xf32> to vector<8xf32>
    %120 = vector.shape_cast %119 : vector<8xf32> to vector<8x1xf32>
    %121 = vector.broadcast %120 : vector<8x1xf32> to vector<8x8xf32>
    %122 = arith.subf %118, %121 : vector<8x8xf32>
    %123 = math.exp %122 : vector<8x8xf32>
    %cst_40 = arith.constant dense<0.000000e+00> : vector<8xf32>
    %124 = vector.multi_reduction <add>, %123, %cst_40 [1] : vector<8x8xf32> to vector<8xf32>
    %125 = vector.shape_cast %124 : vector<8xf32> to vector<8x1xf32>
    %126 = arith.truncf %123 : vector<8x8xf32> to vector<8x8xbf16>
    %cst_41 = arith.constant dense<0.000000e+00> : vector<8x8xf32>
    %127 = tpu.matmul %126, %113, %cst_41 {dimension_numbers = #tpu.dot_dimension_numbers<[1], [0], [0], [1], [0, 0, 1, 1], [], []>} : vector<8x8xbf16>, vector<8x8xbf16>, vector<8x8xf32> -> vector<8x8xf32>
    %128 = tpu.reciprocal %125 {approx = true} : vector<8x1xf32> -> vector<8x1xf32>
    %129 = vector.broadcast %128 : vector<8x1xf32> to vector<8x8xf32>
    %130 = arith.mulf %127, %129 : vector<8x8xf32>
    %131 = arith.truncf %130 : vector<8x8xf32> to vector<8x8xbf16>
    %132 = tpu.concatenate %65, %87, %109, %131 in 1 : vector<8x8xbf16>, vector<8x8xbf16>, vector<8x8xbf16>, vector<8x8xbf16> -> vector<8x32xbf16>
    %c0_42 = arith.constant 0 : index
    %c0_43 = arith.constant 0 : index
    %133 = vector.load %arg12[%c0_42, %c0_43] : memref<32x32xbf16, #tpu.memory_space<vmem>>, vector<32x32xbf16>
    %cst_44 = arith.constant dense<0.000000e+00> : vector<8x32xf32>
    %134 = tpu.matmul %132, %133, %cst_44 {dimension_numbers = #tpu.dot_dimension_numbers<[1], [0], [0], [1], [0, 0, 1, 1], [], []>} : vector<8x32xbf16>, vector<32x32xbf16>, vector<8x32xf32> -> vector<8x32xf32>
    %c0_45 = arith.constant 0 : index
    %c0_46 = arith.constant 0 : index
    %135 = vector.load %arg13[%c0_45, %c0_46] : memref<1x32xf32, #tpu.memory_space<vmem>>, vector<1x32xf32>
    %136 = vector.broadcast %135 : vector<1x32xf32> to vector<8x32xf32>
    %137 = arith.addf %134, %136 : vector<8x32xf32>
    %138 = arith.addf %1, %137 : vector<8x32xf32>
    %c0_47 = arith.constant 0 : index
    %c0_48 = arith.constant 0 : index
    %139 = vector.load %arg6[%c0_47, %c0_48] : memref<1x32xf32, #tpu.memory_space<vmem>>, vector<1x32xf32>
    %c0_49 = arith.constant 0 : index
    %c0_50 = arith.constant 0 : index
    %140 = vector.load %arg7[%c0_49, %c0_50] : memref<1x32xf32, #tpu.memory_space<vmem>>, vector<1x32xf32>
    %cst_51 = arith.constant dense<0.000000e+00> : vector<8xf32>
    %141 = vector.multi_reduction <add>, %138, %cst_51 [1] : vector<8x32xf32> to vector<8xf32>
    %142 = vector.shape_cast %141 : vector<8xf32> to vector<8x1xf32>
    %cst_52 = arith.constant 3.200000e+01 : f32
    %143 = vector.broadcast %cst_52 : f32 to vector<8x1xf32>
    %144 = arith.divf %142, %143 : vector<8x1xf32>
    %145 = vector.broadcast %144 : vector<8x1xf32> to vector<8x32xf32>
    %146 = arith.subf %138, %145 : vector<8x32xf32>
    %147 = arith.mulf %146, %146 : vector<8x32xf32>
    %cst_53 = arith.constant dense<0.000000e+00> : vector<8xf32>
    %148 = vector.multi_reduction <add>, %147, %cst_53 [1] : vector<8x32xf32> to vector<8xf32>
    %149 = vector.shape_cast %148 : vector<8xf32> to vector<8x1xf32>
    %cst_54 = arith.constant 3.200000e+01 : f32
    %150 = vector.broadcast %cst_54 : f32 to vector<8x1xf32>
    %151 = arith.divf %149, %150 : vector<8x1xf32>
    %152 = vector.broadcast %144 : vector<8x1xf32> to vector<8x32xf32>
    %153 = arith.subf %138, %152 : vector<8x32xf32>
    %cst_55 = arith.constant 9.99999974E-6 : f32
    %154 = vector.broadcast %cst_55 : f32 to vector<8x1xf32>
    %155 = arith.addf %151, %154 : vector<8x1xf32>
    %156 = math.rsqrt %155 : vector<8x1xf32>
    %157 = vector.broadcast %156 : vector<8x1xf32> to vector<8x32xf32>
    %158 = arith.mulf %153, %157 : vector<8x32xf32>
    %159 = vector.broadcast %139 : vector<1x32xf32> to vector<8x32xf32>
    %160 = arith.mulf %158, %159 : vector<8x32xf32>
    %161 = vector.broadcast %140 : vector<1x32xf32> to vector<8x32xf32>
    %162 = arith.addf %160, %161 : vector<8x32xf32>
    %163 = arith.truncf %162 : vector<8x32xf32> to vector<8x32xbf16>
    %cst_56 = arith.constant 0.000000e+00 : f32
    %164 = vector.broadcast %cst_56 : f32 to vector<8x32xf32>
    %c0_57 = arith.constant 0 : index
    %c0_58 = arith.constant 0 : index
    %165 = vector.load %arg14[%c0_57, %c0_58] : memref<32x128xbf16, #tpu.memory_space<vmem>>, vector<32x128xbf16>
    %cst_59 = arith.constant dense<0.000000e+00> : vector<8x128xf32>
    %166 = tpu.matmul %163, %165, %cst_59 {dimension_numbers = #tpu.dot_dimension_numbers<[1], [0], [0], [1], [0, 0, 1, 1], [], []>} : vector<8x32xbf16>, vector<32x128xbf16>, vector<8x128xf32> -> vector<8x128xf32>
    %c0_60 = arith.constant 0 : index
    %c0_61 = arith.constant 0 : index
    %167 = vector.load %arg15[%c0_60, %c0_61] : memref<1x128xf32, #tpu.memory_space<vmem>>, vector<1x128xf32>
    %168 = vector.broadcast %167 : vector<1x128xf32> to vector<8x128xf32>
    %169 = arith.addf %166, %168 : vector<8x128xf32>
    %cst_62 = arith.constant 5.000000e-01 : f32
    %170 = vector.broadcast %cst_62 : f32 to vector<8x128xf32>
    %171 = arith.mulf %170, %169 : vector<8x128xf32>
    %cst_63 = arith.constant 0.707106769 : f32
    %172 = vector.broadcast %cst_63 : f32 to vector<8x128xf32>
    %173 = arith.mulf %169, %172 : vector<8x128xf32>
    %174 = math.erf %173 : vector<8x128xf32>
    %cst_64 = arith.constant 1.000000e+00 : f32
    %175 = vector.broadcast %cst_64 : f32 to vector<8x128xf32>
    %176 = arith.addf %175, %174 : vector<8x128xf32>
    %177 = arith.mulf %171, %176 : vector<8x128xf32>
    %178 = arith.truncf %177 : vector<8x128xf32> to vector<8x128xbf16>
    %c0_65 = arith.constant 0 : index
    %c0_66 = arith.constant 0 : index
    %179 = vector.load %arg16[%c0_65, %c0_66] : memref<128x32xbf16, #tpu.memory_space<vmem>>, vector<128x32xbf16>
    %cst_67 = arith.constant dense<0.000000e+00> : vector<8x32xf32>
    %180 = tpu.matmul %178, %179, %cst_67 {dimension_numbers = #tpu.dot_dimension_numbers<[1], [0], [0], [1], [0, 0, 1, 1], [], []>} : vector<8x128xbf16>, vector<128x32xbf16>, vector<8x32xf32> -> vector<8x32xf32>
    %181 = arith.addf %164, %180 : vector<8x32xf32>
    %182 = arith.addf %138, %181 : vector<8x32xf32>
    %c0_68 = arith.constant 0 : index
    %c0_69 = arith.constant 0 : index
    %183 = vector.load %arg17[%c0_68, %c0_69] : memref<1x32xf32, #tpu.memory_space<vmem>>, vector<1x32xf32>
    %184 = vector.broadcast %183 : vector<1x32xf32> to vector<8x32xf32>
    %185 = arith.addf %182, %184 : vector<8x32xf32>
    %c0_70 = arith.constant 0 : index
    %c0_71 = arith.constant 0 : index
    %c0_72 = arith.constant 0 : index
    %186 = vector.load %arg18[%c0_70, %c0_71, %c0_72] : memref<1x8x32xf32, #tpu.memory_space<vmem>>, vector<1x8x32xf32>
    %187 = vector.shape_cast %186 : vector<1x8x32xf32> to vector<8x32xf32>
    %188 = vector.shape_cast %185 : vector<8x32xf32> to vector<1x8x32xf32>
    tpu.vector_store %arg18[%c0_70, %c0_71, %c0_72], %188 {strides = array<i32>} : memref<1x8x32xf32, #tpu.memory_space<vmem>>, vector<1x8x32xf32>,
    return
  }
  func.func @transform_0(%arg0: i32, %arg1: i32) -> (i32, i32, i32) {
    %c0_i32 = arith.constant 0 : i32
    %c0_i32_0 = arith.constant 0 : i32
    return %arg0, %arg1, %c0_i32 : i32, i32, i32
  }
  func.func @transform_1(%arg0: i32, %arg1: i32) -> (i32, i32, i32) {
    %c0_i32 = arith.constant 0 : i32
    %c0_i32_0 = arith.constant 0 : i32
    %c0_i32_1 = arith.constant 0 : i32
    return %arg0, %c0_i32, %c0_i32_0 : i32, i32, i32
  }
  func.func @transform_2(%arg0: i32, %arg1: i32) -> (i32, i32) {
    %c0_i32 = arith.constant 0 : i32
    %c0_i32_0 = arith.constant 0 : i32
    %c0_i32_1 = arith.constant 0 : i32
    return %c0_i32, %c0_i32_0 : i32, i32
  }
  func.func @transform_3(%arg0: i32, %arg1: i32) -> (i32, i32) {
    %c0_i32 = arith.constant 0 : i32
    %c0_i32_0 = arith.constant 0 : i32
    %c0_i32_1 = arith.constant 0 : i32
    return %c0_i32, %c0_i32_0 : i32, i32
  }
  func.func @transform_4(%arg0: i32, %arg1: i32) -> (i32, i32) {
    %c0_i32 = arith.constant 0 : i32
    %c0_i32_0 = arith.constant 0 : i32
    %c0_i32_1 = arith.constant 0 : i32
    return %c0_i32, %c0_i32_0 : i32, i32
  }
  func.func @transform_5(%arg0: i32, %arg1: i32) -> (i32, i32) {
    %c0_i32 = arith.constant 0 : i32
    %c0_i32_0 = arith.constant 0 : i32
    %c0_i32_1 = arith.constant 0 : i32
    return %c0_i32, %c0_i32_0 : i32, i32
  }
  func.func @transform_6(%arg0: i32, %arg1: i32) -> (i32, i32) {
    %c0_i32 = arith.constant 0 : i32
    %c0_i32_0 = arith.constant 0 : i32
    %c0_i32_1 = arith.constant 0 : i32
    return %c0_i32, %c0_i32_0 : i32, i32
  }
  func.func @transform_7(%arg0: i32, %arg1: i32) -> (i32, i32) {
    %c0_i32 = arith.constant 0 : i32
    %c0_i32_0 = arith.constant 0 : i32
    %c0_i32_1 = arith.constant 0 : i32
    return %c0_i32, %c0_i32_0 : i32, i32
  }
  func.func @transform_8(%arg0: i32, %arg1: i32) -> (i32, i32) {
    %c0_i32 = arith.constant 0 : i32
    %c0_i32_0 = arith.constant 0 : i32
    %c0_i32_1 = arith.constant 0 : i32
    return %c0_i32, %c0_i32_0 : i32, i32
  }
  func.func @transform_9(%arg0: i32, %arg1: i32) -> (i32, i32) {
    %c0_i32 = arith.constant 0 : i32
    %c0_i32_0 = arith.constant 0 : i32
    %c0_i32_1 = arith.constant 0 : i32
    return %c0_i32, %c0_i32_0 : i32, i32
  }
  func.func @transform_10(%arg0: i32, %arg1: i32) -> (i32, i32) {
    %c0_i32 = arith.constant 0 : i32
    %c0_i32_0 = arith.constant 0 : i32
    %c0_i32_1 = arith.constant 0 : i32
    return %c0_i32, %c0_i32_0 : i32, i32
  }
  func.func @transform_11(%arg0: i32, %arg1: i32) -> (i32, i32) {
    %c0_i32 = arith.constant 0 : i32
    %c0_i32_0 = arith.constant 0 : i32
    %c0_i32_1 = arith.constant 0 : i32
    return %c0_i32, %c0_i32_0 : i32, i32
  }
  func.func @transform_12(%arg0: i32, %arg1: i32) -> (i32, i32) {
    %c0_i32 = arith.constant 0 : i32
    %c0_i32_0 = arith.constant 0 : i32
    %c0_i32_1 = arith.constant 0 : i32
    return %c0_i32, %c0_i32_0 : i32, i32
  }
  func.func @transform_13(%arg0: i32, %arg1: i32) -> (i32, i32) {
    %c0_i32 = arith.constant 0 : i32
    %c0_i32_0 = arith.constant 0 : i32
    %c0_i32_1 = arith.constant 0 : i32
    return %c0_i32, %c0_i32_0 : i32, i32
  }
  func.func @transform_14(%arg0: i32, %arg1: i32) -> (i32, i32) {
    %c0_i32 = arith.constant 0 : i32
    %c0_i32_0 = arith.constant 0 : i32
    %c0_i32_1 = arith.constant 0 : i32
    return %c0_i32, %c0_i32_0 : i32, i32
  }
  func.func @transform_15(%arg0: i32, %arg1: i32) -> (i32, i32) {
    %c0_i32 = arith.constant 0 : i32
    %c0_i32_0 = arith.constant 0 : i32
    %c0_i32_1 = arith.constant 0 : i32
    return %c0_i32, %c0_i32_0 : i32, i32
  }
  func.func @transform_16(%arg0: i32, %arg1: i32) -> (i32, i32, i32) {
    %c0_i32 = arith.constant 0 : i32
    %c0_i32_0 = arith.constant 0 : i32
    return %arg0, %arg1, %c0_i32 : i32, i32, i32
  }
}

module attributes {stable_mosaic.version = 11 : i64} {
  func.func @block_kernel(%arg0: i32, %arg1: i32, %arg2: memref<1x8x32xf32, #tpu.memory_space<vmem>>, %arg3: memref<1x8x32xf32, #tpu.memory_space<vmem>>, %arg4: memref<1x32xf32, #tpu.memory_space<vmem>>, %arg5: memref<1x32xf32, #tpu.memory_space<vmem>>, %arg6: memref<1x32xf32, #tpu.memory_space<vmem>>, %arg7: memref<1x32xf32, #tpu.memory_space<vmem>>, %arg8: memref<32x32xbf16, #tpu.memory_space<vmem>>, %arg9: memref<1x32xf32, #tpu.memory_space<vmem>>, %arg10: memref<32x64xbf16, #tpu.memory_space<vmem>>, %arg11: memref<1x64xf32, #tpu.memory_space<vmem>>, %arg12: memref<32x32xbf16, #tpu.memory_space<vmem>>, %arg13: memref<1x32xf32, #tpu.memory_space<vmem>>, %arg14: memref<32x128xbf16, #tpu.memory_space<vmem>>, %arg15: memref<1x128xf32, #tpu.memory_space<vmem>>, %arg16: memref<128x32xbf16, #tpu.memory_space<vmem>>, %arg17: memref<1x32xf32, #tpu.memory_space<vmem>>, %arg18: memref<1x8x32xf32, #tpu.memory_space<vmem>>, %arg19: memref<8x64xbf16, #tpu.memory_space<vmem>>) attributes {dimension_semantics = [#tpu.dimension_semantics<parallel>, #tpu.dimension_semantics<arbitrary>], iteration_bounds = array<i64: 2, 1>, scalar_prefetch = 0 : i64, scratch_operands = 1 : i64, tpu.core_type = #tpu.core_type<tc>, window_params = [{transform_indices = @transform_0, window_bounds = array<i64: 1, 8, 32>}, {transform_indices = @transform_1, window_bounds = array<i64: 1, 8, 32>}, {pipeline_mode = #tpu.pipeline_mode<synchronous>, transform_indices = @transform_2, window_bounds = array<i64: 1, 32>}, {pipeline_mode = #tpu.pipeline_mode<synchronous>, transform_indices = @transform_3, window_bounds = array<i64: 1, 32>}, {pipeline_mode = #tpu.pipeline_mode<synchronous>, transform_indices = @transform_4, window_bounds = array<i64: 1, 32>}, {pipeline_mode = #tpu.pipeline_mode<synchronous>, transform_indices = @transform_5, window_bounds = array<i64: 1, 32>}, {pipeline_mode = #tpu.pipeline_mode<synchronous>, transform_indices = @transform_6, window_bounds = array<i64: 32, 32>}, {pipeline_mode = #tpu.pipeline_mode<synchronous>, transform_indices = @transform_7, window_bounds = array<i64: 1, 32>}, {pipeline_mode = #tpu.pipeline_mode<synchronous>, transform_indices = @transform_8, window_bounds = array<i64: 32, 64>}, {pipeline_mode = #tpu.pipeline_mode<synchronous>, transform_indices = @transform_9, window_bounds = array<i64: 1, 64>}, {pipeline_mode = #tpu.pipeline_mode<synchronous>, transform_indices = @transform_10, window_bounds = array<i64: 32, 32>}, {pipeline_mode = #tpu.pipeline_mode<synchronous>, transform_indices = @transform_11, window_bounds = array<i64: 1, 32>}, {pipeline_mode = #tpu.pipeline_mode<synchronous>, transform_indices = @transform_12, window_bounds = array<i64: 32, 128>}, {pipeline_mode = #tpu.pipeline_mode<synchronous>, transform_indices = @transform_13, window_bounds = array<i64: 1, 128>}, {pipeline_mode = #tpu.pipeline_mode<synchronous>, transform_indices = @transform_14, window_bounds = array<i64: 128, 32>}, {pipeline_mode = #tpu.pipeline_mode<synchronous>, transform_indices = @transform_15, window_bounds = array<i64: 1, 32>}, {transform_indices = @transform_16, window_bounds = array<i64: 1, 8, 32>}]} {
    %c0 = arith.constant 0 : index
    %c0_0 = arith.constant 0 : index
    %c0_1 = arith.constant 0 : index
    %0 = vector.load %arg2[%c0, %c0_0, %c0_1] : memref<1x8x32xf32, #tpu.memory_space<vmem>>, vector<1x8x32xf32>
    %1 = vector.shape_cast %0 : vector<1x8x32xf32> to vector<8x32xf32>
    %c0_2 = arith.constant 0 : index
    %c0_3 = arith.constant 0 : index
    %2 = vector.load %arg4[%c0_2, %c0_3] : memref<1x32xf32, #tpu.memory_space<vmem>>, vector<1x32xf32>
    %c0_4 = arith.constant 0 : index
    %c0_5 = arith.constant 0 : index
    %3 = vector.load %arg5[%c0_4, %c0_5] : memref<1x32xf32, #tpu.memory_space<vmem>>, vector<1x32xf32>
    %c0_i32 = arith.constant 0 : i32
    %4 = arith.cmpi eq, %arg1, %c0_i32 : i32
    %5 = arith.extui %4 : i1 to i32
    %c0_i32_6 = arith.constant 0 : i32
    %6 = arith.cmpi ne, %5, %c0_i32_6 : i32
    scf.if %6 {
      %c0_73 = arith.constant 0 : index
      %c0_74 = arith.constant 0 : index
      %c0_75 = arith.constant 0 : index
      %189 = vector.load %arg3[%c0_73, %c0_74, %c0_75] : memref<1x8x32xf32, #tpu.memory_space<vmem>>, vector<1x8x32xf32>
      %190 = vector.shape_cast %189 : vector<1x8x32xf32> to vector<8x32xf32>
      %cst_76 = arith.constant dense<0.000000e+00> : vector<8xf32>
      %191 = vector.multi_reduction <add>, %190, %cst_76 [1] : vector<8x32xf32> to vector<8xf32>
      %192 = vector.shape_cast %191 : vector<8xf32> to vector<8x1xf32>
      %cst_77 = arith.constant 3.200000e+01 : f32
      %193 = vector.broadcast %cst_77 : f32 to vector<8x1xf32>
      %194 = arith.divf %192, %193 : vector<8x1xf32>
      %195 = vector.broadcast %194 : vector<8x1xf32> to vector<8x32xf32>
      %196 = arith.subf %190, %195 : vector<8x32xf32>
      %197 = arith.mulf %196, %196 : vector<8x32xf32>
      %cst_78 = arith.constant dense<0.000000e+00> : vector<8xf32>
      %198 = vector.multi_reduction <add>, %197, %cst_78 [1] : vector<8x32xf32> to vector<8xf32>
      %199 = vector.shape_cast %198 : vector<8xf32> to vector<8x1xf32>
      %cst_79 = arith.constant 3.200000e+01 : f32
      %200 = vector.broadcast %cst_79 : f32 to vector<8x1xf32>
      %201 = arith.divf %199, %200 : vector<8x1xf32>
      %202 = vector.broadcast %194 : vector<8x1xf32> to vector<8x32xf32>
      %203 = arith.subf %190, %202 : vector<8x32xf32>
      %cst_80 = arith.constant 9.99999974E-6 : f32
      %204 = vector.broadcast %cst_80 : f32 to vector<8x1xf32>
      %205 = arith.addf %201, %204 : vector<8x1xf32>
      %206 = math.rsqrt %205 : vector<8x1xf32>
      %207 = vector.broadcast %206 : vector<8x1xf32> to vector<8x32xf32>
      %208 = arith.mulf %203, %207 : vector<8x32xf32>
      %209 = vector.broadcast %2 : vector<1x32xf32> to vector<8x32xf32>
      %210 = arith.mulf %208, %209 : vector<8x32xf32>
      %211 = vector.broadcast %3 : vector<1x32xf32> to vector<8x32xf32>
      %212 = arith.addf %210, %211 : vector<8x32xf32>
      %213 = arith.truncf %212 : vector<8x32xf32> to vector<8x32xbf16>
      %c0_81 = arith.constant 0 : index
      %c0_82 = arith.constant 0 : index
      %214 = vector.load %arg10[%c0_81, %c0_82] : memref<32x64xbf16, #tpu.memory_space<vmem>>, vector<32x64xbf16>
      %cst_83 = arith.constant dense<0.000000e+00> : vector<8x64xf32>
      %215 = tpu.matmul %213, %214, %cst_83 {dimension_numbers = #tpu.dot_dimension_numbers<[1], [0], [0], [1], [0, 0, 1, 1], [], []>} : vector<8x32xbf16>, vector<32x64xbf16>, vector<8x64xf32> -> vector<8x64xf32>
      %c0_84 = arith.constant 0 : index
      %c0_85 = arith.constant 0 : index
      %216 = vector.load %arg11[%c0_84, %c0_85] : memref<1x64xf32, #tpu.memory_space<vmem>>, vector<1x64xf32>
      %217 = vector.broadcast %216 : vector<1x64xf32> to vector<8x64xf32>
      %218 = arith.addf %215, %217 : vector<8x64xf32>
      %219 = arith.truncf %218 : vector<8x64xf32> to vector<8x64xbf16>
      %c0_86 = arith.constant 0 : index
      %c0_87 = arith.constant 0 : index
      %220 = vector.load %arg19[%c0_86, %c0_87] : memref<8x64xbf16, #tpu.memory_space<vmem>>, vector<8x64xbf16>
      tpu.vector_store %arg19[%c0_86, %c0_87], %219 {strides = array<i32>} : memref<8x64xbf16, #tpu.memory_space<vmem>>, vector<8x64xbf16>,
    } else {
    }
    %cst = arith.constant dense<0.000000e+00> : vector<8xf32>
    %7 = vector.multi_reduction <add>, %1, %cst [1] : vector<8x32xf32> to vector<8xf32>
    %8 = vector.shape_cast %7 : vector<8xf32> to vector<8x1xf32>
    %cst_7 = arith.constant 3.200000e+01 : f32
    %9 = vector.broadcast %cst_7 : f32 to vector<8x1xf32>
    %10 = arith.divf %8, %9 : vector<8x1xf32>
    %11 = vector.broadcast %10 : vector<8x1xf32> to vector<8x32xf32>
    %12 = arith.subf %1, %11 : vector<8x32xf32>
    %13 = arith.mulf %12, %12 : vector<8x32xf32>
    %cst_8 = arith.constant dense<0.000000e+00> : vector<8xf32>
    %14 = vector.multi_reduction <add>, %13, %cst_8 [1] : vector<8x32xf32> to vector<8xf32>
    %15 = vector.shape_cast %14 : vector<8xf32> to vector<8x1xf32>
    %cst_9 = arith.constant 3.200000e+01 : f32
    %16 = vector.broadcast %cst_9 : f32 to vector<8x1xf32>
    %17 = arith.divf %15, %16 : vector<8x1xf32>
    %18 = vector.broadcast %10 : vector<8x1xf32> to vector<8x32xf32>
    %19 = arith.subf %1, %18 : vector<8x32xf32>
    %cst_10 = arith.constant 9.99999974E-6 : f32
    %20 = vector.broadcast %cst_10 : f32 to vector<8x1xf32>
    %21 = arith.addf %17, %20 : vector<8x1xf32>
    %22 = math.rsqrt %21 : vector<8x1xf32>
    %23 = vector.broadcast %22 : vector<8x1xf32> to vector<8x32xf32>
    %24 = arith.mulf %19, %23 : vector<8x32xf32>
    %25 = vector.broadcast %2 : vector<1x32xf32> to vector<8x32xf32>
    %26 = arith.mulf %24, %25 : vector<8x32xf32>
    %27 = vector.broadcast %3 : vector<1x32xf32> to vector<8x32xf32>
    %28 = arith.addf %26, %27 : vector<8x32xf32>
    %29 = arith.truncf %28 : vector<8x32xf32> to vector<8x32xbf16>
    %c0_11 = arith.constant 0 : index
    %c0_12 = arith.constant 0 : index
    %30 = vector.load %arg8[%c0_11, %c0_12] : memref<32x32xbf16, #tpu.memory_space<vmem>>, vector<32x32xbf16>
    %cst_13 = arith.constant dense<0.000000e+00> : vector<8x32xf32>
    %31 = tpu.matmul %29, %30, %cst_13 {dimension_numbers = #tpu.dot_dimension_numbers<[1], [0], [0], [1], [0, 0, 1, 1], [], []>} : vector<8x32xbf16>, vector<32x32xbf16>, vector<8x32xf32> -> vector<8x32xf32>
    %c0_14 = arith.constant 0 : index
    %c0_15 = arith.constant 0 : index
    %32 = vector.load %arg9[%c0_14, %c0_15] : memref<1x32xf32, #tpu.memory_space<vmem>>, vector<1x32xf32>
    %33 = vector.broadcast %32 : vector<1x32xf32> to vector<8x32xf32>
    %34 = arith.addf %31, %33 : vector<8x32xf32>
    %c0_16 = arith.constant 0 : index
    %c0_17 = arith.constant 0 : index
    %35 = vector.load %arg19[%c0_16, %c0_17] : memref<8x64xbf16, #tpu.memory_space<vmem>>, vector<8x64xbf16>
    %36 = vector.extract_strided_slice %35 {offsets = [0, 0], sizes = [8, 32], strides = [1, 1]} : vector<8x64xbf16> to vector<8x32xbf16>
    %37 = vector.extract_strided_slice %35 {offsets = [0, 32], sizes = [8, 32], strides = [1, 1]} : vector<8x64xbf16> to vector<8x32xbf16>
    %c8_i32 = arith.constant 8 : i32
    %38 = arith.muli %arg1, %c8_i32 : i32
    %39 = tpu.iota {dimensions = array<i32: 0>} : vector<8x8xi32>
    %40 = vector.broadcast %38 : i32 to vector<8x8xi32>
    %41 = arith.addi %40, %39 : vector<8x8xi32>
    %42 = tpu.iota {dimensions = array<i32: 1>} : vector<8x8xi32>
    %43 = arith.cmpi sle, %42, %41 : vector<8x8xi32>
    %44 = vector.extract_strided_slice %34 {offsets = [0, 0], sizes = [8, 8], strides = [1, 1]} : vector<8x32xf32> to vector<8x8xf32>
    %45 = arith.truncf %44 : vector<8x8xf32> to vector<8x8xbf16>
    %46 = vector.extract_strided_slice %36 {offsets = [0, 0], sizes = [8, 8], strides = [1, 1]} : vector<8x32xbf16> to vector<8x8xbf16>
    %47 = vector.extract_strided_slice %37 {offsets = [0, 0], sizes = [8, 8], strides = [1, 1]} : vector<8x32xbf16> to vector<8x8xbf16>
    %cst_18 = arith.constant dense<0.000000e+00> : vector<8x8xf32>
    %48 = tpu.matmul %45, %46, %cst_18 {dimension_numbers = #tpu.dot_dimension_numbers<[1], [1], [0], [0], [0, 0, 1, 0], [], []>} : vector<8x8xbf16>, vector<8x8xbf16>, vector<8x8xf32> -> vector<8x8xf32>
    %cst_19 = arith.constant 0.353553385 : f32
    %49 = vector.broadcast %cst_19 : f32 to vector<8x8xf32>
    %50 = arith.mulf %48, %49 : vector<8x8xf32>
    %cst_20 = arith.constant -1.000000e+30 : f32
    %51 = vector.broadcast %cst_20 : f32 to vector<8x8xf32>
    %52 = arith.select %43, %50, %51 : vector<8x8xi1>, vector<8x8xf32>
    %cst_21 = arith.constant dense<0xFF800000> : vector<8xf32>
    %53 = vector.multi_reduction <maximumf>, %52, %cst_21 [1] : vector<8x8xf32> to vector<8xf32>
    %54 = vector.shape_cast %53 : vector<8xf32> to vector<8x1xf32>
    %55 = vector.broadcast %54 : vector<8x1xf32> to vector<8x8xf32>
    %56 = arith.subf %52, %55 : vector<8x8xf32>
    %57 = math.exp %56 : vector<8x8xf32>
    %cst_22 = arith.constant dense<0.000000e+00> : vector<8xf32>
    %58 = vector.multi_reduction <add>, %57, %cst_22 [1] : vector<8x8xf32> to vector<8xf32>
    %59 = vector.shape_cast %58 : vector<8xf32> to vector<8x1xf32>
    %60 = arith.truncf %57 : vector<8x8xf32> to vector<8x8xbf16>
    %cst_23 = arith.constant dense<0.000000e+00> : vector<8x8xf32>
    %61 = tpu.matmul %60, %47, %cst_23 {dimension_numbers = #tpu.dot_dimension_numbers<[1], [0], [0], [1], [0, 0, 1, 1], [], []>} : vector<8x8xbf16>, vector<8x8xbf16>, vector<8x8xf32> -> vector<8x8xf32>
    %62 = tpu.reciprocal %59 {approx = true} : vector<8x1xf32> -> vector<8x1xf32>
    %63 = vector.broadcast %62 : vector<8x1xf32> to vector<8x8xf32>
    %64 = arith.mulf %61, %63 : vector<8x8xf32>
    %65 = arith.truncf %64 : vector<8x8xf32> to vector<8x8xbf16>
    %66 = vector.extract_strided_slice %34 {offsets = [0, 8], sizes = [8, 8], strides = [1, 1]} : vector<8x32xf32> to vector<8x8xf32>
    %67 = arith.truncf %66 : vector<8x8xf32> to vector<8x8xbf16>
    %68 = vector.extract_strided_slice %36 {offsets = [0, 8], sizes = [8, 8], strides = [1, 1]} : vector<8x32xbf16> to vector<8x8xbf16>
    %69 = vector.extract_strided_slice %37 {offsets = [0, 8], sizes = [8, 8], strides = [1, 1]} : vector<8x32xbf16> to vector<8x8xbf16>
    %cst_24 = arith.constant dense<0.000000e+00> : vector<8x8xf32>
    %70 = tpu.matmul %67, %68, %cst_24 {dimension_numbers = #tpu.dot_dimension_numbers<[1], [1], [0], [0], [0, 0, 1, 0], [], []>} : vector<8x8xbf16>, vector<8x8xbf16>, vector<8x8xf32> -> vector<8x8xf32>
    %cst_25 = arith.constant 0.353553385 : f32
    %71 = vector.broadcast %cst_25 : f32 to vector<8x8xf32>
    %72 = arith.mulf %70, %71 : vector<8x8xf32>
    %cst_26 = arith.constant -1.000000e+30 : f32
    %73 = vector.broadcast %cst_26 : f32 to vector<8x8xf32>
    %74 = arith.select %43, %72, %73 : vector<8x8xi1>, vector<8x8xf32>
    %cst_27 = arith.constant dense<0xFF800000> : vector<8xf32>
    %75 = vector.multi_reduction <maximumf>, %74, %cst_27 [1] : vector<8x8xf32> to vector<8xf32>
    %76 = vector.shape_cast %75 : vector<8xf32> to vector<8x1xf32>
    %77 = vector.broadcast %76 : vector<8x1xf32> to vector<8x8xf32>
    %78 = arith.subf %74, %77 : vector<8x8xf32>
    %79 = math.exp %78 : vector<8x8xf32>
    %cst_28 = arith.constant dense<0.000000e+00> : vector<8xf32>
    %80 = vector.multi_reduction <add>, %79, %cst_28 [1] : vector<8x8xf32> to vector<8xf32>
    %81 = vector.shape_cast %80 : vector<8xf32> to vector<8x1xf32>
    %82 = arith.truncf %79 : vector<8x8xf32> to vector<8x8xbf16>
    %cst_29 = arith.constant dense<0.000000e+00> : vector<8x8xf32>
    %83 = tpu.matmul %82, %69, %cst_29 {dimension_numbers = #tpu.dot_dimension_numbers<[1], [0], [0], [1], [0, 0, 1, 1], [], []>} : vector<8x8xbf16>, vector<8x8xbf16>, vector<8x8xf32> -> vector<8x8xf32>
    %84 = tpu.reciprocal %81 {approx = true} : vector<8x1xf32> -> vector<8x1xf32>
    %85 = vector.broadcast %84 : vector<8x1xf32> to vector<8x8xf32>
    %86 = arith.mulf %83, %85 : vector<8x8xf32>
    %87 = arith.truncf %86 : vector<8x8xf32> to vector<8x8xbf16>
    %88 = vector.extract_strided_slice %34 {offsets = [0, 16], sizes = [8, 8], strides = [1, 1]} : vector<8x32xf32> to vector<8x8xf32>
    %89 = arith.truncf %88 : vector<8x8xf32> to vector<8x8xbf16>
    %90 = vector.extract_strided_slice %36 {offsets = [0, 16], sizes = [8, 8], strides = [1, 1]} : vector<8x32xbf16> to vector<8x8xbf16>
    %91 = vector.extract_strided_slice %37 {offsets = [0, 16], sizes = [8, 8], strides = [1, 1]} : vector<8x32xbf16> to vector<8x8xbf16>
    %cst_30 = arith.constant dense<0.000000e+00> : vector<8x8xf32>
    %92 = tpu.matmul %89, %90, %cst_30 {dimension_numbers = #tpu.dot_dimension_numbers<[1], [1], [0], [0], [0, 0, 1, 0], [], []>} : vector<8x8xbf16>, vector<8x8xbf16>, vector<8x8xf32> -> vector<8x8xf32>
    %cst_31 = arith.constant 0.353553385 : f32
    %93 = vector.broadcast %cst_31 : f32 to vector<8x8xf32>
    %94 = arith.mulf %92, %93 : vector<8x8xf32>
    %cst_32 = arith.constant -1.000000e+30 : f32
    %95 = vector.broadcast %cst_32 : f32 to vector<8x8xf32>
    %96 = arith.select %43, %94, %95 : vector<8x8xi1>, vector<8x8xf32>
    %cst_33 = arith.constant dense<0xFF800000> : vector<8xf32>
    %97 = vector.multi_reduction <maximumf>, %96, %cst_33 [1] : vector<8x8xf32> to vector<8xf32>
    %98 = vector.shape_cast %97 : vector<8xf32> to vector<8x1xf32>
    %99 = vector.broadcast %98 : vector<8x1xf32> to vector<8x8xf32>
    %100 = arith.subf %96, %99 : vector<8x8xf32>
    %101 = math.exp %100 : vector<8x8xf32>
    %cst_34 = arith.constant dense<0.000000e+00> : vector<8xf32>
    %102 = vector.multi_reduction <add>, %101, %cst_34 [1] : vector<8x8xf32> to vector<8xf32>
    %103 = vector.shape_cast %102 : vector<8xf32> to vector<8x1xf32>
    %104 = arith.truncf %101 : vector<8x8xf32> to vector<8x8xbf16>
    %cst_35 = arith.constant dense<0.000000e+00> : vector<8x8xf32>
    %105 = tpu.matmul %104, %91, %cst_35 {dimension_numbers = #tpu.dot_dimension_numbers<[1], [0], [0], [1], [0, 0, 1, 1], [], []>} : vector<8x8xbf16>, vector<8x8xbf16>, vector<8x8xf32> -> vector<8x8xf32>
    %106 = tpu.reciprocal %103 {approx = true} : vector<8x1xf32> -> vector<8x1xf32>
    %107 = vector.broadcast %106 : vector<8x1xf32> to vector<8x8xf32>
    %108 = arith.mulf %105, %107 : vector<8x8xf32>
    %109 = arith.truncf %108 : vector<8x8xf32> to vector<8x8xbf16>
    %110 = vector.extract_strided_slice %34 {offsets = [0, 24], sizes = [8, 8], strides = [1, 1]} : vector<8x32xf32> to vector<8x8xf32>
    %111 = arith.truncf %110 : vector<8x8xf32> to vector<8x8xbf16>
    %112 = vector.extract_strided_slice %36 {offsets = [0, 24], sizes = [8, 8], strides = [1, 1]} : vector<8x32xbf16> to vector<8x8xbf16>
    %113 = vector.extract_strided_slice %37 {offsets = [0, 24], sizes = [8, 8], strides = [1, 1]} : vector<8x32xbf16> to vector<8x8xbf16>
    %cst_36 = arith.constant dense<0.000000e+00> : vector<8x8xf32>
    %114 = tpu.matmul %111, %112, %cst_36 {dimension_numbers = #tpu.dot_dimension_numbers<[1], [1], [0], [0], [0, 0, 1, 0], [], []>} : vector<8x8xbf16>, vector<8x8xbf16>, vector<8x8xf32> -> vector<8x8xf32>
    %cst_37 = arith.constant 0.353553385 : f32
    %115 = vector.broadcast %cst_37 : f32 to vector<8x8xf32>
    %116 = arith.mulf %114, %115 : vector<8x8xf32>
    %cst_38 = arith.constant -1.000000e+30 : f32
    %117 = vector.broadcast %cst_38 : f32 to vector<8x8xf32>
    %118 = arith.select %43, %116, %117 : vector<8x8xi1>, vector<8x8xf32>
    %cst_39 = arith.constant dense<0xFF800000> : vector<8xf32>
    %119 = vector.multi_reduction <maximumf>, %118, %cst_39 [1] : vector<8x8xf32> to vector<8xf32>
    %120 = vector.shape_cast %119 : vector<8xf32> to vector<8x1xf32>
    %121 = vector.broadcast %120 : vector<8x1xf32> to vector<8x8xf32>
    %122 = arith.subf %118, %121 : vector<8x8xf32>
    %123 = math.exp %122 : vector<8x8xf32>
    %cst_40 = arith.constant dense<0.000000e+00> : vector<8xf32>
    %124 = vector.multi_reduction <add>, %123, %cst_40 [1] : vector<8x8xf32> to vector<8xf32>
    %125 = vector.shape_cast %124 : vector<8xf32> to vector<8x1xf32>
    %126 = arith.truncf %123 : vector<8x8xf32> to vector<8x8xbf16>
    %cst_41 = arith.constant dense<0.000000e+00> : vector<8x8xf32>
    %127 = tpu.matmul %126, %113, %cst_41 {dimension_numbers = #tpu.dot_dimension_numbers<[1], [0], [0], [1], [0, 0, 1, 1], [], []>} : vector<8x8xbf16>, vector<8x8xbf16>, vector<8x8xf32> -> vector<8x8xf32>
    %128 = tpu.reciprocal %125 {approx = true} : vector<8x1xf32> -> vector<8x1xf32>
    %129 = vector.broadcast %128 : vector<8x1xf32> to vector<8x8xf32>
    %130 = arith.mulf %127, %129 : vector<8x8xf32>
    %131 = arith.truncf %130 : vector<8x8xf32> to vector<8x8xbf16>
    %132 = tpu.concatenate %65, %87, %109, %131 in 1 : vector<8x8xbf16>, vector<8x8xbf16>, vector<8x8xbf16>, vector<8x8xbf16> -> vector<8x32xbf16>
    %c0_42 = arith.constant 0 : index
    %c0_43 = arith.constant 0 : index
    %133 = vector.load %arg12[%c0_42, %c0_43] : memref<32x32xbf16, #tpu.memory_space<vmem>>, vector<32x32xbf16>
    %cst_44 = arith.constant dense<0.000000e+00> : vector<8x32xf32>
    %134 = tpu.matmul %132, %133, %cst_44 {dimension_numbers = #tpu.dot_dimension_numbers<[1], [0], [0], [1], [0, 0, 1, 1], [], []>} : vector<8x32xbf16>, vector<32x32xbf16>, vector<8x32xf32> -> vector<8x32xf32>
    %c0_45 = arith.constant 0 : index
    %c0_46 = arith.constant 0 : index
    %135 = vector.load %arg13[%c0_45, %c0_46] : memref<1x32xf32, #tpu.memory_space<vmem>>, vector<1x32xf32>
    %136 = vector.broadcast %135 : vector<1x32xf32> to vector<8x32xf32>
    %137 = arith.addf %134, %136 : vector<8x32xf32>
    %138 = arith.addf %1, %137 : vector<8x32xf32>
    %c0_47 = arith.constant 0 : index
    %c0_48 = arith.constant 0 : index
    %139 = vector.load %arg6[%c0_47, %c0_48] : memref<1x32xf32, #tpu.memory_space<vmem>>, vector<1x32xf32>
    %c0_49 = arith.constant 0 : index
    %c0_50 = arith.constant 0 : index
    %140 = vector.load %arg7[%c0_49, %c0_50] : memref<1x32xf32, #tpu.memory_space<vmem>>, vector<1x32xf32>
    %cst_51 = arith.constant dense<0.000000e+00> : vector<8xf32>
    %141 = vector.multi_reduction <add>, %138, %cst_51 [1] : vector<8x32xf32> to vector<8xf32>
    %142 = vector.shape_cast %141 : vector<8xf32> to vector<8x1xf32>
    %cst_52 = arith.constant 3.200000e+01 : f32
    %143 = vector.broadcast %cst_52 : f32 to vector<8x1xf32>
    %144 = arith.divf %142, %143 : vector<8x1xf32>
    %145 = vector.broadcast %144 : vector<8x1xf32> to vector<8x32xf32>
    %146 = arith.subf %138, %145 : vector<8x32xf32>
    %147 = arith.mulf %146, %146 : vector<8x32xf32>
    %cst_53 = arith.constant dense<0.000000e+00> : vector<8xf32>
    %148 = vector.multi_reduction <add>, %147, %cst_53 [1] : vector<8x32xf32> to vector<8xf32>
    %149 = vector.shape_cast %148 : vector<8xf32> to vector<8x1xf32>
    %cst_54 = arith.constant 3.200000e+01 : f32
    %150 = vector.broadcast %cst_54 : f32 to vector<8x1xf32>
    %151 = arith.divf %149, %150 : vector<8x1xf32>
    %152 = vector.broadcast %144 : vector<8x1xf32> to vector<8x32xf32>
    %153 = arith.subf %138, %152 : vector<8x32xf32>
    %cst_55 = arith.constant 9.99999974E-6 : f32
    %154 = vector.broadcast %cst_55 : f32 to vector<8x1xf32>
    %155 = arith.addf %151, %154 : vector<8x1xf32>
    %156 = math.rsqrt %155 : vector<8x1xf32>
    %157 = vector.broadcast %156 : vector<8x1xf32> to vector<8x32xf32>
    %158 = arith.mulf %153, %157 : vector<8x32xf32>
    %159 = vector.broadcast %139 : vector<1x32xf32> to vector<8x32xf32>
    %160 = arith.mulf %158, %159 : vector<8x32xf32>
    %161 = vector.broadcast %140 : vector<1x32xf32> to vector<8x32xf32>
    %162 = arith.addf %160, %161 : vector<8x32xf32>
    %163 = arith.truncf %162 : vector<8x32xf32> to vector<8x32xbf16>
    %cst_56 = arith.constant 0.000000e+00 : f32
    %164 = vector.broadcast %cst_56 : f32 to vector<8x32xf32>
    %c0_57 = arith.constant 0 : index
    %c0_58 = arith.constant 0 : index
    %165 = vector.load %arg14[%c0_57, %c0_58] : memref<32x128xbf16, #tpu.memory_space<vmem>>, vector<32x128xbf16>
    %cst_59 = arith.constant dense<0.000000e+00> : vector<8x128xf32>
    %166 = tpu.matmul %163, %165, %cst_59 {dimension_numbers = #tpu.dot_dimension_numbers<[1], [0], [0], [1], [0, 0, 1, 1], [], []>} : vector<8x32xbf16>, vector<32x128xbf16>, vector<8x128xf32> -> vector<8x128xf32>
    %c0_60 = arith.constant 0 : index
    %c0_61 = arith.constant 0 : index
    %167 = vector.load %arg15[%c0_60, %c0_61] : memref<1x128xf32, #tpu.memory_space<vmem>>, vector<1x128xf32>
    %168 = vector.broadcast %167 : vector<1x128xf32> to vector<8x128xf32>
    %169 = arith.addf %166, %168 : vector<8x128xf32>
    %cst_62 = arith.constant 5.000000e-01 : f32
    %170 = vector.broadcast %cst_62 : f32 to vector<8x128xf32>
    %171 = arith.mulf %170, %169 : vector<8x128xf32>
    %cst_63 = arith.constant 0.707106769 : f32
    %172 = vector.broadcast %cst_63 : f32 to vector<8x128xf32>
    %173 = arith.mulf %169, %172 : vector<8x128xf32>
    %174 = math.erf %173 : vector<8x128xf32>
    %cst_64 = arith.constant 1.000000e+00 : f32
    %175 = vector.broadcast %cst_64 : f32 to vector<8x128xf32>
    %176 = arith.addf %175, %174 : vector<8x128xf32>
    %177 = arith.mulf %171, %176 : vector<8x128xf32>
    %178 = arith.truncf %177 : vector<8x128xf32> to vector<8x128xbf16>
    %c0_65 = arith.constant 0 : index
    %c0_66 = arith.constant 0 : index
    %179 = vector.load %arg16[%c0_65, %c0_66] : memref<128x32xbf16, #tpu.memory_space<vmem>>, vector<128x32xbf16>
    %cst_67 = arith.constant dense<0.000000e+00> : vector<8x32xf32>
    %180 = tpu.matmul %178, %179, %cst_67 {dimension_numbers = #tpu.dot_dimension_numbers<[1], [0], [0], [1], [0, 0, 1, 1], [], []>} : vector<8x128xbf16>, vector<128x32xbf16>, vector<8x32xf32> -> vector<8x32xf32>
    %181 = arith.addf %164, %180 : vector<8x32xf32>
    %182 = arith.addf %138, %181 : vector<8x32xf32>
    %c0_68 = arith.constant 0 : index
    %c0_69 = arith.constant 0 : index
    %183 = vector.load %arg17[%c0_68, %c0_69] : memref<1x32xf32, #tpu.memory_space<vmem>>, vector<1x32xf32>
    %184 = vector.broadcast %183 : vector<1x32xf32> to vector<8x32xf32>
    %185 = arith.addf %182, %184 : vector<8x32xf32>
    %c0_70 = arith.constant 0 : index
    %c0_71 = arith.constant 0 : index
    %c0_72 = arith.constant 0 : index
    %186 = vector.load %arg18[%c0_70, %c0_71, %c0_72] : memref<1x8x32xf32, #tpu.memory_space<vmem>>, vector<1x8x32xf32>
    %187 = vector.shape_cast %186 : vector<1x8x32xf32> to vector<8x32xf32>
    %188 = vector.shape_cast %185 : vector<8x32xf32> to vector<1x8x32xf32>
    tpu.vector_store %arg18[%c0_70, %c0_71, %c0_72], %188 {strides = array<i32>} : memref<1x8x32xf32, #tpu.memory_space<vmem>>, vector<1x8x32xf32>,
    return
  }
  func.func @transform_0(%arg0: i32, %arg1: i32) -> (i32, i32, i32) {
    %c0_i32 = arith.constant 0 : i32
    %c0_i32_0 = arith.constant 0 : i32
    return %arg0, %arg1, %c0_i32 : i32, i32, i32
  }
  func.func @transform_1(%arg0: i32, %arg1: i32) -> (i32, i32, i32) {
    %c0_i32 = arith.constant 0 : i32
    %c0_i32_0 = arith.constant 0 : i32
    %c0_i32_1 = arith.constant 0 : i32
    return %arg0, %c0_i32, %c0_i32_0 : i32, i32, i32
  }
  func.func @transform_2(%arg0: i32, %arg1: i32) -> (i32, i32) {
    %c0_i32 = arith.constant 0 : i32
    %c0_i32_0 = arith.constant 0 : i32
    %c0_i32_1 = arith.constant 0 : i32
    return %c0_i32, %c0_i32_0 : i32, i32
  }
  func.func @transform_3(%arg0: i32, %arg1: i32) -> (i32, i32) {
    %c0_i32 = arith.constant 0 : i32
    %c0_i32_0 = arith.constant 0 : i32
    %c0_i32_1 = arith.constant 0 : i32
    return %c0_i32, %c0_i32_0 : i32, i32
  }
  func.func @transform_4(%arg0: i32, %arg1: i32) -> (i32, i32) {
    %c0_i32 = arith.constant 0 : i32
    %c0_i32_0 = arith.constant 0 : i32
    %c0_i32_1 = arith.constant 0 : i32
    return %c0_i32, %c0_i32_0 : i32, i32
  }
  func.func @transform_5(%arg0: i32, %arg1: i32) -> (i32, i32) {
    %c0_i32 = arith.constant 0 : i32
    %c0_i32_0 = arith.constant 0 : i32
    %c0_i32_1 = arith.constant 0 : i32
    return %c0_i32, %c0_i32_0 : i32, i32
  }
  func.func @transform_6(%arg0: i32, %arg1: i32) -> (i32, i32) {
    %c0_i32 = arith.constant 0 : i32
    %c0_i32_0 = arith.constant 0 : i32
    %c0_i32_1 = arith.constant 0 : i32
    return %c0_i32, %c0_i32_0 : i32, i32
  }
  func.func @transform_7(%arg0: i32, %arg1: i32) -> (i32, i32) {
    %c0_i32 = arith.constant 0 : i32
    %c0_i32_0 = arith.constant 0 : i32
    %c0_i32_1 = arith.constant 0 : i32
    return %c0_i32, %c0_i32_0 : i32, i32
  }
  func.func @transform_8(%arg0: i32, %arg1: i32) -> (i32, i32) {
    %c0_i32 = arith.constant 0 : i32
    %c0_i32_0 = arith.constant 0 : i32
    %c0_i32_1 = arith.constant 0 : i32
    return %c0_i32, %c0_i32_0 : i32, i32
  }
  func.func @transform_9(%arg0: i32, %arg1: i32) -> (i32, i32) {
    %c0_i32 = arith.constant 0 : i32
    %c0_i32_0 = arith.constant 0 : i32
    %c0_i32_1 = arith.constant 0 : i32
    return %c0_i32, %c0_i32_0 : i32, i32
  }
  func.func @transform_10(%arg0: i32, %arg1: i32) -> (i32, i32) {
    %c0_i32 = arith.constant 0 : i32
    %c0_i32_0 = arith.constant 0 : i32
    %c0_i32_1 = arith.constant 0 : i32
    return %c0_i32, %c0_i32_0 : i32, i32
  }
  func.func @transform_11(%arg0: i32, %arg1: i32) -> (i32, i32) {
    %c0_i32 = arith.constant 0 : i32
    %c0_i32_0 = arith.constant 0 : i32
    %c0_i32_1 = arith.constant 0 : i32
    return %c0_i32, %c0_i32_0 : i32, i32
  }
  func.func @transform_12(%arg0: i32, %arg1: i32) -> (i32, i32) {
    %c0_i32 = arith.constant 0 : i32
    %c0_i32_0 = arith.constant 0 : i32
    %c0_i32_1 = arith.constant 0 : i32
    return %c0_i32, %c0_i32_0 : i32, i32
  }
  func.func @transform_13(%arg0: i32, %arg1: i32) -> (i32, i32) {
    %c0_i32 = arith.constant 0 : i32
    %c0_i32_0 = arith.constant 0 : i32
    %c0_i32_1 = arith.constant 0 : i32
    return %c0_i32, %c0_i32_0 : i32, i32
  }
  func.func @transform_14(%arg0: i32, %arg1: i32) -> (i32, i32) {
    %c0_i32 = arith.constant 0 : i32
    %c0_i32_0 = arith.constant 0 : i32
    %c0_i32_1 = arith.constant 0 : i32
    return %c0_i32, %c0_i32_0 : i32, i32
  }
  func.func @transform_15(%arg0: i32, %arg1: i32) -> (i32, i32) {
    %c0_i32 = arith.constant 0 : i32
    %c0_i32_0 = arith.constant 0 : i32
    %c0_i32_1 = arith.constant 0 : i32
    return %c0_i32, %c0_i32_0 : i32, i32
  }
  func.func @transform_16(%arg0: i32, %arg1: i32) -> (i32, i32, i32) {
    %c0_i32 = arith.constant 0 : i32
    %c0_i32_0 = arith.constant 0 : i32
    return %arg0, %arg1, %c0_i32 : i32, i32, i32
  }
}

</mosaic_0001>

<llo_original>
// kernel: tpu_custom_call.1
$region0: #{tpu_custom_call.1}
  #allocation0 [shape = 'u32[]', space=smem, size = 0x4, offset = 0x4, fixed_abs, tag = 'smem constant byte address 0x4 - core index']
  #allocation1 [shape = 'u32[144,128]{1,0:T(1,128)}', space=vmem, size = 0x12000, scoped, tag = 'internal scratch']
  #allocation2 [shape = 'bf16[8,64]{1,0:T(8,128)(2,1)}', space=vmem, size = 0x800, scoped, tag = 'scratch operand']
  %s0 = inlined_call_operand.hbm [shape: f32[2,8,32], index: 0, kind: input, shape index: {}]
  %s1 = inlined_call_operand.hbm [shape: f32[2,8,32], index: 1, kind: input, shape index: {}]
  %s2 = inlined_call_operand.hbm [shape: f32[1,32], index: 2, kind: input, shape index: {}]
  %s3 = inlined_call_operand.hbm [shape: f32[1,32], index: 3, kind: input, shape index: {}]
  %s4 = inlined_call_operand.hbm [shape: f32[1,32], index: 4, kind: input, shape index: {}]
  %s5 = inlined_call_operand.hbm [shape: f32[1,32], index: 5, kind: input, shape index: {}]
  %s6 = inlined_call_operand.hbm [shape: bf16[32,32], index: 6, kind: input, shape index: {}]
  %s7 = inlined_call_operand.hbm [shape: f32[1,32], index: 7, kind: input, shape index: {}]
  %s8 = inlined_call_operand.hbm [shape: bf16[32,64], index: 8, kind: input, shape index: {}]
  %s9 = inlined_call_operand.hbm [shape: f32[1,64], index: 9, kind: input, shape index: {}]
  %s10 = inlined_call_operand.hbm [shape: bf16[32,32], index: 10, kind: input, shape index: {}]
  %s11 = inlined_call_operand.hbm [shape: f32[1,32], index: 11, kind: input, shape index: {}]
  %s12 = inlined_call_operand.hbm [shape: bf16[32,128], index: 12, kind: input, shape index: {}]
  %s13 = inlined_call_operand.hbm [shape: f32[1,128], index: 13, kind: input, shape index: {}]
  %s14 = inlined_call_operand.hbm [shape: bf16[128,32], index: 14, kind: input, shape index: {}]
  %s15 = inlined_call_operand.hbm [shape: f32[1,32], index: 15, kind: input, shape index: {}]
  %s16 = inlined_call_operand.hbm [shape: f32[2,8,32], index: 16, kind: output, shape index: {}]
  %s17 = sld [smem:[#allocation0]]
  $region165: #{tpu_custom_call.1} parent=0
    _
  %s19 = ssub.s32 1, %s17
  %s20 = scalar_select 0, %s19, %s17
  $region1: #{tpu_custom_call.1} parent=0
    #allocation3 [shape = 'u8[8192]{0}', space=vmem, size = 0x2000, scoped, tag = 'input window, operand 0']
    #allocation4 [shape = 's32[2]{0}', space=sflag, size = 0x8, scoped, tag = 'scoped memory for tpu_custom_call.1']
    #allocation5 [shape = 's32[2]{0}', space=sflag, size = 0x8, scoped, tag = 'scoped memory for tpu_custom_call.1']
    #allocation6 [shape = 'u8[8192]{0}', space=vmem, size = 0x2000, scoped, tag = 'input window, operand 1']
    #allocation7 [shape = 's32[2]{0}', space=sflag, size = 0x8, scoped, tag = 'scoped memory for tpu_custom_call.1']
    #allocation8 [shape = 'u8[512]{0}', space=vmem, size = 0x400, scoped, tag = 'input window, operand 2, single buffered']
    #allocation9 [shape = 'u8[512]{0}', space=vmem, size = 0x400, scoped, tag = 'input window, operand 3, single buffered']
    #allocation10 [shape = 's32[1]{0}', space=sflag, size = 0x4, scoped, tag = 'scoped memory for tpu_custom_call.1']
    #allocation11 [shape = 'u8[512]{0}', space=vmem, size = 0x400, scoped, tag = 'input window, operand 4, single buffered']
    #allocation12 [shape = 'u8[512]{0}', space=vmem, size = 0x400, scoped, tag = 'input window, operand 5, single buffered']
    #allocation13 [shape = 's32[1]{0}', space=sflag, size = 0x4, scoped, tag = 'scoped memory for tpu_custom_call.1']
    #allocation14 [shape = 'u8[8192]{0}', space=vmem, size = 0x2000, scoped, tag = 'input window, operand 6, single buffered']
    #allocation15 [shape = 'u8[512]{0}', space=vmem, size = 0x400, scoped, tag = 'input window, operand 7, single buffered']
    #allocation16 [shape = 's32[1]{0}', space=sflag, size = 0x4, scoped, tag = 'scoped memory for tpu_custom_call.1']
    #allocation17 [shape = 'u8[8192]{0}', space=vmem, size = 0x2000, scoped, tag = 'input window, operand 8, single buffered']
    #allocation18 [shape = 'u8[512]{0}', space=vmem, size = 0x400, scoped, tag = 'input window, operand 9, single buffered']
    #allocation19 [shape = 's32[1]{0}', space=sflag, size = 0x4, scoped, tag = 'scoped memory for tpu_custom_call.1']
    #allocation20 [shape = 'u8[8192]{0}', space=vmem, size = 0x2000, scoped, tag = 'input window, operand 10, single buffered']
    #allocation21 [shape = 'u8[512]{0}', space=vmem, size = 0x400, scoped, tag = 'input window, operand 11, single buffered']
    #allocation22 [shape = 's32[1]{0}', space=sflag, size = 0x4, scoped, tag = 'scoped memory for tpu_custom_call.1']
    #allocation23 [shape = 'u8[8192]{0}', space=vmem, size = 0x2000, scoped, tag = 'input window, operand 12, single buffered']
    #allocation24 [shape = 'u8[512]{0}', space=vmem, size = 0x400, scoped, tag = 'input window, operand 13, single buffered']
    #allocation25 [shape = 's32[1]{0}', space=sflag, size = 0x4, scoped, tag = 'scoped memory for tpu_custom_call.1']
    #allocation26 [shape = 'u8[32768]{0}', space=vmem, size = 0x8000, scoped, tag = 'input window, operand 14, single buffered']
    #allocation27 [shape = 'u8[512]{0}', space=vmem, size = 0x400, scoped, tag = 'input window, operand 15, single buffered']
    #allocation28 [shape = 's32[1]{0}', space=sflag, size = 0x4, scoped, tag = 'scoped memory for tpu_custom_call.1']
    #allocation29 [shape = 'u8[8192]{0}', space=vmem, size = 0x2000, scoped, tag = 'output window, operand 0']
    %21 = vsyncpa [#allocation4], 0
    %s22 = scalar_lea.sflag [#allocation4], 1
    %23 = vsyncpa %s22, 0
    %24 = vsyncpa [#allocation7], 0
    %s25 = scalar_lea.sflag [#allocation7], 1
    %26 = vsyncpa %s25, 0
    %27 = vsyncpa [#allocation10], 0
    %28 = vsyncpa [#allocation13], 0
    %29 = vsyncpa [#allocation16], 0
    %30 = vsyncpa [#allocation19], 0
    %31 = vsyncpa [#allocation22], 0
    %32 = vsyncpa [#allocation25], 0
    %33 = vsyncpa [#allocation28], 0
    %34 = vsyncpa [#allocation5], 0
    %s35 = scalar_lea.sflag [#allocation5], 1
    %36 = vsyncpa %s35, 0
    loop: start=0, step=1, limit=4
    $region2: #{tpu_custom_call.1} parent=1 // loop_pre_header
      _
    $region3: #{tpu_custom_call.1} parent=1 // loop_header
      %s38 = sphi 0, %s42
      %p39 = scmp.ge.s32.totalorder %s38, 4
      %s45 = sphi 0, %s57
      %s46 = sphi 0, %s53
      %s47 = sphi 0, %s45
      %s48 = sphi 0, %s46
      %s49 = sphi 0, %s47
      %s50 = sphi 0, %s48
      %s62 = sphi 0, %s64
      %s65 = sphi 0, %s62
      %s66 = sphi 0, %s65
      %s82 = sphi 0, %s66
      %s88 = sphi 0, %s90
      %s91 = sphi 0, %s88
      %s92 = sphi 0, %s91
      %s108 = sphi 0, %s92
      %s112 = sphi 0, %s112
      %s114 = sphi 0, %s112
      %s115 = sphi 0, %s114
      %s129 = sphi 0, %s115
      %s133 = sphi 0, %s133
      %s135 = sphi 0, %s133
      %s136 = sphi 0, %s135
      %s150 = sphi 0, %s136
      %s154 = sphi 0, %s154
      %s156 = sphi 0, %s154
      %s157 = sphi 0, %s156
      %s171 = sphi 0, %s157
      %s175 = sphi 0, %s175
      %s177 = sphi 0, %s175
      %s178 = sphi 0, %s177
      %s192 = sphi 0, %s178
      %s196 = sphi 0, %s196
      %s198 = sphi 0, %s196
      %s199 = sphi 0, %s198
      %s213 = sphi 0, %s199
      %s217 = sphi 0, %s217
      %s219 = sphi 0, %s217
      %s220 = sphi 0, %s219
      %s234 = sphi 0, %s220
      %s238 = sphi 0, %s238
      %s240 = sphi 0, %s238
      %s241 = sphi 0, %s240
      %s255 = sphi 0, %s241
      %s259 = sphi 0, %s259
      %s261 = sphi 0, %s259
      %s262 = sphi 0, %s261
      %s276 = sphi 0, %s262
      %s280 = sphi 0, %s280
      %s282 = sphi 0, %s280
      %s283 = sphi 0, %s282
      %s297 = sphi 0, %s283
      %s301 = sphi 0, %s301
      %s303 = sphi 0, %s301
      %s304 = sphi 0, %s303
      %s318 = sphi 0, %s304
      %s322 = sphi 0, %s322
      %s324 = sphi 0, %s322
      %s325 = sphi 0, %s324
      %s339 = sphi 0, %s325
      %s343 = sphi 0, %s343
      %s345 = sphi 0, %s343
      %s346 = sphi 0, %s345
      %s360 = sphi 0, %s346
      %s364 = sphi 0, %s364
      %s366 = sphi 0, %s364
      %s367 = sphi 0, %s366
      %s381 = sphi 0, %s367
      %s385 = sphi 0, %s385
      %s387 = sphi 0, %s385
      %s388 = sphi 0, %s387
      %s402 = sphi 0, %s388
      %s410 = sphi 0, %s412
      %s413 = sphi 0, %s410
      %s414 = sphi 0, %s413
      %s430 = sphi 0, %s414
    $region4: #{tpu_custom_call.1} parent=1 // loop_header_branch
      %41 = sbr.rel (%p39) target = $region8
    $region5: #{tpu_custom_call.1} parent=1 // loop_body
      %s43 = ssub.s32 %s38, 1
      %s44 = ssub.s32 %s38, 2
      %s51 = sadd.s32 1, %s46
      %p52 = scmp.ge.s32.totalorder %s51, 1
      %s53 = scalar_select %p52, 0, %s51
      %s54 = sadd.s32 1, %s45
      %s55 = scalar_select %p52, %s54, %s45
      %p56 = scmp.ge.s32.totalorder %s55, 2
      %s57 = scalar_select %p56, 0, %s55
      %s58 = ssub.s32 %s45, %s57
      %s59 = ssub.s32 %s46, %s53
      %s60 = sor.u32 %s58, %s59
      %p61 = scmp.eq.s32.totalorder %s60, 0
      %s63 = sadd.s32 %s62, 1
      %s64 = scalar_select %p61, %s62, %s63
      %p67 = pneg %p61
      %p68 = scmp.eq.s32.totalorder %s38, 1
      %p69 = por %p67, %p68
      %p70 = scmp.ne.s32.totalorder %s62, %s65
      %p71 = scmp.eq.s32.totalorder %s38, 0
      %p72 = por %p70, %p71
      %p73 = scmp.ne.s32.totalorder %s62, %s65
      %p74 = scmp.eq.s32.totalorder %s43, 1
      %p75 = por %p73, %p74
      %p76 = scmp.ne.s32.totalorder %s65, %s66
      %p77 = scmp.eq.s32.totalorder %s43, 0
      %p78 = por %p76, %p77
      %p79 = scmp.ne.s32.totalorder %s65, %s66
      %p80 = scmp.eq.s32.totalorder %s44, 1
      %p81 = por %p79, %p80
      %p83 = scmp.ne.s32.totalorder %s66, %s82
      %p84 = scmp.eq.s32.totalorder %s44, 0
      %p85 = por %p83, %p84
      %s86 = ssub.s32 %s45, %s57
      %p87 = scmp.eq.s32.totalorder %s86, 0
      %s89 = sadd.s32 %s88, 1
      %s90 = scalar_select %p87, %s88, %s89
      %p93 = pneg %p87
      %p94 = scmp.eq.s32.totalorder %s38, 1
      %p95 = por %p93, %p94
      %p96 = scmp.ne.s32.totalorder %s88, %s91
      %p97 = scmp.eq.s32.totalorder %s38, 0
      %p98 = por %p96, %p97
      %p99 = scmp.ne.s32.totalorder %s88, %s91
      %p100 = scmp.eq.s32.totalorder %s43, 1
      %p101 = por %p99, %p100
      %p102 = scmp.ne.s32.totalorder %s91, %s92
      %p103 = scmp.eq.s32.totalorder %s43, 0
      %p104 = por %p102, %p103
      %p105 = scmp.ne.s32.totalorder %s91, %s92
      %p106 = scmp.eq.s32.totalorder %s44, 1
      %p107 = por %p105, %p106
      %p109 = scmp.ne.s32.totalorder %s92, %s108
      %p110 = scmp.eq.s32.totalorder %s44, 0
      %p111 = por %p109, %p110
      %s113 = sadd.s32 %s112, 1
      %p116 = scmp.eq.s32.totalorder %s38, 1
      %p117 = scmp.ne.s32.totalorder %s112, %s114
      %p118 = scmp.eq.s32.totalorder %s38, 0
      %p119 = por %p117, %p118
      %p120 = scmp.ne.s32.totalorder %s112, %s114
      %p121 = scmp.eq.s32.totalorder %s43, 1
      %p122 = por %p120, %p121
      %p123 = scmp.ne.s32.totalorder %s114, %s115
      %p124 = scmp.eq.s32.totalorder %s43, 0
      %p125 = por %p123, %p124
      %p126 = scmp.ne.s32.totalorder %s114, %s115
      %p127 = scmp.eq.s32.totalorder %s44, 1
      %p128 = por %p126, %p127
      %p130 = scmp.ne.s32.totalorder %s115, %s129
      %p131 = scmp.eq.s32.totalorder %s44, 0
      %p132 = por %p130, %p131
      %s134 = sadd.s32 %s133, 1
      %p137 = scmp.eq.s32.totalorder %s38, 1
      %p138 = scmp.ne.s32.totalorder %s133, %s135
      %p139 = scmp.eq.s32.totalorder %s38, 0
      %p140 = por %p138, %p139
      %p141 = scmp.ne.s32.totalorder %s133, %s135
      %p142 = scmp.eq.s32.totalorder %s43, 1
      %p143 = por %p141, %p142
      %p144 = scmp.ne.s32.totalorder %s135, %s136
      %p145 = scmp.eq.s32.totalorder %s43, 0
      %p146 = por %p144, %p145
      %p147 = scmp.ne.s32.totalorder %s135, %s136
      %p148 = scmp.eq.s32.totalorder %s44, 1
      %p149 = por %p147, %p148
      %p151 = scmp.ne.s32.totalorder %s136, %s150
      %p152 = scmp.eq.s32.totalorder %s44, 0
      %p153 = por %p151, %p152
      %s155 = sadd.s32 %s154, 1
      %p158 = scmp.eq.s32.totalorder %s38, 1
      %p159 = scmp.ne.s32.totalorder %s154, %s156
      %p160 = scmp.eq.s32.totalorder %s38, 0
      %p161 = por %p159, %p160
      %p162 = scmp.ne.s32.totalorder %s154, %s156
      %p163 = scmp.eq.s32.totalorder %s43, 1
      %p164 = por %p162, %p163
      %p165 = scmp.ne.s32.totalorder %s156, %s157
      %p166 = scmp.eq.s32.totalorder %s43, 0
      %p167 = por %p165, %p166
      %p168 = scmp.ne.s32.totalorder %s156, %s157
      %p169 = scmp.eq.s32.totalorder %s44, 1
      %p170 = por %p168, %p169
      %p172 = scmp.ne.s32.totalorder %s157, %s171
      %p173 = scmp.eq.s32.totalorder %s44, 0
      %p174 = por %p172, %p173
      %s176 = sadd.s32 %s175, 1
      %p179 = scmp.eq.s32.totalorder %s38, 1
      %p180 = scmp.ne.s32.totalorder %s175, %s177
      %p181 = scmp.eq.s32.totalorder %s38, 0
      %p182 = por %p180, %p181
      %p183 = scmp.ne.s32.totalorder %s175, %s177
      %p184 = scmp.eq.s32.totalorder %s43, 1
      %p185 = por %p183, %p184
      %p186 = scmp.ne.s32.totalorder %s177, %s178
      %p187 = scmp.eq.s32.totalorder %s43, 0
      %p188 = por %p186, %p187
      %p189 = scmp.ne.s32.totalorder %s177, %s178
      %p190 = scmp.eq.s32.totalorder %s44, 1
      %p191 = por %p189, %p190
      %p193 = scmp.ne.s32.totalorder %s178, %s192
      %p194 = scmp.eq.s32.totalorder %s44, 0
      %p195 = por %p193, %p194
      %s197 = sadd.s32 %s196, 1
      %p200 = scmp.eq.s32.totalorder %s38, 1
      %p201 = scmp.ne.s32.totalorder %s196, %s198
      %p202 = scmp.eq.s32.totalorder %s38, 0
      %p203 = por %p201, %p202
      %p204 = scmp.ne.s32.totalorder %s196, %s198
      %p205 = scmp.eq.s32.totalorder %s43, 1
      %p206 = por %p204, %p205
      %p207 = scmp.ne.s32.totalorder %s198, %s199
      %p208 = scmp.eq.s32.totalorder %s43, 0
      %p209 = por %p207, %p208
      %p210 = scmp.ne.s32.totalorder %s198, %s199
      %p211 = scmp.eq.s32.totalorder %s44, 1
      %p212 = por %p210, %p211
      %p214 = scmp.ne.s32.totalorder %s199, %s213
      %p215 = scmp.eq.s32.totalorder %s44, 0
      %p216 = por %p214, %p215
      %s218 = sadd.s32 %s217, 1
      %p221 = scmp.eq.s32.totalorder %s38, 1
      %p222 = scmp.ne.s32.totalorder %s217, %s219
      %p223 = scmp.eq.s32.totalorder %s38, 0
      %p224 = por %p222, %p223
      %p225 = scmp.ne.s32.totalorder %s217, %s219
      %p226 = scmp.eq.s32.totalorder %s43, 1
      %p227 = por %p225, %p226
      %p228 = scmp.ne.s32.totalorder %s219, %s220
      %p229 = scmp.eq.s32.totalorder %s43, 0
      %p230 = por %p228, %p229
      %p231 = scmp.ne.s32.totalorder %s219, %s220
      %p232 = scmp.eq.s32.totalorder %s44, 1
      %p233 = por %p231, %p232
      %p235 = scmp.ne.s32.totalorder %s220, %s234
      %p236 = scmp.eq.s32.totalorder %s44, 0
      %p237 = por %p235, %p236
      %s239 = sadd.s32 %s238, 1
      %p242 = scmp.eq.s32.totalorder %s38, 1
      %p243 = scmp.ne.s32.totalorder %s238, %s240
      %p244 = scmp.eq.s32.totalorder %s38, 0
      %p245 = por %p243, %p244
      %p246 = scmp.ne.s32.totalorder %s238, %s240
      %p247 = scmp.eq.s32.totalorder %s43, 1
      %p248 = por %p246, %p247
      %p249 = scmp.ne.s32.totalorder %s240, %s241
      %p250 = scmp.eq.s32.totalorder %s43, 0
      %p251 = por %p249, %p250
      %p252 = scmp.ne.s32.totalorder %s240, %s241
      %p253 = scmp.eq.s32.totalorder %s44, 1
      %p254 = por %p252, %p253
      %p256 = scmp.ne.s32.totalorder %s241, %s255
      %p257 = scmp.eq.s32.totalorder %s44, 0
      %p258 = por %p256, %p257
      %s260 = sadd.s32 %s259, 1
      %p263 = scmp.eq.s32.totalorder %s38, 1
      %p264 = scmp.ne.s32.totalorder %s259, %s261
      %p265 = scmp.eq.s32.totalorder %s38, 0
      %p266 = por %p264, %p265
      %p267 = scmp.ne.s32.totalorder %s259, %s261
      %p268 = scmp.eq.s32.totalorder %s43, 1
      %p269 = por %p267, %p268
      %p270 = scmp.ne.s32.totalorder %s261, %s262
      %p271 = scmp.eq.s32.totalorder %s43, 0
      %p272 = por %p270, %p271
      %p273 = scmp.ne.s32.totalorder %s261, %s262
      %p274 = scmp.eq.s32.totalorder %s44, 1
      %p275 = por %p273, %p274
      %p277 = scmp.ne.s32.totalorder %s262, %s276
      %p278 = scmp.eq.s32.totalorder %s44, 0
      %p279 = por %p277, %p278
      %s281 = sadd.s32 %s280, 1
      %p284 = scmp.eq.s32.totalorder %s38, 1
      %p285 = scmp.ne.s32.totalorder %s280, %s282
      %p286 = scmp.eq.s32.totalorder %s38, 0
      %p287 = por %p285, %p286
      %p288 = scmp.ne.s32.totalorder %s280, %s282
      %p289 = scmp.eq.s32.totalorder %s43, 1
      %p290 = por %p288, %p289
      %p291 = scmp.ne.s32.totalorder %s282, %s283
      %p292 = scmp.eq.s32.totalorder %s43, 0
      %p293 = por %p291, %p292
      %p294 = scmp.ne.s32.totalorder %s282, %s283
      %p295 = scmp.eq.s32.totalorder %s44, 1
      %p296 = por %p294, %p295
      %p298 = scmp.ne.s32.totalorder %s283, %s297
      %p299 = scmp.eq.s32.totalorder %s44, 0
      %p300 = por %p298, %p299
      %s302 = sadd.s32 %s301, 1
      %p305 = scmp.eq.s32.totalorder %s38, 1
      %p306 = scmp.ne.s32.totalorder %s301, %s303
      %p307 = scmp.eq.s32.totalorder %s38, 0
      %p308 = por %p306, %p307
      %p309 = scmp.ne.s32.totalorder %s301, %s303
      %p310 = scmp.eq.s32.totalorder %s43, 1
      %p311 = por %p309, %p310
      %p312 = scmp.ne.s32.totalorder %s303, %s304
      %p313 = scmp.eq.s32.totalorder %s43, 0
      %p314 = por %p312, %p313
      %p315 = scmp.ne.s32.totalorder %s303, %s304
      %p316 = scmp.eq.s32.totalorder %s44, 1
      %p317 = por %p315, %p316
      %p319 = scmp.ne.s32.totalorder %s304, %s318
      %p320 = scmp.eq.s32.totalorder %s44, 0
      %p321 = por %p319, %p320
      %s323 = sadd.s32 %s322, 1
      %p326 = scmp.eq.s32.totalorder %s38, 1
      %p327 = scmp.ne.s32.totalorder %s322, %s324
      %p328 = scmp.eq.s32.totalorder %s38, 0
      %p329 = por %p327, %p328
      %p330 = scmp.ne.s32.totalorder %s322, %s324
      %p331 = scmp.eq.s32.totalorder %s43, 1
      %p332 = por %p330, %p331
      %p333 = scmp.ne.s32.totalorder %s324, %s325
      %p334 = scmp.eq.s32.totalorder %s43, 0
      %p335 = por %p333, %p334
      %p336 = scmp.ne.s32.totalorder %s324, %s325
      %p337 = scmp.eq.s32.totalorder %s44, 1
      %p338 = por %p336, %p337
      %p340 = scmp.ne.s32.totalorder %s325, %s339
      %p341 = scmp.eq.s32.totalorder %s44, 0
      %p342 = por %p340, %p341
      %s344 = sadd.s32 %s343, 1
      %p347 = scmp.eq.s32.totalorder %s38, 1
      %p348 = scmp.ne.s32.totalorder %s343, %s345
      %p349 = scmp.eq.s32.totalorder %s38, 0
      %p350 = por %p348, %p349
      %p351 = scmp.ne.s32.totalorder %s343, %s345
      %p352 = scmp.eq.s32.totalorder %s43, 1
      %p353 = por %p351, %p352
      %p354 = scmp.ne.s32.totalorder %s345, %s346
      %p355 = scmp.eq.s32.totalorder %s43, 0
      %p356 = por %p354, %p355
      %p357 = scmp.ne.s32.totalorder %s345, %s346
      %p358 = scmp.eq.s32.totalorder %s44, 1
      %p359 = por %p357, %p358
      %p361 = scmp.ne.s32.totalorder %s346, %s360
      %p362 = scmp.eq.s32.totalorder %s44, 0
      %p363 = por %p361, %p362
      %s365 = sadd.s32 %s364, 1
      %p368 = scmp.eq.s32.totalorder %s38, 1
      %p369 = scmp.ne.s32.totalorder %s364, %s366
      %p370 = scmp.eq.s32.totalorder %s38, 0
      %p371 = por %p369, %p370
      %p372 = scmp.ne.s32.totalorder %s364, %s366
      %p373 = scmp.eq.s32.totalorder %s43, 1
      %p374 = por %p372, %p373
      %p375 = scmp.ne.s32.totalorder %s366, %s367
      %p376 = scmp.eq.s32.totalorder %s43, 0
      %p377 = por %p375, %p376
      %p378 = scmp.ne.s32.totalorder %s366, %s367
      %p379 = scmp.eq.s32.totalorder %s44, 1
      %p380 = por %p378, %p379
      %p382 = scmp.ne.s32.totalorder %s367, %s381
      %p383 = scmp.eq.s32.totalorder %s44, 0
      %p384 = por %p382, %p383
      %s386 = sadd.s32 %s385, 1
      %p389 = scmp.eq.s32.totalorder %s38, 1
      %p390 = scmp.ne.s32.totalorder %s385, %s387
      %p391 = scmp.eq.s32.totalorder %s38, 0
      %p392 = por %p390, %p391
      %p393 = scmp.ne.s32.totalorder %s385, %s387
      %p394 = scmp.eq.s32.totalorder %s43, 1
      %p395 = por %p393, %p394
      %p396 = scmp.ne.s32.totalorder %s387, %s388
      %p397 = scmp.eq.s32.totalorder %s43, 0
      %p398 = por %p396, %p397
      %p399 = scmp.ne.s32.totalorder %s387, %s388
      %p400 = scmp.eq.s32.totalorder %s44, 1
      %p401 = por %p399, %p400
      %p403 = scmp.ne.s32.totalorder %s388, %s402
      %p404 = scmp.eq.s32.totalorder %s44, 0
      %p405 = por %p403, %p404
      %s406 = ssub.s32 %s45, %s57
      %s407 = ssub.s32 %s46, %s53
      %s408 = sor.u32 %s406, %s407
      %p409 = scmp.eq.s32.totalorder %s408, 0
      %s411 = sadd.s32 %s410, 1
      %s412 = scalar_select %p409, %s410, %s411
      %p415 = pneg %p409
      %p416 = scmp.eq.s32.totalorder %s38, 1
      %p417 = por %p415, %p416
      %p418 = scmp.ne.s32.totalorder %s410, %s413
      %p419 = scmp.eq.s32.totalorder %s38, 0
      %p420 = por %p418, %p419
      %p421 = scmp.ne.s32.totalorder %s410, %s413
      %p422 = scmp.eq.s32.totalorder %s43, 1
      %p423 = por %p421, %p422
      %p424 = scmp.ne.s32.totalorder %s413, %s414
      %p425 = scmp.eq.s32.totalorder %s43, 0
      %p426 = por %p424, %p425
      %p427 = scmp.ne.s32.totalorder %s413, %s414
      %p428 = scmp.eq.s32.totalorder %s44, 1
      %p429 = por %p427, %p428
      %p431 = scmp.ne.s32.totalorder %s414, %s430
      %p432 = scmp.eq.s32.totalorder %s44, 0
      %p433 = por %p431, %p432
      %p434 = scmp.le.s32.totalorder 1, %s38
      %p435 = scmp.lt.s32.totalorder %s38, 3
      %p436 = pnand %p434, %p435
      %p437 = pneg %p436
      // Predicated region
      $region9: #{tpu_custom_call.1} parent=5 // pred_check
        _
      $region10: #{tpu_custom_call.1} parent=5 // pred_check_branch
        %439 = sbr.rel (%p436) target = $region12
      $region11: #{tpu_custom_call.1} parent=5 // pred_region
        %s440 = ssub.s32 %s38, 1
        // Predicated region
        $region13: #{tpu_custom_call.1} parent=11 // pred_check
          %p441 = pneg %p125
        $region14: #{tpu_custom_call.1} parent=11 // pred_check_branch
          %443 = sbr.rel (%p441) target = $region16
        $region15: #{tpu_custom_call.1} parent=11 // pred_region
          %s445 = ssub.s32 16, 16
          %446 = vsyncadd [#allocation7], %s445
          %s448 = sshll.u32 [#allocation8], 4
          %s449 = int_to_ptr.vmem [resolvable:$true] %s448
          %451 = dma.hbm_to_vmem [thread:$0]  %s2, 16, %s449, [#allocation7]
        $region16: #{tpu_custom_call.1} parent=11 // pred_fallthru
          _
        // Predicated region
        $region17: #{tpu_custom_call.1} parent=11 // pred_check
          %p452 = pneg %p146
        $region18: #{tpu_custom_call.1} parent=11 // pred_check_branch
          %454 = sbr.rel (%p452) target = $region20
        $region19: #{tpu_custom_call.1} parent=11 // pred_region
          %s456 = ssub.s32 16, 16
          %457 = vsyncadd [#allocation10], %s456
          %s459 = sshll.u32 [#allocation9], 4
          %s460 = int_to_ptr.vmem [resolvable:$true] %s459
          %462 = dma.hbm_to_vmem [thread:$0]  %s3, 16, %s460, [#allocation10]
        $region20: #{tpu_custom_call.1} parent=11 // pred_fallthru
          _
        // Predicated region
        $region21: #{tpu_custom_call.1} parent=11 // pred_check
          %p463 = pneg %p167
        $region22: #{tpu_custom_call.1} parent=11 // pred_check_branch
          %465 = sbr.rel (%p463) target = $region24
        $region23: #{tpu_custom_call.1} parent=11 // pred_region
          %s467 = ssub.s32 16, 16
          %468 = vsyncadd [#allocation10], %s467
          %s470 = sshll.u32 [#allocation11], 4
          %s471 = int_to_ptr.vmem [resolvable:$true] %s470
          %473 = dma.hbm_to_vmem [thread:$0]  %s4, 16, %s471, [#allocation10]
        $region24: #{tpu_custom_call.1} parent=11 // pred_fallthru
          _
        // Predicated region
        $region25: #{tpu_custom_call.1} parent=11 // pred_check
          %p474 = pneg %p188
        $region26: #{tpu_custom_call.1} parent=11 // pred_check_branch
          %476 = sbr.rel (%p474) target = $region28
        $region27: #{tpu_custom_call.1} parent=11 // pred_region
          %s478 = ssub.s32 16, 16
          %479 = vsyncadd [#allocation13], %s478
          %s481 = sshll.u32 [#allocation12], 4
          %s482 = int_to_ptr.vmem [resolvable:$true] %s481
          %484 = dma.hbm_to_vmem [thread:$0]  %s5, 16, %s482, [#allocation13]
        $region28: #{tpu_custom_call.1} parent=11 // pred_fallthru
          _
        // Predicated region
        $region29: #{tpu_custom_call.1} parent=11 // pred_check
          %p485 = pneg %p209
        $region30: #{tpu_custom_call.1} parent=11 // pred_check_branch
          %487 = sbr.rel (%p485) target = $region32
        $region31: #{tpu_custom_call.1} parent=11 // pred_region
          %s489 = ssub.s32 256, 256
          %490 = vsyncadd [#allocation13], %s489
          %s491 = sshll.u32 [#allocation14], 4
          %s492 = int_to_ptr.vmem [resolvable:$true] %s491
          %497 = dma.hbm_to_vmem [thread:$0]  %s6, 256, %s492, [#allocation13], 64, 64, 4
        $region32: #{tpu_custom_call.1} parent=11 // pred_fallthru
          _
        // Predicated region
        $region33: #{tpu_custom_call.1} parent=11 // pred_check
          %p498 = pneg %p230
        $region34: #{tpu_custom_call.1} parent=11 // pred_check_branch
          %500 = sbr.rel (%p498) target = $region36
        $region35: #{tpu_custom_call.1} parent=11 // pred_region
          %s502 = ssub.s32 16, 16
          %503 = vsyncadd [#allocation16], %s502
          %s505 = sshll.u32 [#allocation15], 4
          %s506 = int_to_ptr.vmem [resolvable:$true] %s505
          %508 = dma.hbm_to_vmem [thread:$0]  %s7, 16, %s506, [#allocation16]
        $region36: #{tpu_custom_call.1} parent=11 // pred_fallthru
          _
        // Predicated region
        $region37: #{tpu_custom_call.1} parent=11 // pred_check
          %p509 = pneg %p251
        $region38: #{tpu_custom_call.1} parent=11 // pred_check_branch
          %511 = sbr.rel (%p509) target = $region40
        $region39: #{tpu_custom_call.1} parent=11 // pred_region
          %s513 = ssub.s32 256, 256
          %514 = vsyncadd [#allocation16], %s513
          %s515 = sshll.u32 [#allocation17], 4
          %s516 = int_to_ptr.vmem [resolvable:$true] %s515
          %521 = dma.hbm_to_vmem [thread:$0]  %s8, 256, %s516, [#allocation16], 64, 64, 4
        $region40: #{tpu_custom_call.1} parent=11 // pred_fallthru
          _
        // Predicated region
        $region41: #{tpu_custom_call.1} parent=11 // pred_check
          %p522 = pneg %p272
        $region42: #{tpu_custom_call.1} parent=11 // pred_check_branch
          %524 = sbr.rel (%p522) target = $region44
        $region43: #{tpu_custom_call.1} parent=11 // pred_region
          %s526 = ssub.s32 16, 16
          %527 = vsyncadd [#allocation19], %s526
          %s529 = sshll.u32 [#allocation18], 4
          %s530 = int_to_ptr.vmem [resolvable:$true] %s529
          %532 = dma.hbm_to_vmem [thread:$0]  %s9, 16, %s530, [#allocation19]
        $region44: #{tpu_custom_call.1} parent=11 // pred_fallthru
          _
        // Predicated region
        $region45: #{tpu_custom_call.1} parent=11 // pred_check
          %p533 = pneg %p293
        $region46: #{tpu_custom_call.1} parent=11 // pred_check_branch
          %535 = sbr.rel (%p533) target = $region48
        $region47: #{tpu_custom_call.1} parent=11 // pred_region
          %s537 = ssub.s32 256, 256
          %538 = vsyncadd [#allocation19], %s537
          %s539 = sshll.u32 [#allocation20], 4
          %s540 = int_to_ptr.vmem [resolvable:$true] %s539
          %545 = dma.hbm_to_vmem [thread:$0]  %s10, 256, %s540, [#allocation19], 64, 64, 4
        $region48: #{tpu_custom_call.1} parent=11 // pred_fallthru
          _
        // Predicated region
        $region49: #{tpu_custom_call.1} parent=11 // pred_check
          %p546 = pneg %p314
        $region50: #{tpu_custom_call.1} parent=11 // pred_check_branch
          %548 = sbr.rel (%p546) target = $region52
        $region51: #{tpu_custom_call.1} parent=11 // pred_region
          %s550 = ssub.s32 16, 16
          %551 = vsyncadd [#allocation22], %s550
          %s553 = sshll.u32 [#allocation21], 4
          %s554 = int_to_ptr.vmem [resolvable:$true] %s553
          %556 = dma.hbm_to_vmem [thread:$0]  %s11, 16, %s554, [#allocation22]
        $region52: #{tpu_custom_call.1} parent=11 // pred_fallthru
          _
        // Predicated region
        $region53: #{tpu_custom_call.1} parent=11 // pred_check
          %p557 = pneg %p335
        $region54: #{tpu_custom_call.1} parent=11 // pred_check_branch
          %559 = sbr.rel (%p557) target = $region56
        $region55: #{tpu_custom_call.1} parent=11 // pred_region
          %s561 = ssub.s32 256, 256
          %562 = vsyncadd [#allocation22], %s561
          %s563 = sshll.u32 [#allocation23], 4
          %s564 = int_to_ptr.vmem [resolvable:$true] %s563
          %569 = dma.hbm_to_vmem [thread:$0]  %s12, 256, %s564, [#allocation22], 64, 64, 4
        $region56: #{tpu_custom_call.1} parent=11 // pred_fallthru
          _
        // Predicated region
        $region57: #{tpu_custom_call.1} parent=11 // pred_check
          %p570 = pneg %p356
        $region58: #{tpu_custom_call.1} parent=11 // pred_check_branch
          %572 = sbr.rel (%p570) target = $region60
        $region59: #{tpu_custom_call.1} parent=11 // pred_region
          %s574 = ssub.s32 16, 16
          %575 = vsyncadd [#allocation25], %s574
          %s577 = sshll.u32 [#allocation24], 4
          %s578 = int_to_ptr.vmem [resolvable:$true] %s577
          %580 = dma.hbm_to_vmem [thread:$0]  %s13, 16, %s578, [#allocation25]
        $region60: #{tpu_custom_call.1} parent=11 // pred_fallthru
          _
        // Predicated region
        $region61: #{tpu_custom_call.1} parent=11 // pred_check
          %p581 = pneg %p377
        $region62: #{tpu_custom_call.1} parent=11 // pred_check_branch
          %583 = sbr.rel (%p581) target = $region64
        $region63: #{tpu_custom_call.1} parent=11 // pred_region
          %s585 = ssub.s32 1024, 1024
          %586 = vsyncadd [#allocation25], %s585
          %s587 = sshll.u32 [#allocation26], 4
          %s588 = int_to_ptr.vmem [resolvable:$true] %s587
          %593 = dma.hbm_to_vmem [thread:$0]  %s14, 1024, %s588, [#allocation25], 64, 64, 4
        $region64: #{tpu_custom_call.1} parent=11 // pred_fallthru
          _
        // Predicated region
        $region65: #{tpu_custom_call.1} parent=11 // pred_check
          %p594 = pneg %p398
        $region66: #{tpu_custom_call.1} parent=11 // pred_check_branch
          %596 = sbr.rel (%p594) target = $region68
        $region67: #{tpu_custom_call.1} parent=11 // pred_region
          %s598 = ssub.s32 16, 16
          %599 = vsyncadd [#allocation28], %s598
          %s601 = sshll.u32 [#allocation27], 4
          %s602 = int_to_ptr.vmem [resolvable:$true] %s601
          %604 = dma.hbm_to_vmem [thread:$0]  %s15, 16, %s602, [#allocation28]
        $region68: #{tpu_custom_call.1} parent=11 // pred_fallthru
          _
      $region12: #{tpu_custom_call.1} parent=5 // pred_fallthru
        _
      %p605 = scmp.lt.s32.totalorder %s38, 2
      // Predicated region
      $region69: #{tpu_custom_call.1} parent=5 // pred_check
        %p606 = pneg %p605
      $region70: #{tpu_custom_call.1} parent=5 // pred_check_branch
        %608 = sbr.rel (%p606) target = $region72
      $region71: #{tpu_custom_call.1} parent=5 // pred_region
        // Predicated region
        $region73: #{tpu_custom_call.1} parent=71 // pred_check
          %p609 = pneg %p72
        $region74: #{tpu_custom_call.1} parent=71 // pred_check_branch
          %611 = sbr.rel (%p609) target = $region76
        $region75: #{tpu_custom_call.1} parent=71 // pred_region
          %s612 = sand.u32 %s62, 1
          %s613 = scalar_lea.sflag [#allocation4], %s612
          %s614 = sand.u32 %s62, 1
          %s615 = smul.addr %s614, 8
          %s616 = scalar_lea.vmem [#allocation3], %s615
          %s618 = ssub.s32 128, 128
          %619 = vsyncadd %s613, %s618
          %s620 = sadd.s32 %s46, %s45
          %s621 = smul.addr %s620, 128
          %s622 = scalar_lea.hbm %s0, %s621
          %s624 = sshll.u32 %s616, 4
          %s625 = int_to_ptr.vmem [resolvable:$true] %s624
          %627 = dma.hbm_to_vmem [thread:$0]  %s622, 128, %s625, %s613
        $region76: #{tpu_custom_call.1} parent=71 // pred_fallthru
          _
        // Predicated region
        $region77: #{tpu_custom_call.1} parent=71 // pred_check
          %p628 = pneg %p98
        $region78: #{tpu_custom_call.1} parent=71 // pred_check_branch
          %630 = sbr.rel (%p628) target = $region80
        $region79: #{tpu_custom_call.1} parent=71 // pred_region
          %s631 = sand.u32 %s38, 1
          %s632 = scalar_lea.sflag [#allocation7], %s631
          %s633 = sand.u32 %s88, 1
          %s634 = smul.addr %s633, 8
          %s635 = scalar_lea.vmem [#allocation6], %s634
          %s637 = ssub.s32 128, 128
          %638 = vsyncadd %s632, %s637
          %s639 = smul.addr %s45, 128
          %s640 = scalar_lea.hbm %s1, %s639
          %s642 = sshll.u32 %s635, 4
          %s643 = int_to_ptr.vmem [resolvable:$true] %s642
          %645 = dma.hbm_to_vmem [thread:$0]  %s640, 128, %s643, %s632
        $region80: #{tpu_custom_call.1} parent=71 // pred_fallthru
          _
      $region72: #{tpu_custom_call.1} parent=5 // pred_fallthru
        _
      %p646 = scmp.le.s32.totalorder 1, %s38
      %p647 = scmp.lt.s32.totalorder %s38, 3
      %p648 = pnand %p646, %p647
      %p649 = pneg %p648
      // Predicated region
      $region81: #{tpu_custom_call.1} parent=5 // pred_check
        _
      $region82: #{tpu_custom_call.1} parent=5 // pred_check_branch
        %651 = sbr.rel (%p648) target = $region84
      $region83: #{tpu_custom_call.1} parent=5 // pred_region
        %s652 = ssub.s32 %s38, 1
        %s653 = sand.u32 %s65, 1
        %s654 = scalar_lea.sflag [#allocation4], %s653
        %s655 = sand.u32 %s65, 1
        %s656 = smul.addr %s655, 8
        %s657 = scalar_lea.vmem [#allocation3], %s656
        // Predicated region
        $region85: #{tpu_custom_call.1} parent=83 // pred_check
          %p658 = pneg %p78
        $region86: #{tpu_custom_call.1} parent=83 // pred_check_branch
          %660 = sbr.rel (%p658) target = $region88
        $region87: #{tpu_custom_call.1} parent=83 // pred_region
          %661 = dma.done %s654, 128
        $region88: #{tpu_custom_call.1} parent=83 // pred_fallthru
          _
        %s662 = sand.u32 %s43, 1
        %s663 = scalar_lea.sflag [#allocation7], %s662
        %s664 = sand.u32 %s91, 1
        %s665 = smul.addr %s664, 8
        %s666 = scalar_lea.vmem [#allocation6], %s665
        // Predicated region
        $region89: #{tpu_custom_call.1} parent=83 // pred_check
          %p667 = pneg %p104
        $region90: #{tpu_custom_call.1} parent=83 // pred_check_branch
          %669 = sbr.rel (%p667) target = $region92
        $region91: #{tpu_custom_call.1} parent=83 // pred_region
          %670 = dma.done %s663, 128
        $region92: #{tpu_custom_call.1} parent=83 // pred_fallthru
          _
        // Predicated region
        $region93: #{tpu_custom_call.1} parent=83 // pred_check
          %p671 = pneg %p125
        $region94: #{tpu_custom_call.1} parent=83 // pred_check_branch
          %673 = sbr.rel (%p671) target = $region96
        $region95: #{tpu_custom_call.1} parent=83 // pred_region
          %674 = dma.done [#allocation7], 16
        $region96: #{tpu_custom_call.1} parent=83 // pred_fallthru
          _
        // Predicated region
        $region97: #{tpu_custom_call.1} parent=83 // pred_check
          %p675 = pneg %p146
        $region98: #{tpu_custom_call.1} parent=83 // pred_check_branch
          %677 = sbr.rel (%p675) target = $region100
        $region99: #{tpu_custom_call.1} parent=83 // pred_region
          %678 = dma.done [#allocation10], 16
        $region100: #{tpu_custom_call.1} parent=83 // pred_fallthru
          _
        // Predicated region
        $region101: #{tpu_custom_call.1} parent=83 // pred_check
          %p679 = pneg %p167
        $region102: #{tpu_custom_call.1} parent=83 // pred_check_branch
          %681 = sbr.rel (%p679) target = $region104
        $region103: #{tpu_custom_call.1} parent=83 // pred_region
          %682 = dma.done [#allocation10], 16
        $region104: #{tpu_custom_call.1} parent=83 // pred_fallthru
          _
        // Predicated region
        $region105: #{tpu_custom_call.1} parent=83 // pred_check
          %p683 = pneg %p188
        $region106: #{tpu_custom_call.1} parent=83 // pred_check_branch
          %685 = sbr.rel (%p683) target = $region108
        $region107: #{tpu_custom_call.1} parent=83 // pred_region
          %686 = dma.done [#allocation13], 16
        $region108: #{tpu_custom_call.1} parent=83 // pred_fallthru
          _
        // Predicated region
        $region109: #{tpu_custom_call.1} parent=83 // pred_check
          %p687 = pneg %p209
        $region110: #{tpu_custom_call.1} parent=83 // pred_check_branch
          %689 = sbr.rel (%p687) target = $region112
        $region111: #{tpu_custom_call.1} parent=83 // pred_region
          %690 = dma.done [#allocation13], 256
        $region112: #{tpu_custom_call.1} parent=83 // pred_fallthru
          _
        // Predicated region
        $region113: #{tpu_custom_call.1} parent=83 // pred_check
          %p691 = pneg %p230
        $region114: #{tpu_custom_call.1} parent=83 // pred_check_branch
          %693 = sbr.rel (%p691) target = $region116
        $region115: #{tpu_custom_call.1} parent=83 // pred_region
          %694 = dma.done [#allocation16], 16
        $region116: #{tpu_custom_call.1} parent=83 // pred_fallthru
          _
        // Predicated region
        $region117: #{tpu_custom_call.1} parent=83 // pred_check
          %p695 = pneg %p251
        $region118: #{tpu_custom_call.1} parent=83 // pred_check_branch
          %697 = sbr.rel (%p695) target = $region120
        $region119: #{tpu_custom_call.1} parent=83 // pred_region
          %698 = dma.done [#allocation16], 256
        $region120: #{tpu_custom_call.1} parent=83 // pred_fallthru
          _
        // Predicated region
        $region121: #{tpu_custom_call.1} parent=83 // pred_check
          %p699 = pneg %p272
        $region122: #{tpu_custom_call.1} parent=83 // pred_check_branch
          %701 = sbr.rel (%p699) target = $region124
        $region123: #{tpu_custom_call.1} parent=83 // pred_region
          %702 = dma.done [#allocation19], 16
        $region124: #{tpu_custom_call.1} parent=83 // pred_fallthru
          _
        // Predicated region
        $region125: #{tpu_custom_call.1} parent=83 // pred_check
          %p703 = pneg %p293
        $region126: #{tpu_custom_call.1} parent=83 // pred_check_branch
          %705 = sbr.rel (%p703) target = $region128
        $region127: #{tpu_custom_call.1} parent=83 // pred_region
          %706 = dma.done [#allocation19], 256
        $region128: #{tpu_custom_call.1} parent=83 // pred_fallthru
          _
        // Predicated region
        $region129: #{tpu_custom_call.1} parent=83 // pred_check
          %p707 = pneg %p314
        $region130: #{tpu_custom_call.1} parent=83 // pred_check_branch
          %709 = sbr.rel (%p707) target = $region132
        $region131: #{tpu_custom_call.1} parent=83 // pred_region
          %710 = dma.done [#allocation22], 16
        $region132: #{tpu_custom_call.1} parent=83 // pred_fallthru
          _
        // Predicated region
        $region133: #{tpu_custom_call.1} parent=83 // pred_check
          %p711 = pneg %p335
        $region134: #{tpu_custom_call.1} parent=83 // pred_check_branch
          %713 = sbr.rel (%p711) target = $region136
        $region135: #{tpu_custom_call.1} parent=83 // pred_region
          %714 = dma.done [#allocation22], 256
        $region136: #{tpu_custom_call.1} parent=83 // pred_fallthru
          _
        // Predicated region
        $region137: #{tpu_custom_call.1} parent=83 // pred_check
          %p715 = pneg %p356
        $region138: #{tpu_custom_call.1} parent=83 // pred_check_branch
          %717 = sbr.rel (%p715) target = $region140
        $region139: #{tpu_custom_call.1} parent=83 // pred_region
          %718 = dma.done [#allocation25], 16
        $region140: #{tpu_custom_call.1} parent=83 // pred_fallthru
          _
        // Predicated region
        $region141: #{tpu_custom_call.1} parent=83 // pred_check
          %p719 = pneg %p377
        $region142: #{tpu_custom_call.1} parent=83 // pred_check_branch
          %721 = sbr.rel (%p719) target = $region144
        $region143: #{tpu_custom_call.1} parent=83 // pred_region
          %722 = dma.done [#allocation25], 1024
        $region144: #{tpu_custom_call.1} parent=83 // pred_fallthru
          _
        // Predicated region
        $region145: #{tpu_custom_call.1} parent=83 // pred_check
          %p723 = pneg %p398
        $region146: #{tpu_custom_call.1} parent=83 // pred_check_branch
          %725 = sbr.rel (%p723) target = $region148
        $region147: #{tpu_custom_call.1} parent=83 // pred_region
          %726 = dma.done [#allocation28], 16
        $region148: #{tpu_custom_call.1} parent=83 // pred_fallthru
          _
        %s727 = sand.u32 %s65, 1
        %s728 = scalar_lea.sflag [#allocation4], %s727
        %s729 = sand.u32 %s65, 1
        %s730 = smul.addr %s729, 8
        %s731 = scalar_lea.vmem [#allocation3], %s730
        %p732 = pneg %p78
        %p733 = pneg %p75
        %s734 = sand.u32 %s43, 1
        %s735 = scalar_lea.sflag [#allocation7], %s734
        %s736 = sand.u32 %s91, 1
        %s737 = smul.addr %s736, 8
        %s738 = scalar_lea.vmem [#allocation6], %s737
        %p739 = pneg %p104
        %p740 = pneg %p101
        %p741 = pneg %p125
        %p742 = pneg %p122
        %p743 = pneg %p146
        %p744 = pneg %p143
        %p745 = pneg %p167
        %p746 = pneg %p164
        %p747 = pneg %p188
        %p748 = pneg %p185
        %p749 = pneg %p209
        %p750 = pneg %p206
        %p751 = pneg %p230
        %p752 = pneg %p227
        %p753 = pneg %p251
        %p754 = pneg %p248
        %p755 = pneg %p272
        %p756 = pneg %p269
        %p757 = pneg %p293
        %p758 = pneg %p290
        %p759 = pneg %p314
        %p760 = pneg %p311
        %p761 = pneg %p335
        %p762 = pneg %p332
        %p763 = pneg %p356
        %p764 = pneg %p353
        %p765 = pneg %p377
        %p766 = pneg %p374
        %p767 = pneg %p398
        %p768 = pneg %p395
        %p769 = pneg %p426
        %p770 = pneg %p423
        %s771 = sand.u32 %s413, 1
        %s772 = scalar_lea.sflag [#allocation5], %s771
        %s773 = sand.u32 %s413, 1
        %s774 = smul.addr %s773, 8
        %s775 = scalar_lea.vmem [#allocation29], %s774
        %v777 = vld [vmem:[%s657] sm:$0xff]
        %v778 = vld [vmem:[#allocation8] sm:$0x1]
        %v779 = vld [vmem:[#allocation9] sm:$0x1]
        %p780 = scmp.eq.s32.totalorder %s48, 0
        // Predicated region
        $region149: #{tpu_custom_call.1} parent=83 // pred_check
          %p781 = pneg %p780
        $region150: #{tpu_custom_call.1} parent=83 // pred_check_branch
          %783 = sbr.rel (%p781) target = $region152
        $region151: #{tpu_custom_call.1} parent=83 // pred_region
          %v784 = vld [vmem:[%s666] sm:$0xff]
          %vm785 = vcmask 261120
          %v786 = vsel %vm785, %v784, 0.0
          %787 = vadd.xlane.f32.xlu0 %v786
          %v788 = vpop.xlane.xlu0 %787
          %v789 = vrcp.pop 32.0
          %v790 = vmul.f32 %v788, %v789
          %v791 = vsub.f32 %v784, %v790
          %v792 = vmul.f32 %v791, %v791
          %v793 = vsel %vm785, %v792, 0.0
          %794 = vadd.xlane.f32.xlu0 %v793
          %v795 = vpop.xlane.xlu0 %794
          %v796 = vmul.f32 %v795, %v789
          %v797 = vadd.f32 %v796, 1e-05
          %v798 = vrsqrt.pop %v797
          %v799 = vmul.f32 %v791, %v798
          %v801 = vlaneseq
          %v802 = vshrl.u32 %v801, 7
          %v803 = vsub.s32 0, %v802
          %v804 = vrot.slane %v778, %v803
          %v806 = vmul.f32 %v799, %v804
          %v808 = vlaneseq
          %v809 = vshrl.u32 %v808, 7
          %v810 = vsub.s32 0, %v809
          %v811 = vrot.slane %v779, %v810
          %v813 = vadd.f32 %v806, %v811
          %v814 = vpack.c.bf16 %v813, %v813
          %v815 = vld [vmem:[#allocation17] sm:$0xf]
          %v816 = vld [vmem:[#allocation17 + $0x4] sm:$0xf]
          %v817 = vld [vmem:[#allocation17 + $0x8] sm:$0xf]
          %v818 = vld [vmem:[#allocation17 + $0xc] sm:$0xf]
          %v819 = vld [vmem:[#allocation18] sm:$0x1]
          %v821 = vlaneseq
          %v822 = vshrl.u32 %v821, 7
          %v823 = vsub.s32 0, %v822
          %v824 = vrot.slane %v819, %v823
          %v830 = vunpack.c.l.b16 %v815
          %v831 = vunpack.c.l.b16 %v816
          %v832 = vunpack.c.l.b16 %v817
          %v833 = vunpack.c.l.b16 %v818
          %v834 = vpack.c.b16 %v831, %v830
          %v835 = vpack.c.b16 %v833, %v832
          %v839 = vsel %vm785, %v814, 0
          %841 = vmatprep.subr.bf16.mxu0 0
          %842 = vmatpush1.bf16.msra.mxu0 %v834
          %843 = vmatprep.subr.bf16.mxu0 0
          %844 = vmatpush1.bf16.msra.mxu0 %v835
          %845 = vmatprep.subr.bf16.mxu0 0
          %846 = vmatpush1.bf16.msra.mxu0 0
          %847 = vmatprep.subr.bf16.mxu0 0
          %848 = vmatpush1.bf16.msra.mxu0 0
          %849 = vmatprep.subr.bf16.mxu0 0
          %850 = vmatpush1.bf16.msra.mxu0 0
          %851 = vmatprep.subr.bf16.mxu0 0
          %852 = vmatpush1.bf16.msra.mxu0 0
          %853 = vmatprep.subr.bf16.mxu0 0
          %854 = vmatpush1.bf16.msra.mxu0 0
          %855 = vmatprep.subr.bf16.mxu0 0
          %856 = vmatpush1.bf16.msra.mxu0 0
          %857 = vmatprep.subr.bf16.mxu0 0
          %858 = vmatpush1.bf16.msra.mxu0 0
          %859 = vmatprep.subr.bf16.mxu0 0
          %860 = vmatpush1.bf16.msra.mxu0 0
          %861 = vmatprep.subr.bf16.mxu0 0
          %862 = vmatpush1.bf16.msra.mxu0 0
          %863 = vmatprep.subr.bf16.mxu0 0
          %864 = vmatpush1.bf16.msra.mxu0 0
          %865 = vmatprep.subr.bf16.mxu0 0
          %866 = vmatpush1.bf16.msra.mxu0 0
          %867 = vmatprep.subr.bf16.mxu0 0
          %868 = vmatpush1.bf16.msra.mxu0 0
          %869 = vmatprep.subr.bf16.mxu0 0
          %870 = vmatpush1.bf16.msra.mxu0 0
          %871 = vmatprep.subr.bf16.mxu0 0
          %872 = vmatpush1.bf16.msra.mxu0 0
          %873 = vmatprep.mubr.bf16.mxu0 0
          %874 = vmatmul.mubr.bf16.gmra.mrb[0].mxu0 %v839
          %v875 = vpop.f32.mrb[0].mxu0
          %v876 = vadd.f32 %v824, %v875
          %v877 = vpop.f32.mrb[0].mxu0
          %v878 = vpop.f32.mrb[0].mxu0
          %v879 = vpop.f32.mrb[0].mxu0
          %880 = vdwg.mxu0
          %v881 = vpack.c.bf16 %v876, %v876
          %vm882 = vcmask 519168
          %883 = vst.msk [vmem:[#allocation2] sm:$0xf] %vm882, %v881
        $region152: #{tpu_custom_call.1} parent=83 // pred_fallthru
          _
        %vm884 = vcmask 261120
        %v885 = vsel %vm884, %v777, 0.0
        %886 = vadd.xlane.f32.xlu0 %v885
        %v887 = vpop.xlane.xlu0 %886
        %v888 = vrcp.pop 32.0
        %v889 = vmul.f32 %v887, %v888
        %v890 = vsub.f32 %v777, %v889
        %v891 = vmul.f32 %v890, %v890
        %v892 = vsel %vm884, %v891, 0.0
        %893 = vadd.xlane.f32.xlu0 %v892
        %v894 = vpop.xlane.xlu0 %893
        %v895 = vmul.f32 %v894, %v888
        %v896 = vadd.f32 %v895, 1e-05
        %v897 = vrsqrt.pop %v896
        %v898 = vmul.f32 %v890, %v897
        %v900 = vlaneseq
        %v901 = vshrl.u32 %v900, 7
        %v902 = vsub.s32 0, %v901
        %v903 = vrot.slane %v778, %v902
        %v905 = vmul.f32 %v898, %v903
        %v907 = vlaneseq
        %v908 = vshrl.u32 %v907, 7
        %v909 = vsub.s32 0, %v908
        %v910 = vrot.slane %v779, %v909
        %v912 = vadd.f32 %v905, %v910
        %v913 = vpack.c.bf16 %v912, %v912
        %v914 = vld [vmem:[#allocation14] sm:$0xf]
        %v915 = vld [vmem:[#allocation14 + $0x4] sm:$0xf]
        %v916 = vld [vmem:[#allocation14 + $0x8] sm:$0xf]
        %v917 = vld [vmem:[#allocation14 + $0xc] sm:$0xf]
        %v918 = vld [vmem:[#allocation15] sm:$0x1]
        %v920 = vlaneseq
        %v921 = vshrl.u32 %v920, 7
        %v922 = vsub.s32 0, %v921
        %v923 = vrot.slane %v918, %v922
        %v929 = vunpack.c.l.b16 %v914
        %v930 = vunpack.c.l.b16 %v915
        %v931 = vunpack.c.l.b16 %v916
        %v932 = vunpack.c.l.b16 %v917
        %v933 = vpack.c.b16 %v930, %v929
        %v934 = vpack.c.b16 %v932, %v931
        %v938 = vsel %vm884, %v913, 0
        %940 = vmatprep.subr.bf16.mxu0 0
        %941 = vmatpush1.bf16.msra.mxu0 %v933
        %942 = vmatprep.subr.bf16.mxu0 0
        %943 = vmatpush1.bf16.msra.mxu0 %v934
        %944 = vmatprep.subr.bf16.mxu0 0
        %945 = vmatpush1.bf16.msra.mxu0 0
        %946 = vmatprep.subr.bf16.mxu0 0
        %947 = vmatpush1.bf16.msra.mxu0 0
        %948 = vmatprep.subr.bf16.mxu0 0
        %949 = vmatpush1.bf16.msra.mxu0 0
        %950 = vmatprep.subr.bf16.mxu0 0
        %951 = vmatpush1.bf16.msra.mxu0 0
        %952 = vmatprep.subr.bf16.mxu0 0
        %953 = vmatpush1.bf16.msra.mxu0 0
        %954 = vmatprep.subr.bf16.mxu0 0
        %955 = vmatpush1.bf16.msra.mxu0 0
        %956 = vmatprep.subr.bf16.mxu0 0
        %957 = vmatpush1.bf16.msra.mxu0 0
        %958 = vmatprep.subr.bf16.mxu0 0
        %959 = vmatpush1.bf16.msra.mxu0 0
        %960 = vmatprep.subr.bf16.mxu0 0
        %961 = vmatpush1.bf16.msra.mxu0 0
        %962 = vmatprep.subr.bf16.mxu0 0
        %963 = vmatpush1.bf16.msra.mxu0 0
        %964 = vmatprep.subr.bf16.mxu0 0
        %965 = vmatpush1.bf16.msra.mxu0 0
        %966 = vmatprep.subr.bf16.mxu0 0
        %967 = vmatpush1.bf16.msra.mxu0 0
        %968 = vmatprep.subr.bf16.mxu0 0
        %969 = vmatpush1.bf16.msra.mxu0 0
        %970 = vmatprep.subr.bf16.mxu0 0
        %971 = vmatpush1.bf16.msra.mxu0 0
        %972 = vmatprep.mubr.bf16.mxu0 0
        %973 = vmatmul.mubr.bf16.gmra.mrb[0].mxu0 %v938
        %v974 = vpop.f32.mrb[0].mxu0
        %v975 = vadd.f32 %v923, %v974
        %v976 = vpop.f32.mrb[0].mxu0
        %v977 = vpop.f32.mrb[0].mxu0
        %v978 = vpop.f32.mrb[0].mxu0
        %979 = vdwg.mxu0
        %v980 = vld [vmem:[#allocation2] sm:$0xf]
        %s981 = smul.u32 %s48, 8
        %v982 = vlaneseq
        %v983 = vshrl.u32 %v982, 7
        %v984 = vstv %s981
        %v985 = vadd.s32 %v984, %v983
        %v986 = vlaneseq
        %v987 = vand.u32 %v986, 127
        %vm988 = vcmp.le.s32.totalorder %v987, %v985
        %v989 = vpack.c.bf16 %v975, %v975
        %vm990 = vcmask 64512
        %v992 = vsel %vm990, %v989, 0
        %v995 = vsel %vm990, %v980, 0
        %997 = vmatprep.subr.bf16.mxu0 0
        %998 = vmatpush1.bf16.xpose.msra.mxu0 %v995
        %999 = vmatprep.subr.bf16.mxu0 0
        %1000 = vmatpush1.bf16.xpose.msra.mxu0 0
        %1001 = vmatprep.subr.bf16.mxu0 0
        %1002 = vmatpush1.bf16.xpose.msra.mxu0 0
        %1003 = vmatprep.subr.bf16.mxu0 0
        %1004 = vmatpush1.bf16.xpose.msra.mxu0 0
        %1005 = vmatprep.subr.bf16.mxu0 0
        %1006 = vmatpush1.bf16.xpose.msra.mxu0 0
        %1007 = vmatprep.subr.bf16.mxu0 0
        %1008 = vmatpush1.bf16.xpose.msra.mxu0 0
        %1009 = vmatprep.subr.bf16.mxu0 0
        %1010 = vmatpush1.bf16.xpose.msra.mxu0 0
        %1011 = vmatprep.subr.bf16.mxu0 0
        %1012 = vmatpush1.bf16.xpose.msra.mxu0 0
        %1013 = vmatprep.subr.bf16.mxu0 0
        %1014 = vmatpush1.bf16.xpose.msra.mxu0 0
        %1015 = vmatprep.subr.bf16.mxu0 0
        %1016 = vmatpush1.bf16.xpose.msra.mxu0 0
        %1017 = vmatprep.subr.bf16.mxu0 0
        %1018 = vmatpush1.bf16.xpose.msra.mxu0 0
        %1019 = vmatprep.subr.bf16.mxu0 0
        %1020 = vmatpush1.bf16.xpose.msra.mxu0 0
        %1021 = vmatprep.subr.bf16.mxu0 0
        %1022 = vmatpush1.bf16.xpose.msra.mxu0 0
        %1023 = vmatprep.subr.bf16.mxu0 0
        %1024 = vmatpush1.bf16.xpose.msra.mxu0 0
        %1025 = vmatprep.subr.bf16.mxu0 0
        %1026 = vmatpush1.bf16.xpose.msra.mxu0 0
        %1027 = vmatprep.subr.bf16.mxu0 0
        %1028 = vmatpush1.bf16.xpose.msra.mxu0 0
        %1029 = vmatprep.mubr.bf16.mxu0 0
        %1030 = vmatmul.mubr.bf16.gmra.mrb[0].mxu0 %v992
        %v1031 = vpop.f32.mrb[0].mxu0
        %v1032 = vadd.f32 0.0, %v1031
        %v1033 = vpop.f32.mrb[0].mxu0
        %v1034 = vpop.f32.mrb[0].mxu0
        %v1035 = vpop.f32.mrb[0].mxu0
        %1036 = vdwg.mxu0
        %v1037 = vmul.f32 %v1032, 0.35355338
        %v1038 = vsel %vm988, %v1037, -1e+30
        %v1039 = vsel %vm990, %v1038, -inf
        %1040 = vmax.xlane.f32.xlu0 %v1039
        %v1041 = vpop.xlane.xlu0 %1040
        %v1042 = vsub.f32 %v1038, %v1041
        %v1043 = vmul.f32 %v1042, 1.442695
        %v1044 = vpow.pop %v1043
        %v1045 = vsel %vm990, %v1044, 0.0
        %1046 = vadd.xlane.f32.xlu0 %v1045
        %v1047 = vpop.xlane.xlu0 %1046
        %v1048 = vpack.c.bf16 %v1044, %v1044
        %v1050 = vunpack.c.l.b16 %v980
        %v1051 = vpack.c.b16 %v1050, %v1050
        %1052 = vrot.lane.b32.xlu0 %v1051, 96
        %v1053 = vpop.permute.xlu0 %1052
        %v1055 = vsel %vm990, %v1048, 0
        %vm1057 = vcmask 1043456
        %v1059 = vsel %vm1057, %v1053, 0
        %1061 = vmatprep.subr.bf16.mxu0 0
        %1062 = vmatpush1.bf16.msra.mxu0 %v1059
        %1063 = vmatprep.subr.bf16.mxu0 0
        %1064 = vmatpush1.bf16.msra.mxu0 0
        %1065 = vmatprep.subr.bf16.mxu0 0
        %1066 = vmatpush1.bf16.msra.mxu0 0
        %1067 = vmatprep.subr.bf16.mxu0 0
        %1068 = vmatpush1.bf16.msra.mxu0 0
        %1069 = vmatprep.subr.bf16.mxu0 0
        %1070 = vmatpush1.bf16.msra.mxu0 0
        %1071 = vmatprep.subr.bf16.mxu0 0
        %1072 = vmatpush1.bf16.msra.mxu0 0
        %1073 = vmatprep.subr.bf16.mxu0 0
        %1074 = vmatpush1.bf16.msra.mxu0 0
        %1075 = vmatprep.subr.bf16.mxu0 0
        %1076 = vmatpush1.bf16.msra.mxu0 0
        %1077 = vmatprep.subr.bf16.mxu0 0
        %1078 = vmatpush1.bf16.msra.mxu0 0
        %1079 = vmatprep.subr.bf16.mxu0 0
        %1080 = vmatpush1.bf16.msra.mxu0 0
        %1081 = vmatprep.subr.bf16.mxu0 0
        %1082 = vmatpush1.bf16.msra.mxu0 0
        %1083 = vmatprep.subr.bf16.mxu0 0
        %1084 = vmatpush1.bf16.msra.mxu0 0
        %1085 = vmatprep.subr.bf16.mxu0 0
        %1086 = vmatpush1.bf16.msra.mxu0 0
        %1087 = vmatprep.subr.bf16.mxu0 0
        %1088 = vmatpush1.bf16.msra.mxu0 0
        %1089 = vmatprep.subr.bf16.mxu0 0
        %1090 = vmatpush1.bf16.msra.mxu0 0
        %1091 = vmatprep.subr.bf16.mxu0 0
        %1092 = vmatpush1.bf16.msra.mxu0 0
        %1093 = vmatprep.mubr.bf16.mxu0 0
        %1094 = vmatmul.mubr.bf16.gmra.mrb[0].mxu0 %v1055
        %v1095 = vpop.f32.mrb[0].mxu0
        %v1096 = vadd.f32 0.0, %v1095
        %v1097 = vpop.f32.mrb[0].mxu0
        %v1098 = vpop.f32.mrb[0].mxu0
        %v1099 = vpop.f32.mrb[0].mxu0
        %1100 = vdwg.mxu0
        %v1101 = vrcp.pop %v1047
        %v1102 = vmul.f32 %v1096, %v1101
        %v1103 = vpack.c.bf16 %v1102, %v1102
        %1105 = vrot.lane.b32.xlu0 %v989, 120
        %v1106 = vpop.permute.xlu0 %1105
        %1107 = vrot.lane.b32.xlu0 %v1051, 120
        %v1108 = vpop.permute.xlu0 %1107
        %v1110 = vsel %vm990, %v1106, 0
        %v1113 = vsel %vm990, %v1108, 0
        %1115 = vmatprep.subr.bf16.mxu0 0
        %1116 = vmatpush1.bf16.xpose.msra.mxu0 %v1113
        %1117 = vmatprep.subr.bf16.mxu0 0
        %1118 = vmatpush1.bf16.xpose.msra.mxu0 0
        %1119 = vmatprep.subr.bf16.mxu0 0
        %1120 = vmatpush1.bf16.xpose.msra.mxu0 0
        %1121 = vmatprep.subr.bf16.mxu0 0
        %1122 = vmatpush1.bf16.xpose.msra.mxu0 0
        %1123 = vmatprep.subr.bf16.mxu0 0
        %1124 = vmatpush1.bf16.xpose.msra.mxu0 0
        %1125 = vmatprep.subr.bf16.mxu0 0
        %1126 = vmatpush1.bf16.xpose.msra.mxu0 0
        %1127 = vmatprep.subr.bf16.mxu0 0
        %1128 = vmatpush1.bf16.xpose.msra.mxu0 0
        %1129 = vmatprep.subr.bf16.mxu0 0
        %1130 = vmatpush1.bf16.xpose.msra.mxu0 0
        %1131 = vmatprep.subr.bf16.mxu0 0
        %1132 = vmatpush1.bf16.xpose.msra.mxu0 0
        %1133 = vmatprep.subr.bf16.mxu0 0
        %1134 = vmatpush1.bf16.xpose.msra.mxu0 0
        %1135 = vmatprep.subr.bf16.mxu0 0
        %1136 = vmatpush1.bf16.xpose.msra.mxu0 0
        %1137 = vmatprep.subr.bf16.mxu0 0
        %1138 = vmatpush1.bf16.xpose.msra.mxu0 0
        %1139 = vmatprep.subr.bf16.mxu0 0
        %1140 = vmatpush1.bf16.xpose.msra.mxu0 0
        %1141 = vmatprep.subr.bf16.mxu0 0
        %1142 = vmatpush1.bf16.xpose.msra.mxu0 0
        %1143 = vmatprep.subr.bf16.mxu0 0
        %1144 = vmatpush1.bf16.xpose.msra.mxu0 0
        %1145 = vmatprep.subr.bf16.mxu0 0
        %1146 = vmatpush1.bf16.xpose.msra.mxu0 0
        %1147 = vmatprep.mubr.bf16.mxu0 0
        %1148 = vmatmul.mubr.bf16.gmra.mrb[0].mxu0 %v1110
        %v1149 = vpop.f32.mrb[0].mxu0
        %v1150 = vadd.f32 0.0, %v1149
        %v1151 = vpop.f32.mrb[0].mxu0
        %v1152 = vpop.f32.mrb[0].mxu0
        %v1153 = vpop.f32.mrb[0].mxu0
        %1154 = vdwg.mxu0
        %v1155 = vmul.f32 %v1150, 0.35355338
        %v1156 = vsel %vm988, %v1155, -1e+30
        %v1157 = vsel %vm990, %v1156, -inf
        %1158 = vmax.xlane.f32.xlu0 %v1157
        %v1159 = vpop.xlane.xlu0 %1158
        %v1160 = vsub.f32 %v1156, %v1159
        %v1161 = vmul.f32 %v1160, 1.442695
        %v1162 = vpow.pop %v1161
        %v1163 = vsel %vm990, %v1162, 0.0
        %1164 = vadd.xlane.f32.xlu0 %v1163
        %v1165 = vpop.xlane.xlu0 %1164
        %v1166 = vpack.c.bf16 %v1162, %v1162
        %1167 = vrot.lane.b32.xlu0 %v1051, 88
        %v1168 = vpop.permute.xlu0 %1167
        %v1170 = vsel %vm990, %v1166, 0
        %v1173 = vsel %vm1057, %v1168, 0
        %1175 = vmatprep.subr.bf16.mxu0 0
        %1176 = vmatpush1.bf16.msra.mxu0 %v1173
        %1177 = vmatprep.subr.bf16.mxu0 0
        %1178 = vmatpush1.bf16.msra.mxu0 0
        %1179 = vmatprep.subr.bf16.mxu0 0
        %1180 = vmatpush1.bf16.msra.mxu0 0
        %1181 = vmatprep.subr.bf16.mxu0 0
        %1182 = vmatpush1.bf16.msra.mxu0 0
        %1183 = vmatprep.subr.bf16.mxu0 0
        %1184 = vmatpush1.bf16.msra.mxu0 0
        %1185 = vmatprep.subr.bf16.mxu0 0
        %1186 = vmatpush1.bf16.msra.mxu0 0
        %1187 = vmatprep.subr.bf16.mxu0 0
        %1188 = vmatpush1.bf16.msra.mxu0 0
        %1189 = vmatprep.subr.bf16.mxu0 0
        %1190 = vmatpush1.bf16.msra.mxu0 0
        %1191 = vmatprep.subr.bf16.mxu0 0
        %1192 = vmatpush1.bf16.msra.mxu0 0
        %1193 = vmatprep.subr.bf16.mxu0 0
        %1194 = vmatpush1.bf16.msra.mxu0 0
        %1195 = vmatprep.subr.bf16.mxu0 0
        %1196 = vmatpush1.bf16.msra.mxu0 0
        %1197 = vmatprep.subr.bf16.mxu0 0
        %1198 = vmatpush1.bf16.msra.mxu0 0
        %1199 = vmatprep.subr.bf16.mxu0 0
        %1200 = vmatpush1.bf16.msra.mxu0 0
        %1201 = vmatprep.subr.bf16.mxu0 0
        %1202 = vmatpush1.bf16.msra.mxu0 0
        %1203 = vmatprep.subr.bf16.mxu0 0
        %1204 = vmatpush1.bf16.msra.mxu0 0
        %1205 = vmatprep.subr.bf16.mxu0 0
        %1206 = vmatpush1.bf16.msra.mxu0 0
        %1207 = vmatprep.mubr.bf16.mxu0 0
        %1208 = vmatmul.mubr.bf16.gmra.mrb[0].mxu0 %v1170
        %v1209 = vpop.f32.mrb[0].mxu0
        %v1210 = vadd.f32 0.0, %v1209
        %v1211 = vpop.f32.mrb[0].mxu0
        %v1212 = vpop.f32.mrb[0].mxu0
        %v1213 = vpop.f32.mrb[0].mxu0
        %1214 = vdwg.mxu0
        %v1215 = vrcp.pop %v1165
        %v1216 = vmul.f32 %v1210, %v1215
        %v1217 = vpack.c.bf16 %v1216, %v1216
        %1218 = vrot.lane.b32.xlu0 %v989, 112
        %v1219 = vpop.permute.xlu0 %1218
        %1220 = vrot.lane.b32.xlu0 %v1051, 112
        %v1221 = vpop.permute.xlu0 %1220
        %v1223 = vsel %vm990, %v1219, 0
        %v1226 = vsel %vm990, %v1221, 0
        %1228 = vmatprep.subr.bf16.mxu0 0
        %1229 = vmatpush1.bf16.xpose.msra.mxu0 %v1226
        %1230 = vmatprep.subr.bf16.mxu0 0
        %1231 = vmatpush1.bf16.xpose.msra.mxu0 0
        %1232 = vmatprep.subr.bf16.mxu0 0
        %1233 = vmatpush1.bf16.xpose.msra.mxu0 0
        %1234 = vmatprep.subr.bf16.mxu0 0
        %1235 = vmatpush1.bf16.xpose.msra.mxu0 0
        %1236 = vmatprep.subr.bf16.mxu0 0
        %1237 = vmatpush1.bf16.xpose.msra.mxu0 0
        %1238 = vmatprep.subr.bf16.mxu0 0
        %1239 = vmatpush1.bf16.xpose.msra.mxu0 0
        %1240 = vmatprep.subr.bf16.mxu0 0
        %1241 = vmatpush1.bf16.xpose.msra.mxu0 0
        %1242 = vmatprep.subr.bf16.mxu0 0
        %1243 = vmatpush1.bf16.xpose.msra.mxu0 0
        %1244 = vmatprep.subr.bf16.mxu0 0
        %1245 = vmatpush1.bf16.xpose.msra.mxu0 0
        %1246 = vmatprep.subr.bf16.mxu0 0
        %1247 = vmatpush1.bf16.xpose.msra.mxu0 0
        %1248 = vmatprep.subr.bf16.mxu0 0
        %1249 = vmatpush1.bf16.xpose.msra.mxu0 0
        %1250 = vmatprep.subr.bf16.mxu0 0
        %1251 = vmatpush1.bf16.xpose.msra.mxu0 0
        %1252 = vmatprep.subr.bf16.mxu0 0
        %1253 = vmatpush1.bf16.xpose.msra.mxu0 0
        %1254 = vmatprep.subr.bf16.mxu0 0
        %1255 = vmatpush1.bf16.xpose.msra.mxu0 0
        %1256 = vmatprep.subr.bf16.mxu0 0
        %1257 = vmatpush1.bf16.xpose.msra.mxu0 0
        %1258 = vmatprep.subr.bf16.mxu0 0
        %1259 = vmatpush1.bf16.xpose.msra.mxu0 0
        %1260 = vmatprep.mubr.bf16.mxu0 0
        %1261 = vmatmul.mubr.bf16.gmra.mrb[0].mxu0 %v1223
        %v1262 = vpop.f32.mrb[0].mxu0
        %v1263 = vadd.f32 0.0, %v1262
        %v1264 = vpop.f32.mrb[0].mxu0
        %v1265 = vpop.f32.mrb[0].mxu0
        %v1266 = vpop.f32.mrb[0].mxu0
        %1267 = vdwg.mxu0
        %v1268 = vmul.f32 %v1263, 0.35355338
        %v1269 = vsel %vm988, %v1268, -1e+30
        %v1270 = vsel %vm990, %v1269, -inf
        %1271 = vmax.xlane.f32.xlu0 %v1270
        %v1272 = vpop.xlane.xlu0 %1271
        %v1273 = vsub.f32 %v1269, %v1272
        %v1274 = vmul.f32 %v1273, 1.442695
        %v1275 = vpow.pop %v1274
        %v1276 = vsel %vm990, %v1275, 0.0
        %1277 = vadd.xlane.f32.xlu0 %v1276
        %v1278 = vpop.xlane.xlu0 %1277
        %v1279 = vpack.c.bf16 %v1275, %v1275
        %1280 = vrot.lane.b32.xlu0 %v1051, 80
        %v1281 = vpop.permute.xlu0 %1280
        %v1283 = vsel %vm990, %v1279, 0
        %v1286 = vsel %vm1057, %v1281, 0
        %1288 = vmatprep.subr.bf16.mxu0 0
        %1289 = vmatpush1.bf16.msra.mxu0 %v1286
        %1290 = vmatprep.subr.bf16.mxu0 0
        %1291 = vmatpush1.bf16.msra.mxu0 0
        %1292 = vmatprep.subr.bf16.mxu0 0
        %1293 = vmatpush1.bf16.msra.mxu0 0
        %1294 = vmatprep.subr.bf16.mxu0 0
        %1295 = vmatpush1.bf16.msra.mxu0 0
        %1296 = vmatprep.subr.bf16.mxu0 0
        %1297 = vmatpush1.bf16.msra.mxu0 0
        %1298 = vmatprep.subr.bf16.mxu0 0
        %1299 = vmatpush1.bf16.msra.mxu0 0
        %1300 = vmatprep.subr.bf16.mxu0 0
        %1301 = vmatpush1.bf16.msra.mxu0 0
        %1302 = vmatprep.subr.bf16.mxu0 0
        %1303 = vmatpush1.bf16.msra.mxu0 0
        %1304 = vmatprep.subr.bf16.mxu0 0
        %1305 = vmatpush1.bf16.msra.mxu0 0
        %1306 = vmatprep.subr.bf16.mxu0 0
        %1307 = vmatpush1.bf16.msra.mxu0 0
        %1308 = vmatprep.subr.bf16.mxu0 0
        %1309 = vmatpush1.bf16.msra.mxu0 0
        %1310 = vmatprep.subr.bf16.mxu0 0
        %1311 = vmatpush1.bf16.msra.mxu0 0
        %1312 = vmatprep.subr.bf16.mxu0 0
        %1313 = vmatpush1.bf16.msra.mxu0 0
        %1314 = vmatprep.subr.bf16.mxu0 0
        %1315 = vmatpush1.bf16.msra.mxu0 0
        %1316 = vmatprep.subr.bf16.mxu0 0
        %1317 = vmatpush1.bf16.msra.mxu0 0
        %1318 = vmatprep.subr.bf16.mxu0 0
        %1319 = vmatpush1.bf16.msra.mxu0 0
        %1320 = vmatprep.mubr.bf16.mxu0 0
        %1321 = vmatmul.mubr.bf16.gmra.mrb[0].mxu0 %v1283
        %v1322 = vpop.f32.mrb[0].mxu0
        %v1323 = vadd.f32 0.0, %v1322
        %v1324 = vpop.f32.mrb[0].mxu0
        %v1325 = vpop.f32.mrb[0].mxu0
        %v1326 = vpop.f32.mrb[0].mxu0
        %1327 = vdwg.mxu0
        %v1328 = vrcp.pop %v1278
        %v1329 = vmul.f32 %v1323, %v1328
        %v1330 = vpack.c.bf16 %v1329, %v1329
        %1331 = vrot.lane.b32.xlu0 %v989, 104
        %v1332 = vpop.permute.xlu0 %1331
        %1333 = vrot.lane.b32.xlu0 %v1051, 104
        %v1334 = vpop.permute.xlu0 %1333
        %v1336 = vsel %vm990, %v1332, 0
        %v1339 = vsel %vm990, %v1334, 0
        %1341 = vmatprep.subr.bf16.mxu0 0
        %1342 = vmatpush1.bf16.xpose.msra.mxu0 %v1339
        %1343 = vmatprep.subr.bf16.mxu0 0
        %1344 = vmatpush1.bf16.xpose.msra.mxu0 0
        %1345 = vmatprep.subr.bf16.mxu0 0
        %1346 = vmatpush1.bf16.xpose.msra.mxu0 0
        %1347 = vmatprep.subr.bf16.mxu0 0
        %1348 = vmatpush1.bf16.xpose.msra.mxu0 0
        %1349 = vmatprep.subr.bf16.mxu0 0
        %1350 = vmatpush1.bf16.xpose.msra.mxu0 0
        %1351 = vmatprep.subr.bf16.mxu0 0
        %1352 = vmatpush1.bf16.xpose.msra.mxu0 0
        %1353 = vmatprep.subr.bf16.mxu0 0
        %1354 = vmatpush1.bf16.xpose.msra.mxu0 0
        %1355 = vmatprep.subr.bf16.mxu0 0
        %1356 = vmatpush1.bf16.xpose.msra.mxu0 0
        %1357 = vmatprep.subr.bf16.mxu0 0
        %1358 = vmatpush1.bf16.xpose.msra.mxu0 0
        %1359 = vmatprep.subr.bf16.mxu0 0
        %1360 = vmatpush1.bf16.xpose.msra.mxu0 0
        %1361 = vmatprep.subr.bf16.mxu0 0
        %1362 = vmatpush1.bf16.xpose.msra.mxu0 0
        %1363 = vmatprep.subr.bf16.mxu0 0
        %1364 = vmatpush1.bf16.xpose.msra.mxu0 0
        %1365 = vmatprep.subr.bf16.mxu0 0
        %1366 = vmatpush1.bf16.xpose.msra.mxu0 0
        %1367 = vmatprep.subr.bf16.mxu0 0
        %1368 = vmatpush1.bf16.xpose.msra.mxu0 0
        %1369 = vmatprep.subr.bf16.mxu0 0
        %1370 = vmatpush1.bf16.xpose.msra.mxu0 0
        %1371 = vmatprep.subr.bf16.mxu0 0
        %1372 = vmatpush1.bf16.xpose.msra.mxu0 0
        %1373 = vmatprep.mubr.bf16.mxu0 0
        %1374 = vmatmul.mubr.bf16.gmra.mrb[0].mxu0 %v1336
        %v1375 = vpop.f32.mrb[0].mxu0
        %v1376 = vadd.f32 0.0, %v1375
        %v1377 = vpop.f32.mrb[0].mxu0
        %v1378 = vpop.f32.mrb[0].mxu0
        %v1379 = vpop.f32.mrb[0].mxu0
        %1380 = vdwg.mxu0
        %v1381 = vmul.f32 %v1376, 0.35355338
        %v1382 = vsel %vm988, %v1381, -1e+30
        %v1383 = vsel %vm990, %v1382, -inf
        %1384 = vmax.xlane.f32.xlu0 %v1383
        %v1385 = vpop.xlane.xlu0 %1384
        %v1386 = vsub.f32 %v1382, %v1385
        %v1387 = vmul.f32 %v1386, 1.442695
        %v1388 = vpow.pop %v1387
        %v1389 = vsel %vm990, %v1388, 0.0
        %1390 = vadd.xlane.f32.xlu0 %v1389
        %v1391 = vpop.xlane.xlu0 %1390
        %v1392 = vpack.c.bf16 %v1388, %v1388
        %1393 = vrot.lane.b32.xlu0 %v1051, 72
        %v1394 = vpop.permute.xlu0 %1393
        %v1396 = vsel %vm990, %v1392, 0
        %v1399 = vsel %vm1057, %v1394, 0
        %1401 = vmatprep.subr.bf16.mxu0 0
        %1402 = vmatpush1.bf16.msra.mxu0 %v1399
        %1403 = vmatprep.subr.bf16.mxu0 0
        %1404 = vmatpush1.bf16.msra.mxu0 0
        %1405 = vmatprep.subr.bf16.mxu0 0
        %1406 = vmatpush1.bf16.msra.mxu0 0
        %1407 = vmatprep.subr.bf16.mxu0 0
        %1408 = vmatpush1.bf16.msra.mxu0 0
        %1409 = vmatprep.subr.bf16.mxu0 0
        %1410 = vmatpush1.bf16.msra.mxu0 0
        %1411 = vmatprep.subr.bf16.mxu0 0
        %1412 = vmatpush1.bf16.msra.mxu0 0
        %1413 = vmatprep.subr.bf16.mxu0 0
        %1414 = vmatpush1.bf16.msra.mxu0 0
        %1415 = vmatprep.subr.bf16.mxu0 0
        %1416 = vmatpush1.bf16.msra.mxu0 0
        %1417 = vmatprep.subr.bf16.mxu0 0
        %1418 = vmatpush1.bf16.msra.mxu0 0
        %1419 = vmatprep.subr.bf16.mxu0 0
        %1420 = vmatpush1.bf16.msra.mxu0 0
        %1421 = vmatprep.subr.bf16.mxu0 0
        %1422 = vmatpush1.bf16.msra.mxu0 0
        %1423 = vmatprep.subr.bf16.mxu0 0
        %1424 = vmatpush1.bf16.msra.mxu0 0
        %1425 = vmatprep.subr.bf16.mxu0 0
        %1426 = vmatpush1.bf16.msra.mxu0 0
        %1427 = vmatprep.subr.bf16.mxu0 0
        %1428 = vmatpush1.bf16.msra.mxu0 0
        %1429 = vmatprep.subr.bf16.mxu0 0
        %1430 = vmatpush1.bf16.msra.mxu0 0
        %1431 = vmatprep.subr.bf16.mxu0 0
        %1432 = vmatpush1.bf16.msra.mxu0 0
        %1433 = vmatprep.mubr.bf16.mxu0 0
        %1434 = vmatmul.mubr.bf16.gmra.mrb[0].mxu0 %v1396
        %v1435 = vpop.f32.mrb[0].mxu0
        %v1436 = vadd.f32 0.0, %v1435
        %v1437 = vpop.f32.mrb[0].mxu0
        %v1438 = vpop.f32.mrb[0].mxu0
        %v1439 = vpop.f32.mrb[0].mxu0
        %1440 = vdwg.mxu0
        %v1441 = vrcp.pop %v1391
        %v1442 = vmul.f32 %v1436, %v1441
        %v1443 = vpack.c.bf16 %v1442, %v1442
        %1445 = vrot.lane.b32.xlu0 %v1217, 8
        %v1446 = vpop.permute.xlu0 %1445
        %1448 = vrot.lane.b32.xlu0 %v1330, 16
        %v1449 = vpop.permute.xlu0 %1448
        %1451 = vrot.lane.b32.xlu0 %v1443, 24
        %v1452 = vpop.permute.xlu0 %1451
        %v1455 = vsel %vm990, %v1103, %v1446
        %vm1456 = vcmask 130048
        %v1458 = vsel %vm1456, %v1455, %v1449
        %vm1459 = vcmask 195584
        %v1461 = vsel %vm1459, %v1458, %v1452
        %v1462 = vld [vmem:[#allocation20] sm:$0xf]
        %v1463 = vld [vmem:[#allocation20 + $0x4] sm:$0xf]
        %v1464 = vld [vmem:[#allocation20 + $0x8] sm:$0xf]
        %v1465 = vld [vmem:[#allocation20 + $0xc] sm:$0xf]
        %v1466 = vld [vmem:[#allocation21] sm:$0x1]
        %v1468 = vlaneseq
        %v1469 = vshrl.u32 %v1468, 7
        %v1470 = vsub.s32 0, %v1469
        %v1471 = vrot.slane %v1466, %v1470
        %v1477 = vunpack.c.l.b16 %v1462
        %v1478 = vunpack.c.l.b16 %v1463
        %v1479 = vunpack.c.l.b16 %v1464
        %v1480 = vunpack.c.l.b16 %v1465
        %v1481 = vpack.c.b16 %v1478, %v1477
        %v1482 = vpack.c.b16 %v1480, %v1479
        %v1485 = vsel %vm884, %v1461, 0
        %1487 = vmatprep.subr.bf16.mxu0 0
        %1488 = vmatpush1.bf16.msra.mxu0 %v1481
        %1489 = vmatprep.subr.bf16.mxu0 0
        %1490 = vmatpush1.bf16.msra.mxu0 %v1482
        %1491 = vmatprep.subr.bf16.mxu0 0
        %1492 = vmatpush1.bf16.msra.mxu0 0
        %1493 = vmatprep.subr.bf16.mxu0 0
        %1494 = vmatpush1.bf16.msra.mxu0 0
        %1495 = vmatprep.subr.bf16.mxu0 0
        %1496 = vmatpush1.bf16.msra.mxu0 0
        %1497 = vmatprep.subr.bf16.mxu0 0
        %1498 = vmatpush1.bf16.msra.mxu0 0
        %1499 = vmatprep.subr.bf16.mxu0 0
        %1500 = vmatpush1.bf16.msra.mxu0 0
        %1501 = vmatprep.subr.bf16.mxu0 0
        %1502 = vmatpush1.bf16.msra.mxu0 0
        %1503 = vmatprep.subr.bf16.mxu0 0
        %1504 = vmatpush1.bf16.msra.mxu0 0
        %1505 = vmatprep.subr.bf16.mxu0 0
        %1506 = vmatpush1.bf16.msra.mxu0 0
        %1507 = vmatprep.subr.bf16.mxu0 0
        %1508 = vmatpush1.bf16.msra.mxu0 0
        %1509 = vmatprep.subr.bf16.mxu0 0
        %1510 = vmatpush1.bf16.msra.mxu0 0
        %1511 = vmatprep.subr.bf16.mxu0 0
        %1512 = vmatpush1.bf16.msra.mxu0 0
        %1513 = vmatprep.subr.bf16.mxu0 0
        %1514 = vmatpush1.bf16.msra.mxu0 0
        %1515 = vmatprep.subr.bf16.mxu0 0
        %1516 = vmatpush1.bf16.msra.mxu0 0
        %1517 = vmatprep.subr.bf16.mxu0 0
        %1518 = vmatpush1.bf16.msra.mxu0 0
        %1519 = vmatprep.mubr.bf16.mxu0 0
        %1520 = vmatmul.mubr.bf16.gmra.mrb[0].mxu0 %v1485
        %v1521 = vpop.f32.mrb[0].mxu0
        %v1522 = vadd.f32 %v1471, %v1521
        %v1523 = vpop.f32.mrb[0].mxu0
        %v1524 = vpop.f32.mrb[0].mxu0
        %v1525 = vpop.f32.mrb[0].mxu0
        %1526 = vdwg.mxu0
        %v1527 = vadd.f32 %v777, %v1522
        %v1528 = vld [vmem:[#allocation11] sm:$0x1]
        %v1529 = vld [vmem:[#allocation12] sm:$0x1]
        %v1530 = vsel %vm884, %v1527, 0.0
        %1531 = vadd.xlane.f32.xlu0 %v1530
        %v1532 = vpop.xlane.xlu0 %1531
        %v1533 = vmul.f32 %v1532, %v888
        %v1534 = vsub.f32 %v1527, %v1533
        %v1535 = vmul.f32 %v1534, %v1534
        %v1536 = vsel %vm884, %v1535, 0.0
        %1537 = vadd.xlane.f32.xlu0 %v1536
        %v1538 = vpop.xlane.xlu0 %1537
        %v1539 = vmul.f32 %v1538, %v888
        %v1540 = vadd.f32 %v1539, 1e-05
        %v1541 = vrsqrt.pop %v1540
        %v1542 = vmul.f32 %v1534, %v1541
        %v1544 = vlaneseq
        %v1545 = vshrl.u32 %v1544, 7
        %v1546 = vsub.s32 0, %v1545
        %v1547 = vrot.slane %v1528, %v1546
        %v1549 = vmul.f32 %v1542, %v1547
        %v1551 = vlaneseq
        %v1552 = vshrl.u32 %v1551, 7
        %v1553 = vsub.s32 0, %v1552
        %v1554 = vrot.slane %v1529, %v1553
        %v1556 = vadd.f32 %v1549, %v1554
        %v1557 = vpack.c.bf16 %v1556, %v1556
        %v1558 = vld [vmem:[#allocation23] sm:$0xf]
        %v1559 = vld [vmem:[#allocation23 + $0x4] sm:$0xf]
        %v1560 = vld [vmem:[#allocation23 + $0x8] sm:$0xf]
        %v1561 = vld [vmem:[#allocation23 + $0xc] sm:$0xf]
        %v1562 = vld [vmem:[#allocation24] sm:$0x1]
        %v1564 = vlaneseq
        %v1565 = vshrl.u32 %v1564, 7
        %v1566 = vsub.s32 0, %v1565
        %v1567 = vrot.slane %v1562, %v1566
        %v1573 = vunpack.c.l.b16 %v1558
        %v1574 = vunpack.c.l.b16 %v1559
        %v1575 = vunpack.c.l.b16 %v1560
        %v1576 = vunpack.c.l.b16 %v1561
        %v1577 = vpack.c.b16 %v1574, %v1573
        %v1578 = vpack.c.b16 %v1576, %v1575
        %v1582 = vsel %vm884, %v1557, 0
        %1584 = vmatprep.subr.bf16.mxu0 0
        %1585 = vmatpush1.bf16.msra.mxu0 %v1577
        %1586 = vmatprep.subr.bf16.mxu0 0
        %1587 = vmatpush1.bf16.msra.mxu0 %v1578
        %1588 = vmatprep.subr.bf16.mxu0 0
        %1589 = vmatpush1.bf16.msra.mxu0 0
        %1590 = vmatprep.subr.bf16.mxu0 0
        %1591 = vmatpush1.bf16.msra.mxu0 0
        %1592 = vmatprep.subr.bf16.mxu0 0
        %1593 = vmatpush1.bf16.msra.mxu0 0
        %1594 = vmatprep.subr.bf16.mxu0 0
        %1595 = vmatpush1.bf16.msra.mxu0 0
        %1596 = vmatprep.subr.bf16.mxu0 0
        %1597 = vmatpush1.bf16.msra.mxu0 0
        %1598 = vmatprep.subr.bf16.mxu0 0
        %1599 = vmatpush1.bf16.msra.mxu0 0
        %1600 = vmatprep.subr.bf16.mxu0 0
        %1601 = vmatpush1.bf16.msra.mxu0 0
        %1602 = vmatprep.subr.bf16.mxu0 0
        %1603 = vmatpush1.bf16.msra.mxu0 0
        %1604 = vmatprep.subr.bf16.mxu0 0
        %1605 = vmatpush1.bf16.msra.mxu0 0
        %1606 = vmatprep.subr.bf16.mxu0 0
        %1607 = vmatpush1.bf16.msra.mxu0 0
        %1608 = vmatprep.subr.bf16.mxu0 0
        %1609 = vmatpush1.bf16.msra.mxu0 0
        %1610 = vmatprep.subr.bf16.mxu0 0
        %1611 = vmatpush1.bf16.msra.mxu0 0
        %1612 = vmatprep.subr.bf16.mxu0 0
        %1613 = vmatpush1.bf16.msra.mxu0 0
        %1614 = vmatprep.subr.bf16.mxu0 0
        %1615 = vmatpush1.bf16.msra.mxu0 0
        %1616 = vmatprep.mubr.bf16.mxu0 0
        %1617 = vmatmul.mubr.bf16.gmra.mrb[0].mxu0 %v1582
        %v1618 = vpop.f32.mrb[0].mxu0
        %v1619 = vadd.f32 %v1567, %v1618
        %v1620 = vpop.f32.mrb[0].mxu0
        %v1621 = vpop.f32.mrb[0].mxu0
        %v1622 = vpop.f32.mrb[0].mxu0
        %1623 = vdwg.mxu0
        %v1624 = vmul.f32 %v1619, 0.5
        %v1625 = vmul.f32 %v1619, 0.70710677
        %v1626 = verf.f32.pop %v1625
        %v1627 = vadd.f32 %v1626, 1.0
        %v1628 = vmul.f32 %v1624, %v1627
        %v1629 = vpack.c.bf16 %v1628, %v1628
        %v1630 = vld [vmem:[#allocation26] sm:$0xf]
        %v1631 = vld [vmem:[#allocation26 + $0x4] sm:$0xf]
        %v1632 = vld [vmem:[#allocation26 + $0x8] sm:$0xf]
        %v1633 = vld [vmem:[#allocation26 + $0xc] sm:$0xf]
        %v1634 = vld [vmem:[#allocation26 + $0x10] sm:$0xf]
        %v1635 = vld [vmem:[#allocation26 + $0x14] sm:$0xf]
        %v1636 = vld [vmem:[#allocation26 + $0x18] sm:$0xf]
        %v1637 = vld [vmem:[#allocation26 + $0x1c] sm:$0xf]
        %v1638 = vld [vmem:[#allocation26 + $0x20] sm:$0xf]
        %v1639 = vld [vmem:[#allocation26 + $0x24] sm:$0xf]
        %v1640 = vld [vmem:[#allocation26 + $0x28] sm:$0xf]
        %v1641 = vld [vmem:[#allocation26 + $0x2c] sm:$0xf]
        %v1642 = vld [vmem:[#allocation26 + $0x30] sm:$0xf]
        %v1643 = vld [vmem:[#allocation26 + $0x34] sm:$0xf]
        %v1644 = vld [vmem:[#allocation26 + $0x38] sm:$0xf]
        %v1645 = vld [vmem:[#allocation26 + $0x3c] sm:$0xf]
        %v1662 = vunpack.c.l.b16 %v1630
        %v1663 = vunpack.c.l.b16 %v1631
        %v1664 = vunpack.c.l.b16 %v1632
        %v1665 = vunpack.c.l.b16 %v1633
        %v1666 = vunpack.c.l.b16 %v1634
        %v1667 = vunpack.c.l.b16 %v1635
        %v1668 = vunpack.c.l.b16 %v1636
        %v1669 = vunpack.c.l.b16 %v1637
        %v1670 = vunpack.c.l.b16 %v1638
        %v1671 = vunpack.c.l.b16 %v1639
        %v1672 = vunpack.c.l.b16 %v1640
        %v1673 = vunpack.c.l.b16 %v1641
        %v1674 = vunpack.c.l.b16 %v1642
        %v1675 = vunpack.c.l.b16 %v1643
        %v1676 = vunpack.c.l.b16 %v1644
        %v1677 = vunpack.c.l.b16 %v1645
        %v1678 = vpack.c.b16 %v1663, %v1662
        %v1679 = vpack.c.b16 %v1665, %v1664
        %v1680 = vpack.c.b16 %v1667, %v1666
        %v1681 = vpack.c.b16 %v1669, %v1668
        %v1682 = vpack.c.b16 %v1671, %v1670
        %v1683 = vpack.c.b16 %v1673, %v1672
        %v1684 = vpack.c.b16 %v1675, %v1674
        %v1685 = vpack.c.b16 %v1677, %v1676
        %1694 = vmatprep.subr.bf16.mxu0 0
        %1695 = vmatpush1.bf16.msra.mxu0 %v1678
        %1696 = vmatprep.subr.bf16.mxu0 0
        %1697 = vmatpush1.bf16.msra.mxu0 %v1679
        %1698 = vmatprep.subr.bf16.mxu0 0
        %1699 = vmatpush1.bf16.msra.mxu0 %v1680
        %1700 = vmatprep.subr.bf16.mxu0 0
        %1701 = vmatpush1.bf16.msra.mxu0 %v1681
        %1702 = vmatprep.subr.bf16.mxu0 0
        %1703 = vmatpush1.bf16.msra.mxu0 %v1682
        %1704 = vmatprep.subr.bf16.mxu0 0
        %1705 = vmatpush1.bf16.msra.mxu0 %v1683
        %1706 = vmatprep.subr.bf16.mxu0 0
        %1707 = vmatpush1.bf16.msra.mxu0 %v1684
        %1708 = vmatprep.subr.bf16.mxu0 0
        %1709 = vmatpush1.bf16.msra.mxu0 %v1685
        %1710 = vmatprep.subr.bf16.mxu0 0
        %1711 = vmatpush1.bf16.msra.mxu0 0
        %1712 = vmatprep.subr.bf16.mxu0 0
        %1713 = vmatpush1.bf16.msra.mxu0 0
        %1714 = vmatprep.subr.bf16.mxu0 0
        %1715 = vmatpush1.bf16.msra.mxu0 0
        %1716 = vmatprep.subr.bf16.mxu0 0
        %1717 = vmatpush1.bf16.msra.mxu0 0
        %1718 = vmatprep.subr.bf16.mxu0 0
        %1719 = vmatpush1.bf16.msra.mxu0 0
        %1720 = vmatprep.subr.bf16.mxu0 0
        %1721 = vmatpush1.bf16.msra.mxu0 0
        %1722 = vmatprep.subr.bf16.mxu0 0
        %1723 = vmatpush1.bf16.msra.mxu0 0
        %1724 = vmatprep.subr.bf16.mxu0 0
        %1725 = vmatpush1.bf16.msra.mxu0 0
        %1726 = vmatprep.mubr.bf16.mxu0 0
        %1727 = vmatmul.mubr.bf16.gmra.mrb[0].mxu0 %v1629
        %v1728 = vpop.f32.mrb[0].mxu0
        %v1729 = vadd.f32 0.0, %v1728
        %v1730 = vpop.f32.mrb[0].mxu0
        %v1731 = vpop.f32.mrb[0].mxu0
        %v1732 = vpop.f32.mrb[0].mxu0
        %1733 = vdwg.mxu0
        %v1734 = vadd.f32 %v1527, %v1729
        %v1735 = vld [vmem:[#allocation27] sm:$0x1]
        %v1737 = vlaneseq
        %v1738 = vshrl.u32 %v1737, 7
        %v1739 = vsub.s32 0, %v1738
        %v1740 = vrot.slane %v1735, %v1739
        %v1742 = vadd.f32 %v1734, %v1740
        %1743 = vst.msk [vmem:[%s775] sm:$0xff] %vm884, %v1742
        %s1744 = sand.u32 %s413, 1
        %s1745 = scalar_lea.sflag [#allocation5], %s1744
        %s1746 = sand.u32 %s413, 1
        %s1747 = smul.addr %s1746, 8
        %s1748 = scalar_lea.vmem [#allocation29], %s1747
        // Predicated region
        $region153: #{tpu_custom_call.1} parent=83 // pred_check
          %p1749 = pneg %p423
        $region154: #{tpu_custom_call.1} parent=83 // pred_check_branch
          %1751 = sbr.rel (%p1749) target = $region156
        $region155: #{tpu_custom_call.1} parent=83 // pred_region
          %s1753 = ssub.s32 128, 128
          %1754 = vsyncadd %s1745, %s1753
          %s1755 = sadd.s32 %s48, %s47
          %s1756 = smul.addr %s1755, 128
          %s1757 = scalar_lea.hbm %s16, %s1756
          %s1759 = sshll.u32 %s1748, 4
          %s1760 = int_to_ptr.vmem [resolvable:$true] %s1759
          %1762 = dma.vmem_to_hbm [thread:$0]  %s1760, 128, %s1757, %s1745
        $region156: #{tpu_custom_call.1} parent=83 // pred_fallthru
          _
      $region84: #{tpu_custom_call.1} parent=5 // pred_fallthru
        _
      %p1763 = scmp.le.s32.totalorder 2, %s38
      // Predicated region
      $region157: #{tpu_custom_call.1} parent=5 // pred_check
        %p1764 = pneg %p1763
      $region158: #{tpu_custom_call.1} parent=5 // pred_check_branch
        %1766 = sbr.rel (%p1764) target = $region160
      $region159: #{tpu_custom_call.1} parent=5 // pred_region
        %s1767 = ssub.s32 %s38, 2
        // Predicated region
        $region161: #{tpu_custom_call.1} parent=159 // pred_check
          %p1768 = pneg %p429
        $region162: #{tpu_custom_call.1} parent=159 // pred_check_branch
          %1770 = sbr.rel (%p1768) target = $region164
        $region163: #{tpu_custom_call.1} parent=159 // pred_region
          %s1771 = sand.u32 %s414, 1
          %s1772 = scalar_lea.sflag [#allocation5], %s1771
          %s1773 = sand.u32 %s414, 1
          %s1774 = smul.addr %s1773, 8
          %s1775 = scalar_lea.vmem [#allocation29], %s1774
          %1776 = dma.done %s1772, 128
        $region164: #{tpu_custom_call.1} parent=159 // pred_fallthru
          _
      $region160: #{tpu_custom_call.1} parent=5 // pred_fallthru
        _
    $region6: #{tpu_custom_call.1} parent=1 // loop_footer
      %s42 = sadd.s32 1, %s38
    $region7: #{tpu_custom_call.1} parent=1 // loop_footer_branch
      %37 = sbr.rel target = $region3
    $region8: #{tpu_custom_call.1} parent=1 // loop_exit
      _
    %1777 = vsyncpa [#allocation4], 1
    %s1778 = scalar_lea.sflag [#allocation4], 1
    %1779 = vsyncpa %s1778, 1
    %1780 = vsyncpa [#allocation7], 1
    %s1781 = scalar_lea.sflag [#allocation7], 1
    %1782 = vsyncpa %s1781, 1
    %1783 = vsyncpa [#allocation10], 1
    %1784 = vsyncpa [#allocation13], 1
    %1785 = vsyncpa [#allocation16], 1
    %1786 = vsyncpa [#allocation19], 1
    %1787 = vsyncpa [#allocation22], 1
    %1788 = vsyncpa [#allocation25], 1
    %1789 = vsyncpa [#allocation28], 1
    %1790 = vsyncpa [#allocation5], 1
    %s1791 = scalar_lea.sflag [#allocation5], 1
    %1792 = vsyncpa %s1791, 1

// kernel: tpu_custom_call.1
$region0: #{tpu_custom_call.1}
  #allocation0 [shape = 'u32[]', space=smem, size = 0x4, offset = 0x4, fixed_abs, tag = 'smem constant byte address 0x4 - core index']
  #allocation1 [shape = 'u32[144,128]{1,0:T(1,128)}', space=vmem, size = 0x12000, scoped, tag = 'internal scratch']
  #allocation2 [shape = 'bf16[8,64]{1,0:T(8,128)(2,1)}', space=vmem, size = 0x800, scoped, tag = 'scratch operand']
  %s0 = inlined_call_operand.hbm [shape: f32[2,8,32], index: 0, kind: input, shape index: {}]
  %s1 = inlined_call_operand.hbm [shape: f32[2,8,32], index: 1, kind: input, shape index: {}]
  %s2 = inlined_call_operand.hbm [shape: f32[1,32], index: 2, kind: input, shape index: {}]
  %s3 = inlined_call_operand.hbm [shape: f32[1,32], index: 3, kind: input, shape index: {}]
  %s4 = inlined_call_operand.hbm [shape: f32[1,32], index: 4, kind: input, shape index: {}]
  %s5 = inlined_call_operand.hbm [shape: f32[1,32], index: 5, kind: input, shape index: {}]
  %s6 = inlined_call_operand.hbm [shape: bf16[32,32], index: 6, kind: input, shape index: {}]
  %s7 = inlined_call_operand.hbm [shape: f32[1,32], index: 7, kind: input, shape index: {}]
  %s8 = inlined_call_operand.hbm [shape: bf16[32,64], index: 8, kind: input, shape index: {}]
  %s9 = inlined_call_operand.hbm [shape: f32[1,64], index: 9, kind: input, shape index: {}]
  %s10 = inlined_call_operand.hbm [shape: bf16[32,32], index: 10, kind: input, shape index: {}]
  %s11 = inlined_call_operand.hbm [shape: f32[1,32], index: 11, kind: input, shape index: {}]
  %s12 = inlined_call_operand.hbm [shape: bf16[32,128], index: 12, kind: input, shape index: {}]
  %s13 = inlined_call_operand.hbm [shape: f32[1,128], index: 13, kind: input, shape index: {}]
  %s14 = inlined_call_operand.hbm [shape: bf16[128,32], index: 14, kind: input, shape index: {}]
  %s15 = inlined_call_operand.hbm [shape: f32[1,32], index: 15, kind: input, shape index: {}]
  %s16 = inlined_call_operand.hbm [shape: f32[2,8,32], index: 16, kind: output, shape index: {}]
  %s17 = sld [smem:[#allocation0]]
  $region165: #{tpu_custom_call.1} parent=0
    _
  %s19 = ssub.s32 1, %s17
  %s20 = scalar_select 0, %s19, %s17
  $region1: #{tpu_custom_call.1} parent=0
    #allocation3 [shape = 'u8[8192]{0}', space=vmem, size = 0x2000, scoped, tag = 'input window, operand 0']
    #allocation4 [shape = 's32[2]{0}', space=sflag, size = 0x8, scoped, tag = 'scoped memory for tpu_custom_call.1']
    #allocation5 [shape = 's32[2]{0}', space=sflag, size = 0x8, scoped, tag = 'scoped memory for tpu_custom_call.1']
    #allocation6 [shape = 'u8[8192]{0}', space=vmem, size = 0x2000, scoped, tag = 'input window, operand 1']
    #allocation7 [shape = 's32[2]{0}', space=sflag, size = 0x8, scoped, tag = 'scoped memory for tpu_custom_call.1']
    #allocation8 [shape = 'u8[512]{0}', space=vmem, size = 0x400, scoped, tag = 'input window, operand 2, single buffered']
    #allocation9 [shape = 'u8[512]{0}', space=vmem, size = 0x400, scoped, tag = 'input window, operand 3, single buffered']
    #allocation10 [shape = 's32[1]{0}', space=sflag, size = 0x4, scoped, tag = 'scoped memory for tpu_custom_call.1']
    #allocation11 [shape = 'u8[512]{0}', space=vmem, size = 0x400, scoped, tag = 'input window, operand 4, single buffered']
    #allocation12 [shape = 'u8[512]{0}', space=vmem, size = 0x400, scoped, tag = 'input window, operand 5, single buffered']
    #allocation13 [shape = 's32[1]{0}', space=sflag, size = 0x4, scoped, tag = 'scoped memory for tpu_custom_call.1']
    #allocation14 [shape = 'u8[8192]{0}', space=vmem, size = 0x2000, scoped, tag = 'input window, operand 6, single buffered']
    #allocation15 [shape = 'u8[512]{0}', space=vmem, size = 0x400, scoped, tag = 'input window, operand 7, single buffered']
    #allocation16 [shape = 's32[1]{0}', space=sflag, size = 0x4, scoped, tag = 'scoped memory for tpu_custom_call.1']
    #allocation17 [shape = 'u8[8192]{0}', space=vmem, size = 0x2000, scoped, tag = 'input window, operand 8, single buffered']
    #allocation18 [shape = 'u8[512]{0}', space=vmem, size = 0x400, scoped, tag = 'input window, operand 9, single buffered']
    #allocation19 [shape = 's32[1]{0}', space=sflag, size = 0x4, scoped, tag = 'scoped memory for tpu_custom_call.1']
    #allocation20 [shape = 'u8[8192]{0}', space=vmem, size = 0x2000, scoped, tag = 'input window, operand 10, single buffered']
    #allocation21 [shape = 'u8[512]{0}', space=vmem, size = 0x400, scoped, tag = 'input window, operand 11, single buffered']
    #allocation22 [shape = 's32[1]{0}', space=sflag, size = 0x4, scoped, tag = 'scoped memory for tpu_custom_call.1']
    #allocation23 [shape = 'u8[8192]{0}', space=vmem, size = 0x2000, scoped, tag = 'input window, operand 12, single buffered']
    #allocation24 [shape = 'u8[512]{0}', space=vmem, size = 0x400, scoped, tag = 'input window, operand 13, single buffered']
    #allocation25 [shape = 's32[1]{0}', space=sflag, size = 0x4, scoped, tag = 'scoped memory for tpu_custom_call.1']
    #allocation26 [shape = 'u8[32768]{0}', space=vmem, size = 0x8000, scoped, tag = 'input window, operand 14, single buffered']
    #allocation27 [shape = 'u8[512]{0}', space=vmem, size = 0x400, scoped, tag = 'input window, operand 15, single buffered']
    #allocation28 [shape = 's32[1]{0}', space=sflag, size = 0x4, scoped, tag = 'scoped memory for tpu_custom_call.1']
    #allocation29 [shape = 'u8[8192]{0}', space=vmem, size = 0x2000, scoped, tag = 'output window, operand 0']
    %21 = vsyncpa [#allocation4], 0
    %s22 = scalar_lea.sflag [#allocation4], 1
    %23 = vsyncpa %s22, 0
    %24 = vsyncpa [#allocation7], 0
    %s25 = scalar_lea.sflag [#allocation7], 1
    %26 = vsyncpa %s25, 0
    %27 = vsyncpa [#allocation10], 0
    %28 = vsyncpa [#allocation13], 0
    %29 = vsyncpa [#allocation16], 0
    %30 = vsyncpa [#allocation19], 0
    %31 = vsyncpa [#allocation22], 0
    %32 = vsyncpa [#allocation25], 0
    %33 = vsyncpa [#allocation28], 0
    %34 = vsyncpa [#allocation5], 0
    %s35 = scalar_lea.sflag [#allocation5], 1
    %36 = vsyncpa %s35, 0
    loop: start=0, step=1, limit=4
    $region2: #{tpu_custom_call.1} parent=1 // loop_pre_header
      _
    $region3: #{tpu_custom_call.1} parent=1 // loop_header
      %s38 = sphi 0, %s42
      %p39 = scmp.ge.s32.totalorder %s38, 4
      %s45 = sphi 0, %s57
      %s46 = sphi 0, %s53
      %s47 = sphi 0, %s45
      %s48 = sphi 0, %s46
      %s49 = sphi 0, %s47
      %s50 = sphi 0, %s48
      %s62 = sphi 0, %s64
      %s65 = sphi 0, %s62
      %s66 = sphi 0, %s65
      %s82 = sphi 0, %s66
      %s88 = sphi 0, %s90
      %s91 = sphi 0, %s88
      %s92 = sphi 0, %s91
      %s108 = sphi 0, %s92
      %s112 = sphi 0, %s112
      %s114 = sphi 0, %s112
      %s115 = sphi 0, %s114
      %s129 = sphi 0, %s115
      %s133 = sphi 0, %s133
      %s135 = sphi 0, %s133
      %s136 = sphi 0, %s135
      %s150 = sphi 0, %s136
      %s154 = sphi 0, %s154
      %s156 = sphi 0, %s154
      %s157 = sphi 0, %s156
      %s171 = sphi 0, %s157
      %s175 = sphi 0, %s175
      %s177 = sphi 0, %s175
      %s178 = sphi 0, %s177
      %s192 = sphi 0, %s178
      %s196 = sphi 0, %s196
      %s198 = sphi 0, %s196
      %s199 = sphi 0, %s198
      %s213 = sphi 0, %s199
      %s217 = sphi 0, %s217
      %s219 = sphi 0, %s217
      %s220 = sphi 0, %s219
      %s234 = sphi 0, %s220
      %s238 = sphi 0, %s238
      %s240 = sphi 0, %s238
      %s241 = sphi 0, %s240
      %s255 = sphi 0, %s241
      %s259 = sphi 0, %s259
      %s261 = sphi 0, %s259
      %s262 = sphi 0, %s261
      %s276 = sphi 0, %s262
      %s280 = sphi 0, %s280
      %s282 = sphi 0, %s280
      %s283 = sphi 0, %s282
      %s297 = sphi 0, %s283
      %s301 = sphi 0, %s301
      %s303 = sphi 0, %s301
      %s304 = sphi 0, %s303
      %s318 = sphi 0, %s304
      %s322 = sphi 0, %s322
      %s324 = sphi 0, %s322
      %s325 = sphi 0, %s324
      %s339 = sphi 0, %s325
      %s343 = sphi 0, %s343
      %s345 = sphi 0, %s343
      %s346 = sphi 0, %s345
      %s360 = sphi 0, %s346
      %s364 = sphi 0, %s364
      %s366 = sphi 0, %s364
      %s367 = sphi 0, %s366
      %s381 = sphi 0, %s367
      %s385 = sphi 0, %s385
      %s387 = sphi 0, %s385
      %s388 = sphi 0, %s387
      %s402 = sphi 0, %s388
      %s410 = sphi 0, %s412
      %s413 = sphi 0, %s410
      %s414 = sphi 0, %s413
      %s430 = sphi 0, %s414
    $region4: #{tpu_custom_call.1} parent=1 // loop_header_branch
      %41 = sbr.rel (%p39) target = $region8
    $region5: #{tpu_custom_call.1} parent=1 // loop_body
      %s43 = ssub.s32 %s38, 1
      %s44 = ssub.s32 %s38, 2
      %s51 = sadd.s32 1, %s46
      %p52 = scmp.ge.s32.totalorder %s51, 1
      %s53 = scalar_select %p52, 0, %s51
      %s54 = sadd.s32 1, %s45
      %s55 = scalar_select %p52, %s54, %s45
      %p56 = scmp.ge.s32.totalorder %s55, 2
      %s57 = scalar_select %p56, 0, %s55
      %s58 = ssub.s32 %s45, %s57
      %s59 = ssub.s32 %s46, %s53
      %s60 = sor.u32 %s58, %s59
      %p61 = scmp.eq.s32.totalorder %s60, 0
      %s63 = sadd.s32 %s62, 1
      %s64 = scalar_select %p61, %s62, %s63
      %p67 = pneg %p61
      %p68 = scmp.eq.s32.totalorder %s38, 1
      %p69 = por %p67, %p68
      %p70 = scmp.ne.s32.totalorder %s62, %s65
      %p71 = scmp.eq.s32.totalorder %s38, 0
      %p72 = por %p70, %p71
      %p73 = scmp.ne.s32.totalorder %s62, %s65
      %p74 = scmp.eq.s32.totalorder %s43, 1
      %p75 = por %p73, %p74
      %p76 = scmp.ne.s32.totalorder %s65, %s66
      %p77 = scmp.eq.s32.totalorder %s43, 0
      %p78 = por %p76, %p77
      %p79 = scmp.ne.s32.totalorder %s65, %s66
      %p80 = scmp.eq.s32.totalorder %s44, 1
      %p81 = por %p79, %p80
      %p83 = scmp.ne.s32.totalorder %s66, %s82
      %p84 = scmp.eq.s32.totalorder %s44, 0
      %p85 = por %p83, %p84
      %s86 = ssub.s32 %s45, %s57
      %p87 = scmp.eq.s32.totalorder %s86, 0
      %s89 = sadd.s32 %s88, 1
      %s90 = scalar_select %p87, %s88, %s89
      %p93 = pneg %p87
      %p94 = scmp.eq.s32.totalorder %s38, 1
      %p95 = por %p93, %p94
      %p96 = scmp.ne.s32.totalorder %s88, %s91
      %p97 = scmp.eq.s32.totalorder %s38, 0
      %p98 = por %p96, %p97
      %p99 = scmp.ne.s32.totalorder %s88, %s91
      %p100 = scmp.eq.s32.totalorder %s43, 1
      %p101 = por %p99, %p100
      %p102 = scmp.ne.s32.totalorder %s91, %s92
      %p103 = scmp.eq.s32.totalorder %s43, 0
      %p104 = por %p102, %p103
      %p105 = scmp.ne.s32.totalorder %s91, %s92
      %p106 = scmp.eq.s32.totalorder %s44, 1
      %p107 = por %p105, %p106
      %p109 = scmp.ne.s32.totalorder %s92, %s108
      %p110 = scmp.eq.s32.totalorder %s44, 0
      %p111 = por %p109, %p110
      %s113 = sadd.s32 %s112, 1
      %p116 = scmp.eq.s32.totalorder %s38, 1
      %p117 = scmp.ne.s32.totalorder %s112, %s114
      %p118 = scmp.eq.s32.totalorder %s38, 0
      %p119 = por %p117, %p118
      %p120 = scmp.ne.s32.totalorder %s112, %s114
      %p121 = scmp.eq.s32.totalorder %s43, 1
      %p122 = por %p120, %p121
      %p123 = scmp.ne.s32.totalorder %s114, %s115
      %p124 = scmp.eq.s32.totalorder %s43, 0
      %p125 = por %p123, %p124
      %p126 = scmp.ne.s32.totalorder %s114, %s115
      %p127 = scmp.eq.s32.totalorder %s44, 1
      %p128 = por %p126, %p127
      %p130 = scmp.ne.s32.totalorder %s115, %s129
      %p131 = scmp.eq.s32.totalorder %s44, 0
      %p132 = por %p130, %p131
      %s134 = sadd.s32 %s133, 1
      %p137 = scmp.eq.s32.totalorder %s38, 1
      %p138 = scmp.ne.s32.totalorder %s133, %s135
      %p139 = scmp.eq.s32.totalorder %s38, 0
      %p140 = por %p138, %p139
      %p141 = scmp.ne.s32.totalorder %s133, %s135
      %p142 = scmp.eq.s32.totalorder %s43, 1
      %p143 = por %p141, %p142
      %p144 = scmp.ne.s32.totalorder %s135, %s136
      %p145 = scmp.eq.s32.totalorder %s43, 0
      %p146 = por %p144, %p145
      %p147 = scmp.ne.s32.totalorder %s135, %s136
      %p148 = scmp.eq.s32.totalorder %s44, 1
      %p149 = por %p147, %p148
      %p151 = scmp.ne.s32.totalorder %s136, %s150
      %p152 = scmp.eq.s32.totalorder %s44, 0
      %p153 = por %p151, %p152
      %s155 = sadd.s32 %s154, 1
      %p158 = scmp.eq.s32.totalorder %s38, 1
      %p159 = scmp.ne.s32.totalorder %s154, %s156
      %p160 = scmp.eq.s32.totalorder %s38, 0
      %p161 = por %p159, %p160
      %p162 = scmp.ne.s32.totalorder %s154, %s156
      %p163 = scmp.eq.s32.totalorder %s43, 1
      %p164 = por %p162, %p163
      %p165 = scmp.ne.s32.totalorder %s156, %s157
      %p166 = scmp.eq.s32.totalorder %s43, 0
      %p167 = por %p165, %p166
      %p168 = scmp.ne.s32.totalorder %s156, %s157
      %p169 = scmp.eq.s32.totalorder %s44, 1
      %p170 = por %p168, %p169
      %p172 = scmp.ne.s32.totalorder %s157, %s171
      %p173 = scmp.eq.s32.totalorder %s44, 0
      %p174 = por %p172, %p173
      %s176 = sadd.s32 %s175, 1
      %p179 = scmp.eq.s32.totalorder %s38, 1
      %p180 = scmp.ne.s32.totalorder %s175, %s177
      %p181 = scmp.eq.s32.totalorder %s38, 0
      %p182 = por %p180, %p181
      %p183 = scmp.ne.s32.totalorder %s175, %s177
      %p184 = scmp.eq.s32.totalorder %s43, 1
      %p185 = por %p183, %p184
      %p186 = scmp.ne.s32.totalorder %s177, %s178
      %p187 = scmp.eq.s32.totalorder %s43, 0
      %p188 = por %p186, %p187
      %p189 = scmp.ne.s32.totalorder %s177, %s178
      %p190 = scmp.eq.s32.totalorder %s44, 1
      %p191 = por %p189, %p190
      %p193 = scmp.ne.s32.totalorder %s178, %s192
      %p194 = scmp.eq.s32.totalorder %s44, 0
      %p195 = por %p193, %p194
      %s197 = sadd.s32 %s196, 1
      %p200 = scmp.eq.s32.totalorder %s38, 1
      %p201 = scmp.ne.s32.totalorder %s196, %s198
      %p202 = scmp.eq.s32.totalorder %s38, 0
      %p203 = por %p201, %p202
      %p204 = scmp.ne.s32.totalorder %s196, %s198
      %p205 = scmp.eq.s32.totalorder %s43, 1
      %p206 = por %p204, %p205
      %p207 = scmp.ne.s32.totalorder %s198, %s199
      %p208 = scmp.eq.s32.totalorder %s43, 0
      %p209 = por %p207, %p208
      %p210 = scmp.ne.s32.totalorder %s198, %s199
      %p211 = scmp.eq.s32.totalorder %s44, 1
      %p212 = por %p210, %p211
      %p214 = scmp.ne.s32.totalorder %s199, %s213
      %p215 = scmp.eq.s32.totalorder %s44, 0
      %p216 = por %p214, %p215
      %s218 = sadd.s32 %s217, 1
      %p221 = scmp.eq.s32.totalorder %s38, 1
      %p222 = scmp.ne.s32.totalorder %s217, %s219
      %p223 = scmp.eq.s32.totalorder %s38, 0
      %p224 = por %p222, %p223
      %p225 = scmp.ne.s32.totalorder %s217, %s219
      %p226 = scmp.eq.s32.totalorder %s43, 1
      %p227 = por %p225, %p226
      %p228 = scmp.ne.s32.totalorder %s219, %s220
      %p229 = scmp.eq.s32.totalorder %s43, 0
      %p230 = por %p228, %p229
      %p231 = scmp.ne.s32.totalorder %s219, %s220
      %p232 = scmp.eq.s32.totalorder %s44, 1
      %p233 = por %p231, %p232
      %p235 = scmp.ne.s32.totalorder %s220, %s234
      %p236 = scmp.eq.s32.totalorder %s44, 0
      %p237 = por %p235, %p236
      %s239 = sadd.s32 %s238, 1
      %p242 = scmp.eq.s32.totalorder %s38, 1
      %p243 = scmp.ne.s32.totalorder %s238, %s240
      %p244 = scmp.eq.s32.totalorder %s38, 0
      %p245 = por %p243, %p244
      %p246 = scmp.ne.s32.totalorder %s238, %s240
      %p247 = scmp.eq.s32.totalorder %s43, 1
      %p248 = por %p246, %p247
      %p249 = scmp.ne.s32.totalorder %s240, %s241
      %p250 = scmp.eq.s32.totalorder %s43, 0
      %p251 = por %p249, %p250
      %p252 = scmp.ne.s32.totalorder %s240, %s241
      %p253 = scmp.eq.s32.totalorder %s44, 1
      %p254 = por %p252, %p253
      %p256 = scmp.ne.s32.totalorder %s241, %s255
      %p257 = scmp.eq.s32.totalorder %s44, 0
      %p258 = por %p256, %p257
      %s260 = sadd.s32 %s259, 1
      %p263 = scmp.eq.s32.totalorder %s38, 1
      %p264 = scmp.ne.s32.totalorder %s259, %s261
      %p265 = scmp.eq.s32.totalorder %s38, 0
      %p266 = por %p264, %p265
      %p267 = scmp.ne.s32.totalorder %s259, %s261
      %p268 = scmp.eq.s32.totalorder %s43, 1
      %p269 = por %p267, %p268
      %p270 = scmp.ne.s32.totalorder %s261, %s262
      %p271 = scmp.eq.s32.totalorder %s43, 0
      %p272 = por %p270, %p271
      %p273 = scmp.ne.s32.totalorder %s261, %s262
      %p274 = scmp.eq.s32.totalorder %s44, 1
      %p275 = por %p273, %p274
      %p277 = scmp.ne.s32.totalorder %s262, %s276
      %p278 = scmp.eq.s32.totalorder %s44, 0
      %p279 = por %p277, %p278
      %s281 = sadd.s32 %s280, 1
      %p284 = scmp.eq.s32.totalorder %s38, 1
      %p285 = scmp.ne.s32.totalorder %s280, %s282
      %p286 = scmp.eq.s32.totalorder %s38, 0
      %p287 = por %p285, %p286
      %p288 = scmp.ne.s32.totalorder %s280, %s282
      %p289 = scmp.eq.s32.totalorder %s43, 1
      %p290 = por %p288, %p289
      %p291 = scmp.ne.s32.totalorder %s282, %s283
      %p292 = scmp.eq.s32.totalorder %s43, 0
      %p293 = por %p291, %p292
      %p294 = scmp.ne.s32.totalorder %s282, %s283
      %p295 = scmp.eq.s32.totalorder %s44, 1
      %p296 = por %p294, %p295
      %p298 = scmp.ne.s32.totalorder %s283, %s297
      %p299 = scmp.eq.s32.totalorder %s44, 0
      %p300 = por %p298, %p299
      %s302 = sadd.s32 %s301, 1
      %p305 = scmp.eq.s32.totalorder %s38, 1
      %p306 = scmp.ne.s32.totalorder %s301, %s303
      %p307 = scmp.eq.s32.totalorder %s38, 0
      %p308 = por %p306, %p307
      %p309 = scmp.ne.s32.totalorder %s301, %s303
      %p310 = scmp.eq.s32.totalorder %s43, 1
      %p311 = por %p309, %p310
      %p312 = scmp.ne.s32.totalorder %s303, %s304
      %p313 = scmp.eq.s32.totalorder %s43, 0
      %p314 = por %p312, %p313
      %p315 = scmp.ne.s32.totalorder %s303, %s304
      %p316 = scmp.eq.s32.totalorder %s44, 1
      %p317 = por %p315, %p316
      %p319 = scmp.ne.s32.totalorder %s304, %s318
      %p320 = scmp.eq.s32.totalorder %s44, 0
      %p321 = por %p319, %p320
      %s323 = sadd.s32 %s322, 1
      %p326 = scmp.eq.s32.totalorder %s38, 1
      %p327 = scmp.ne.s32.totalorder %s322, %s324
      %p328 = scmp.eq.s32.totalorder %s38, 0
      %p329 = por %p327, %p328
      %p330 = scmp.ne.s32.totalorder %s322, %s324
      %p331 = scmp.eq.s32.totalorder %s43, 1
      %p332 = por %p330, %p331
      %p333 = scmp.ne.s32.totalorder %s324, %s325
      %p334 = scmp.eq.s32.totalorder %s43, 0
      %p335 = por %p333, %p334
      %p336 = scmp.ne.s32.totalorder %s324, %s325
      %p337 = scmp.eq.s32.totalorder %s44, 1
      %p338 = por %p336, %p337
      %p340 = scmp.ne.s32.totalorder %s325, %s339
      %p341 = scmp.eq.s32.totalorder %s44, 0
      %p342 = por %p340, %p341
      %s344 = sadd.s32 %s343, 1
      %p347 = scmp.eq.s32.totalorder %s38, 1
      %p348 = scmp.ne.s32.totalorder %s343, %s345
      %p349 = scmp.eq.s32.totalorder %s38, 0
      %p350 = por %p348, %p349
      %p351 = scmp.ne.s32.totalorder %s343, %s345
      %p352 = scmp.eq.s32.totalorder %s43, 1
      %p353 = por %p351, %p352
      %p354 = scmp.ne.s32.totalorder %s345, %s346
      %p355 = scmp.eq.s32.totalorder %s43, 0
      %p356 = por %p354, %p355
      %p357 = scmp.ne.s32.totalorder %s345, %s346
      %p358 = scmp.eq.s32.totalorder %s44, 1
      %p359 = por %p357, %p358
      %p361 = scmp.ne.s32.totalorder %s346, %s360
      %p362 = scmp.eq.s32.totalorder %s44, 0
      %p363 = por %p361, %p362
      %s365 = sadd.s32 %s364, 1
      %p368 = scmp.eq.s32.totalorder %s38, 1
      %p369 = scmp.ne.s32.totalorder %s364, %s366
      %p370 = scmp.eq.s32.totalorder %s38, 0
      %p371 = por %p369, %p370
      %p372 = scmp.ne.s32.totalorder %s364, %s366
      %p373 = scmp.eq.s32.totalorder %s43, 1
      %p374 = por %p372, %p373
      %p375 = scmp.ne.s32.totalorder %s366, %s367
      %p376 = scmp.eq.s32.totalorder %s43, 0
      %p377 = por %p375, %p376
      %p378 = scmp.ne.s32.totalorder %s366, %s367
      %p379 = scmp.eq.s32.totalorder %s44, 1
      %p380 = por %p378, %p379
      %p382 = scmp.ne.s32.totalorder %s367, %s381
      %p383 = scmp.eq.s32.totalorder %s44, 0
      %p384 = por %p382, %p383
      %s386 = sadd.s32 %s385, 1
      %p389 = scmp.eq.s32.totalorder %s38, 1
      %p390 = scmp.ne.s32.totalorder %s385, %s387
      %p391 = scmp.eq.s32.totalorder %s38, 0
      %p392 = por %p390, %p391
      %p393 = scmp.ne.s32.totalorder %s385, %s387
      %p394 = scmp.eq.s32.totalorder %s43, 1
      %p395 = por %p393, %p394
      %p396 = scmp.ne.s32.totalorder %s387, %s388
      %p397 = scmp.eq.s32.totalorder %s43, 0
      %p398 = por %p396, %p397
      %p399 = scmp.ne.s32.totalorder %s387, %s388
      %p400 = scmp.eq.s32.totalorder %s44, 1
      %p401 = por %p399, %p400
      %p403 = scmp.ne.s32.totalorder %s388, %s402
      %p404 = scmp.eq.s32.totalorder %s44, 0
      %p405 = por %p403, %p404
      %s406 = ssub.s32 %s45, %s57
      %s407 = ssub.s32 %s46, %s53
      %s408 = sor.u32 %s406, %s407
      %p409 = scmp.eq.s32.totalorder %s408, 0
      %s411 = sadd.s32 %s410, 1
      %s412 = scalar_select %p409, %s410, %s411
      %p415 = pneg %p409
      %p416 = scmp.eq.s32.totalorder %s38, 1
      %p417 = por %p415, %p416
      %p418 = scmp.ne.s32.totalorder %s410, %s413
      %p419 = scmp.eq.s32.totalorder %s38, 0
      %p420 = por %p418, %p419
      %p421 = scmp.ne.s32.totalorder %s410, %s413
      %p422 = scmp.eq.s32.totalorder %s43, 1
      %p423 = por %p421, %p422
      %p424 = scmp.ne.s32.totalorder %s413, %s414
      %p425 = scmp.eq.s32.totalorder %s43, 0
      %p426 = por %p424, %p425
      %p427 = scmp.ne.s32.totalorder %s413, %s414
      %p428 = scmp.eq.s32.totalorder %s44, 1
      %p429 = por %p427, %p428
      %p431 = scmp.ne.s32.totalorder %s414, %s430
      %p432 = scmp.eq.s32.totalorder %s44, 0
      %p433 = por %p431, %p432
      %p434 = scmp.le.s32.totalorder 1, %s38
      %p435 = scmp.lt.s32.totalorder %s38, 3
      %p436 = pnand %p434, %p435
      %p437 = pneg %p436
      // Predicated region
      $region9: #{tpu_custom_call.1} parent=5 // pred_check
        _
      $region10: #{tpu_custom_call.1} parent=5 // pred_check_branch
        %439 = sbr.rel (%p436) target = $region12
      $region11: #{tpu_custom_call.1} parent=5 // pred_region
        %s440 = ssub.s32 %s38, 1
        // Predicated region
        $region13: #{tpu_custom_call.1} parent=11 // pred_check
          %p441 = pneg %p125
        $region14: #{tpu_custom_call.1} parent=11 // pred_check_branch
          %443 = sbr.rel (%p441) target = $region16
        $region15: #{tpu_custom_call.1} parent=11 // pred_region
          %s445 = ssub.s32 16, 16
          %446 = vsyncadd [#allocation7], %s445
          %s448 = sshll.u32 [#allocation8], 4
          %s449 = int_to_ptr.vmem [resolvable:$true] %s448
          %451 = dma.hbm_to_vmem [thread:$0]  %s2, 16, %s449, [#allocation7]
        $region16: #{tpu_custom_call.1} parent=11 // pred_fallthru
          _
        // Predicated region
        $region17: #{tpu_custom_call.1} parent=11 // pred_check
          %p452 = pneg %p146
        $region18: #{tpu_custom_call.1} parent=11 // pred_check_branch
          %454 = sbr.rel (%p452) target = $region20
        $region19: #{tpu_custom_call.1} parent=11 // pred_region
          %s456 = ssub.s32 16, 16
          %457 = vsyncadd [#allocation10], %s456
          %s459 = sshll.u32 [#allocation9], 4
          %s460 = int_to_ptr.vmem [resolvable:$true] %s459
          %462 = dma.hbm_to_vmem [thread:$0]  %s3, 16, %s460, [#allocation10]
        $region20: #{tpu_custom_call.1} parent=11 // pred_fallthru
          _
        // Predicated region
        $region21: #{tpu_custom_call.1} parent=11 // pred_check
          %p463 = pneg %p167
        $region22: #{tpu_custom_call.1} parent=11 // pred_check_branch
          %465 = sbr.rel (%p463) target = $region24
        $region23: #{tpu_custom_call.1} parent=11 // pred_region
          %s467 = ssub.s32 16, 16
          %468 = vsyncadd [#allocation10], %s467
          %s470 = sshll.u32 [#allocation11], 4
          %s471 = int_to_ptr.vmem [resolvable:$true] %s470
          %473 = dma.hbm_to_vmem [thread:$0]  %s4, 16, %s471, [#allocation10]
        $region24: #{tpu_custom_call.1} parent=11 // pred_fallthru
          _
        // Predicated region
        $region25: #{tpu_custom_call.1} parent=11 // pred_check
          %p474 = pneg %p188
        $region26: #{tpu_custom_call.1} parent=11 // pred_check_branch
          %476 = sbr.rel (%p474) target = $region28
        $region27: #{tpu_custom_call.1} parent=11 // pred_region
          %s478 = ssub.s32 16, 16
          %479 = vsyncadd [#allocation13], %s478
          %s481 = sshll.u32 [#allocation12], 4
          %s482 = int_to_ptr.vmem [resolvable:$true] %s481
          %484 = dma.hbm_to_vmem [thread:$0]  %s5, 16, %s482, [#allocation13]
        $region28: #{tpu_custom_call.1} parent=11 // pred_fallthru
          _
        // Predicated region
        $region29: #{tpu_custom_call.1} parent=11 // pred_check
          %p485 = pneg %p209
        $region30: #{tpu_custom_call.1} parent=11 // pred_check_branch
          %487 = sbr.rel (%p485) target = $region32
        $region31: #{tpu_custom_call.1} parent=11 // pred_region
          %s489 = ssub.s32 256, 256
          %490 = vsyncadd [#allocation13], %s489
          %s491 = sshll.u32 [#allocation14], 4
          %s492 = int_to_ptr.vmem [resolvable:$true] %s491
          %497 = dma.hbm_to_vmem [thread:$0]  %s6, 256, %s492, [#allocation13], 64, 64, 4
        $region32: #{tpu_custom_call.1} parent=11 // pred_fallthru
          _
        // Predicated region
        $region33: #{tpu_custom_call.1} parent=11 // pred_check
          %p498 = pneg %p230
        $region34: #{tpu_custom_call.1} parent=11 // pred_check_branch
          %500 = sbr.rel (%p498) target = $region36
        $region35: #{tpu_custom_call.1} parent=11 // pred_region
          %s502 = ssub.s32 16, 16
          %503 = vsyncadd [#allocation16], %s502
          %s505 = sshll.u32 [#allocation15], 4
          %s506 = int_to_ptr.vmem [resolvable:$true] %s505
          %508 = dma.hbm_to_vmem [thread:$0]  %s7, 16, %s506, [#allocation16]
        $region36: #{tpu_custom_call.1} parent=11 // pred_fallthru
          _
        // Predicated region
        $region37: #{tpu_custom_call.1} parent=11 // pred_check
          %p509 = pneg %p251
        $region38: #{tpu_custom_call.1} parent=11 // pred_check_branch
          %511 = sbr.rel (%p509) target = $region40
        $region39: #{tpu_custom_call.1} parent=11 // pred_region
          %s513 = ssub.s32 256, 256
          %514 = vsyncadd [#allocation16], %s513
          %s515 = sshll.u32 [#allocation17], 4
          %s516 = int_to_ptr.vmem [resolvable:$true] %s515
          %521 = dma.hbm_to_vmem [thread:$0]  %s8, 256, %s516, [#allocation16], 64, 64, 4
        $region40: #{tpu_custom_call.1} parent=11 // pred_fallthru
          _
        // Predicated region
        $region41: #{tpu_custom_call.1} parent=11 // pred_check
          %p522 = pneg %p272
        $region42: #{tpu_custom_call.1} parent=11 // pred_check_branch
          %524 = sbr.rel (%p522) target = $region44
        $region43: #{tpu_custom_call.1} parent=11 // pred_region
          %s526 = ssub.s32 16, 16
          %527 = vsyncadd [#allocation19], %s526
          %s529 = sshll.u32 [#allocation18], 4
          %s530 = int_to_ptr.vmem [resolvable:$true] %s529
          %532 = dma.hbm_to_vmem [thread:$0]  %s9, 16, %s530, [#allocation19]
        $region44: #{tpu_custom_call.1} parent=11 // pred_fallthru
          _
        // Predicated region
        $region45: #{tpu_custom_call.1} parent=11 // pred_check
          %p533 = pneg %p293
        $region46: #{tpu_custom_call.1} parent=11 // pred_check_branch
          %535 = sbr.rel (%p533) target = $region48
        $region47: #{tpu_custom_call.1} parent=11 // pred_region
          %s537 = ssub.s32 256, 256
          %538 = vsyncadd [#allocation19], %s537
          %s539 = sshll.u32 [#allocation20], 4
          %s540 = int_to_ptr.vmem [resolvable:$true] %s539
          %545 = dma.hbm_to_vmem [thread:$0]  %s10, 256, %s540, [#allocation19], 64, 64, 4
        $region48: #{tpu_custom_call.1} parent=11 // pred_fallthru
          _
        // Predicated region
        $region49: #{tpu_custom_call.1} parent=11 // pred_check
          %p546 = pneg %p314
        $region50: #{tpu_custom_call.1} parent=11 // pred_check_branch
          %548 = sbr.rel (%p546) target = $region52
        $region51: #{tpu_custom_call.1} parent=11 // pred_region
          %s550 = ssub.s32 16, 16
          %551 = vsyncadd [#allocation22], %s550
          %s553 = sshll.u32 [#allocation21], 4
          %s554 = int_to_ptr.vmem [resolvable:$true] %s553
          %556 = dma.hbm_to_vmem [thread:$0]  %s11, 16, %s554, [#allocation22]
        $region52: #{tpu_custom_call.1} parent=11 // pred_fallthru
          _
        // Predicated region
        $region53: #{tpu_custom_call.1} parent=11 // pred_check
          %p557 = pneg %p335
        $region54: #{tpu_custom_call.1} parent=11 // pred_check_branch
          %559 = sbr.rel (%p557) target = $region56
        $region55: #{tpu_custom_call.1} parent=11 // pred_region
          %s561 = ssub.s32 256, 256
          %562 = vsyncadd [#allocation22], %s561
          %s563 = sshll.u32 [#allocation23], 4
          %s564 = int_to_ptr.vmem [resolvable:$true] %s563
          %569 = dma.hbm_to_vmem [thread:$0]  %s12, 256, %s564, [#allocation22], 64, 64, 4
        $region56: #{tpu_custom_call.1} parent=11 // pred_fallthru
          _
        // Predicated region
        $region57: #{tpu_custom_call.1} parent=11 // pred_check
          %p570 = pneg %p356
        $region58: #{tpu_custom_call.1} parent=11 // pred_check_branch
          %572 = sbr.rel (%p570) target = $region60
        $region59: #{tpu_custom_call.1} parent=11 // pred_region
          %s574 = ssub.s32 16, 16
          %575 = vsyncadd [#allocation25], %s574
          %s577 = sshll.u32 [#allocation24], 4
          %s578 = int_to_ptr.vmem [resolvable:$true] %s577
          %580 = dma.hbm_to_vmem [thread:$0]  %s13, 16, %s578, [#allocation25]
        $region60: #{tpu_custom_call.1} parent=11 // pred_fallthru
          _
        // Predicated region
        $region61: #{tpu_custom_call.1} parent=11 // pred_check
          %p581 = pneg %p377
        $region62: #{tpu_custom_call.1} parent=11 // pred_check_branch
          %583 = sbr.rel (%p581) target = $region64
        $region63: #{tpu_custom_call.1} parent=11 // pred_region
          %s585 = ssub.s32 1024, 1024
          %586 = vsyncadd [#allocation25], %s585
          %s587 = sshll.u32 [#allocation26], 4
          %s588 = int_to_ptr.vmem [resolvable:$true] %s587
          %593 = dma.hbm_to_vmem [thread:$0]  %s14, 1024, %s588, [#allocation25], 64, 64, 4
        $region64: #{tpu_custom_call.1} parent=11 // pred_fallthru
          _
        // Predicated region
        $region65: #{tpu_custom_call.1} parent=11 // pred_check
          %p594 = pneg %p398
        $region66: #{tpu_custom_call.1} parent=11 // pred_check_branch
          %596 = sbr.rel (%p594) target = $region68
        $region67: #{tpu_custom_call.1} parent=11 // pred_region
          %s598 = ssub.s32 16, 16
          %599 = vsyncadd [#allocation28], %s598
          %s601 = sshll.u32 [#allocation27], 4
          %s602 = int_to_ptr.vmem [resolvable:$true] %s601
          %604 = dma.hbm_to_vmem [thread:$0]  %s15, 16, %s602, [#allocation28]
        $region68: #{tpu_custom_call.1} parent=11 // pred_fallthru
          _
      $region12: #{tpu_custom_call.1} parent=5 // pred_fallthru
        _
      %p605 = scmp.lt.s32.totalorder %s38, 2
      // Predicated region
      $region69: #{tpu_custom_call.1} parent=5 // pred_check
        %p606 = pneg %p605
      $region70: #{tpu_custom_call.1} parent=5 // pred_check_branch
        %608 = sbr.rel (%p606) target = $region72
      $region71: #{tpu_custom_call.1} parent=5 // pred_region
        // Predicated region
        $region73: #{tpu_custom_call.1} parent=71 // pred_check
          %p609 = pneg %p72
        $region74: #{tpu_custom_call.1} parent=71 // pred_check_branch
          %611 = sbr.rel (%p609) target = $region76
        $region75: #{tpu_custom_call.1} parent=71 // pred_region
          %s612 = sand.u32 %s62, 1
          %s613 = scalar_lea.sflag [#allocation4], %s612
          %s614 = sand.u32 %s62, 1
          %s615 = smul.addr %s614, 8
          %s616 = scalar_lea.vmem [#allocation3], %s615
          %s618 = ssub.s32 128, 128
          %619 = vsyncadd %s613, %s618
          %s620 = sadd.s32 %s46, %s45
          %s621 = smul.addr %s620, 128
          %s622 = scalar_lea.hbm %s0, %s621
          %s624 = sshll.u32 %s616, 4
          %s625 = int_to_ptr.vmem [resolvable:$true] %s624
          %627 = dma.hbm_to_vmem [thread:$0]  %s622, 128, %s625, %s613
        $region76: #{tpu_custom_call.1} parent=71 // pred_fallthru
          _
        // Predicated region
        $region77: #{tpu_custom_call.1} parent=71 // pred_check
          %p628 = pneg %p98
        $region78: #{tpu_custom_call.1} parent=71 // pred_check_branch
          %630 = sbr.rel (%p628) target = $region80
        $region79: #{tpu_custom_call.1} parent=71 // pred_region
          %s631 = sand.u32 %s38, 1
          %s632 = scalar_lea.sflag [#allocation7], %s631
          %s633 = sand.u32 %s88, 1
          %s634 = smul.addr %s633, 8
          %s635 = scalar_lea.vmem [#allocation6], %s634
          %s637 = ssub.s32 128, 128
          %638 = vsyncadd %s632, %s637
          %s639 = smul.addr %s45, 128
          %s640 = scalar_lea.hbm %s1, %s639
          %s642 = sshll.u32 %s635, 4
          %s643 = int_to_ptr.vmem [resolvable:$true] %s642
          %645 = dma.hbm_to_vmem [thread:$0]  %s640, 128, %s643, %s632
        $region80: #{tpu_custom_call.1} parent=71 // pred_fallthru
          _
      $region72: #{tpu_custom_call.1} parent=5 // pred_fallthru
        _
      %p646 = scmp.le.s32.totalorder 1, %s38
      %p647 = scmp.lt.s32.totalorder %s38, 3
      %p648 = pnand %p646, %p647
      %p649 = pneg %p648
      // Predicated region
      $region81: #{tpu_custom_call.1} parent=5 // pred_check
        _
      $region82: #{tpu_custom_call.1} parent=5 // pred_check_branch
        %651 = sbr.rel (%p648) target = $region84
      $region83: #{tpu_custom_call.1} parent=5 // pred_region
        %s652 = ssub.s32 %s38, 1
        %s653 = sand.u32 %s65, 1
        %s654 = scalar_lea.sflag [#allocation4], %s653
        %s655 = sand.u32 %s65, 1
        %s656 = smul.addr %s655, 8
        %s657 = scalar_lea.vmem [#allocation3], %s656
        // Predicated region
        $region85: #{tpu_custom_call.1} parent=83 // pred_check
          %p658 = pneg %p78
        $region86: #{tpu_custom_call.1} parent=83 // pred_check_branch
          %660 = sbr.rel (%p658) target = $region88
        $region87: #{tpu_custom_call.1} parent=83 // pred_region
          %661 = dma.done %s654, 128
        $region88: #{tpu_custom_call.1} parent=83 // pred_fallthru
          _
        %s662 = sand.u32 %s43, 1
        %s663 = scalar_lea.sflag [#allocation7], %s662
        %s664 = sand.u32 %s91, 1
        %s665 = smul.addr %s664, 8
        %s666 = scalar_lea.vmem [#allocation6], %s665
        // Predicated region
        $region89: #{tpu_custom_call.1} parent=83 // pred_check
          %p667 = pneg %p104
        $region90: #{tpu_custom_call.1} parent=83 // pred_check_branch
          %669 = sbr.rel (%p667) target = $region92
        $region91: #{tpu_custom_call.1} parent=83 // pred_region
          %670 = dma.done %s663, 128
        $region92: #{tpu_custom_call.1} parent=83 // pred_fallthru
          _
        // Predicated region
        $region93: #{tpu_custom_call.1} parent=83 // pred_check
          %p671 = pneg %p125
        $region94: #{tpu_custom_call.1} parent=83 // pred_check_branch
          %673 = sbr.rel (%p671) target = $region96
        $region95: #{tpu_custom_call.1} parent=83 // pred_region
          %674 = dma.done [#allocation7], 16
        $region96: #{tpu_custom_call.1} parent=83 // pred_fallthru
          _
        // Predicated region
        $region97: #{tpu_custom_call.1} parent=83 // pred_check
          %p675 = pneg %p146
        $region98: #{tpu_custom_call.1} parent=83 // pred_check_branch
          %677 = sbr.rel (%p675) target = $region100
        $region99: #{tpu_custom_call.1} parent=83 // pred_region
          %678 = dma.done [#allocation10], 16
        $region100: #{tpu_custom_call.1} parent=83 // pred_fallthru
          _
        // Predicated region
        $region101: #{tpu_custom_call.1} parent=83 // pred_check
          %p679 = pneg %p167
        $region102: #{tpu_custom_call.1} parent=83 // pred_check_branch
          %681 = sbr.rel (%p679) target = $region104
        $region103: #{tpu_custom_call.1} parent=83 // pred_region
          %682 = dma.done [#allocation10], 16
        $region104: #{tpu_custom_call.1} parent=83 // pred_fallthru
          _
        // Predicated region
        $region105: #{tpu_custom_call.1} parent=83 // pred_check
          %p683 = pneg %p188
        $region106: #{tpu_custom_call.1} parent=83 // pred_check_branch
          %685 = sbr.rel (%p683) target = $region108
        $region107: #{tpu_custom_call.1} parent=83 // pred_region
          %686 = dma.done [#allocation13], 16
        $region108: #{tpu_custom_call.1} parent=83 // pred_fallthru
          _
        // Predicated region
        $region109: #{tpu_custom_call.1} parent=83 // pred_check
          %p687 = pneg %p209
        $region110: #{tpu_custom_call.1} parent=83 // pred_check_branch
          %689 = sbr.rel (%p687) target = $region112
        $region111: #{tpu_custom_call.1} parent=83 // pred_region
          %690 = dma.done [#allocation13], 256
        $region112: #{tpu_custom_call.1} parent=83 // pred_fallthru
          _
        // Predicated region
        $region113: #{tpu_custom_call.1} parent=83 // pred_check
          %p691 = pneg %p230
        $region114: #{tpu_custom_call.1} parent=83 // pred_check_branch
          %693 = sbr.rel (%p691) target = $region116
        $region115: #{tpu_custom_call.1} parent=83 // pred_region
          %694 = dma.done [#allocation16], 16
        $region116: #{tpu_custom_call.1} parent=83 // pred_fallthru
          _
        // Predicated region
        $region117: #{tpu_custom_call.1} parent=83 // pred_check
          %p695 = pneg %p251
        $region118: #{tpu_custom_call.1} parent=83 // pred_check_branch
          %697 = sbr.rel (%p695) target = $region120
        $region119: #{tpu_custom_call.1} parent=83 // pred_region
          %698 = dma.done [#allocation16], 256
        $region120: #{tpu_custom_call.1} parent=83 // pred_fallthru
          _
        // Predicated region
        $region121: #{tpu_custom_call.1} parent=83 // pred_check
          %p699 = pneg %p272
        $region122: #{tpu_custom_call.1} parent=83 // pred_check_branch
          %701 = sbr.rel (%p699) target = $region124
        $region123: #{tpu_custom_call.1} parent=83 // pred_region
          %702 = dma.done [#allocation19], 16
        $region124: #{tpu_custom_call.1} parent=83 // pred_fallthru
          _
        // Predicated region
        $region125: #{tpu_custom_call.1} parent=83 // pred_check
          %p703 = pneg %p293
        $region126: #{tpu_custom_call.1} parent=83 // pred_check_branch
          %705 = sbr.rel (%p703) target = $region128
        $region127: #{tpu_custom_call.1} parent=83 // pred_region
          %706 = dma.done [#allocation19], 256
        $region128: #{tpu_custom_call.1} parent=83 // pred_fallthru
          _
        // Predicated region
        $region129: #{tpu_custom_call.1} parent=83 // pred_check
          %p707 = pneg %p314
        $region130: #{tpu_custom_call.1} parent=83 // pred_check_branch
          %709 = sbr.rel (%p707) target = $region132
        $region131: #{tpu_custom_call.1} parent=83 // pred_region
          %710 = dma.done [#allocation22], 16
        $region132: #{tpu_custom_call.1} parent=83 // pred_fallthru
          _
        // Predicated region
        $region133: #{tpu_custom_call.1} parent=83 // pred_check
          %p711 = pneg %p335
        $region134: #{tpu_custom_call.1} parent=83 // pred_check_branch
          %713 = sbr.rel (%p711) target = $region136
        $region135: #{tpu_custom_call.1} parent=83 // pred_region
          %714 = dma.done [#allocation22], 256
        $region136: #{tpu_custom_call.1} parent=83 // pred_fallthru
          _
        // Predicated region
        $region137: #{tpu_custom_call.1} parent=83 // pred_check
          %p715 = pneg %p356
        $region138: #{tpu_custom_call.1} parent=83 // pred_check_branch
          %717 = sbr.rel (%p715) target = $region140
        $region139: #{tpu_custom_call.1} parent=83 // pred_region
          %718 = dma.done [#allocation25], 16
        $region140: #{tpu_custom_call.1} parent=83 // pred_fallthru
          _
        // Predicated region
        $region141: #{tpu_custom_call.1} parent=83 // pred_check
          %p719 = pneg %p377
        $region142: #{tpu_custom_call.1} parent=83 // pred_check_branch
          %721 = sbr.rel (%p719) target = $region144
        $region143: #{tpu_custom_call.1} parent=83 // pred_region
          %722 = dma.done [#allocation25], 1024
        $region144: #{tpu_custom_call.1} parent=83 // pred_fallthru
          _
        // Predicated region
        $region145: #{tpu_custom_call.1} parent=83 // pred_check
          %p723 = pneg %p398
        $region146: #{tpu_custom_call.1} parent=83 // pred_check_branch
          %725 = sbr.rel (%p723) target = $region148
        $region147: #{tpu_custom_call.1} parent=83 // pred_region
          %726 = dma.done [#allocation28], 16
        $region148: #{tpu_custom_call.1} parent=83 // pred_fallthru
          _
        %s727 = sand.u32 %s65, 1
        %s728 = scalar_lea.sflag [#allocation4], %s727
        %s729 = sand.u32 %s65, 1
        %s730 = smul.addr %s729, 8
        %s731 = scalar_lea.vmem [#allocation3], %s730
        %p732 = pneg %p78
        %p733 = pneg %p75
        %s734 = sand.u32 %s43, 1
        %s735 = scalar_lea.sflag [#allocation7], %s734
        %s736 = sand.u32 %s91, 1
        %s737 = smul.addr %s736, 8
        %s738 = scalar_lea.vmem [#allocation6], %s737
        %p739 = pneg %p104
        %p740 = pneg %p101
        %p741 = pneg %p125
        %p742 = pneg %p122
        %p743 = pneg %p146
        %p744 = pneg %p143
        %p745 = pneg %p167
        %p746 = pneg %p164
        %p747 = pneg %p188
        %p748 = pneg %p185
        %p749 = pneg %p209
        %p750 = pneg %p206
        %p751 = pneg %p230
        %p752 = pneg %p227
        %p753 = pneg %p251
        %p754 = pneg %p248
        %p755 = pneg %p272
        %p756 = pneg %p269
        %p757 = pneg %p293
        %p758 = pneg %p290
        %p759 = pneg %p314
        %p760 = pneg %p311
        %p761 = pneg %p335
        %p762 = pneg %p332
        %p763 = pneg %p356
        %p764 = pneg %p353
        %p765 = pneg %p377
        %p766 = pneg %p374
        %p767 = pneg %p398
        %p768 = pneg %p395
        %p769 = pneg %p426
        %p770 = pneg %p423
        %s771 = sand.u32 %s413, 1
        %s772 = scalar_lea.sflag [#allocation5], %s771
        %s773 = sand.u32 %s413, 1
        %s774 = smul.addr %s773, 8
        %s775 = scalar_lea.vmem [#allocation29], %s774
        %v777 = vld [vmem:[%s657] sm:$0xff]
        %v778 = vld [vmem:[#allocation8] sm:$0x1]
        %v779 = vld [vmem:[#allocation9] sm:$0x1]
        %p780 = scmp.eq.s32.totalorder %s48, 0
        // Predicated region
        $region149: #{tpu_custom_call.1} parent=83 // pred_check
          %p781 = pneg %p780
        $region150: #{tpu_custom_call.1} parent=83 // pred_check_branch
          %783 = sbr.rel (%p781) target = $region152
        $region151: #{tpu_custom_call.1} parent=83 // pred_region
          %v784 = vld [vmem:[%s666] sm:$0xff]
          %vm785 = vcmask 261120
          %v786 = vsel %vm785, %v784, 0.0
          %787 = vadd.xlane.f32.xlu0 %v786
          %v788 = vpop.xlane.xlu0 %787
          %v789 = vrcp.pop 32.0
          %v790 = vmul.f32 %v788, %v789
          %v791 = vsub.f32 %v784, %v790
          %v792 = vmul.f32 %v791, %v791
          %v793 = vsel %vm785, %v792, 0.0
          %794 = vadd.xlane.f32.xlu0 %v793
          %v795 = vpop.xlane.xlu0 %794
          %v796 = vmul.f32 %v795, %v789
          %v797 = vadd.f32 %v796, 1e-05
          %v798 = vrsqrt.pop %v797
          %v799 = vmul.f32 %v791, %v798
          %v801 = vlaneseq
          %v802 = vshrl.u32 %v801, 7
          %v803 = vsub.s32 0, %v802
          %v804 = vrot.slane %v778, %v803
          %v806 = vmul.f32 %v799, %v804
          %v808 = vlaneseq
          %v809 = vshrl.u32 %v808, 7
          %v810 = vsub.s32 0, %v809
          %v811 = vrot.slane %v779, %v810
          %v813 = vadd.f32 %v806, %v811
          %v814 = vpack.c.bf16 %v813, %v813
          %v815 = vld [vmem:[#allocation17] sm:$0xf]
          %v816 = vld [vmem:[#allocation17 + $0x4] sm:$0xf]
          %v817 = vld [vmem:[#allocation17 + $0x8] sm:$0xf]
          %v818 = vld [vmem:[#allocation17 + $0xc] sm:$0xf]
          %v819 = vld [vmem:[#allocation18] sm:$0x1]
          %v821 = vlaneseq
          %v822 = vshrl.u32 %v821, 7
          %v823 = vsub.s32 0, %v822
          %v824 = vrot.slane %v819, %v823
          %v830 = vunpack.c.l.b16 %v815
          %v831 = vunpack.c.l.b16 %v816
          %v832 = vunpack.c.l.b16 %v817
          %v833 = vunpack.c.l.b16 %v818
          %v834 = vpack.c.b16 %v831, %v830
          %v835 = vpack.c.b16 %v833, %v832
          %v839 = vsel %vm785, %v814, 0
          %841 = vmatprep.subr.bf16.mxu0 0
          %842 = vmatpush1.bf16.msra.mxu0 %v834
          %843 = vmatprep.subr.bf16.mxu0 0
          %844 = vmatpush1.bf16.msra.mxu0 %v835
          %845 = vmatprep.subr.bf16.mxu0 0
          %846 = vmatpush1.bf16.msra.mxu0 0
          %847 = vmatprep.subr.bf16.mxu0 0
          %848 = vmatpush1.bf16.msra.mxu0 0
          %849 = vmatprep.subr.bf16.mxu0 0
          %850 = vmatpush1.bf16.msra.mxu0 0
          %851 = vmatprep.subr.bf16.mxu0 0
          %852 = vmatpush1.bf16.msra.mxu0 0
          %853 = vmatprep.subr.bf16.mxu0 0
          %854 = vmatpush1.bf16.msra.mxu0 0
          %855 = vmatprep.subr.bf16.mxu0 0
          %856 = vmatpush1.bf16.msra.mxu0 0
          %857 = vmatprep.subr.bf16.mxu0 0
          %858 = vmatpush1.bf16.msra.mxu0 0
          %859 = vmatprep.subr.bf16.mxu0 0
          %860 = vmatpush1.bf16.msra.mxu0 0
          %861 = vmatprep.subr.bf16.mxu0 0
          %862 = vmatpush1.bf16.msra.mxu0 0
          %863 = vmatprep.subr.bf16.mxu0 0
          %864 = vmatpush1.bf16.msra.mxu0 0
          %865 = vmatprep.subr.bf16.mxu0 0
          %866 = vmatpush1.bf16.msra.mxu0 0
          %867 = vmatprep.subr.bf16.mxu0 0
          %868 = vmatpush1.bf16.msra.mxu0 0
          %869 = vmatprep.subr.bf16.mxu0 0
          %870 = vmatpush1.bf16.msra.mxu0 0
          %871 = vmatprep.subr.bf16.mxu0 0
          %872 = vmatpush1.bf16.msra.mxu0 0
          %873 = vmatprep.mubr.bf16.mxu0 0
          %874 = vmatmul.mubr.bf16.gmra.mrb[0].mxu0 %v839
          %v875 = vpop.f32.mrb[0].mxu0
          %v876 = vadd.f32 %v824, %v875
          %v877 = vpop.f32.mrb[0].mxu0
          %v878 = vpop.f32.mrb[0].mxu0
          %v879 = vpop.f32.mrb[0].mxu0
          %880 = vdwg.mxu0
          %v881 = vpack.c.bf16 %v876, %v876
          %vm882 = vcmask 519168
          %883 = vst.msk [vmem:[#allocation2] sm:$0xf] %vm882, %v881
        $region152: #{tpu_custom_call.1} parent=83 // pred_fallthru
          _
        %vm884 = vcmask 261120
        %v885 = vsel %vm884, %v777, 0.0
        %886 = vadd.xlane.f32.xlu0 %v885
        %v887 = vpop.xlane.xlu0 %886
        %v888 = vrcp.pop 32.0
        %v889 = vmul.f32 %v887, %v888
        %v890 = vsub.f32 %v777, %v889
        %v891 = vmul.f32 %v890, %v890
        %v892 = vsel %vm884, %v891, 0.0
        %893 = vadd.xlane.f32.xlu0 %v892
        %v894 = vpop.xlane.xlu0 %893
        %v895 = vmul.f32 %v894, %v888
        %v896 = vadd.f32 %v895, 1e-05
        %v897 = vrsqrt.pop %v896
        %v898 = vmul.f32 %v890, %v897
        %v900 = vlaneseq
        %v901 = vshrl.u32 %v900, 7
        %v902 = vsub.s32 0, %v901
        %v903 = vrot.slane %v778, %v902
        %v905 = vmul.f32 %v898, %v903
        %v907 = vlaneseq
        %v908 = vshrl.u32 %v907, 7
        %v909 = vsub.s32 0, %v908
        %v910 = vrot.slane %v779, %v909
        %v912 = vadd.f32 %v905, %v910
        %v913 = vpack.c.bf16 %v912, %v912
        %v914 = vld [vmem:[#allocation14] sm:$0xf]
        %v915 = vld [vmem:[#allocation14 + $0x4] sm:$0xf]
        %v916 = vld [vmem:[#allocation14 + $0x8] sm:$0xf]
        %v917 = vld [vmem:[#allocation14 + $0xc] sm:$0xf]
        %v918 = vld [vmem:[#allocation15] sm:$0x1]
        %v920 = vlaneseq
        %v921 = vshrl.u32 %v920, 7
        %v922 = vsub.s32 0, %v921
        %v923 = vrot.slane %v918, %v922
        %v929 = vunpack.c.l.b16 %v914
        %v930 = vunpack.c.l.b16 %v915
        %v931 = vunpack.c.l.b16 %v916
        %v932 = vunpack.c.l.b16 %v917
        %v933 = vpack.c.b16 %v930, %v929
        %v934 = vpack.c.b16 %v932, %v931
        %v938 = vsel %vm884, %v913, 0
        %940 = vmatprep.subr.bf16.mxu0 0
        %941 = vmatpush1.bf16.msra.mxu0 %v933
        %942 = vmatprep.subr.bf16.mxu0 0
        %943 = vmatpush1.bf16.msra.mxu0 %v934
        %944 = vmatprep.subr.bf16.mxu0 0
        %945 = vmatpush1.bf16.msra.mxu0 0
        %946 = vmatprep.subr.bf16.mxu0 0
        %947 = vmatpush1.bf16.msra.mxu0 0
        %948 = vmatprep.subr.bf16.mxu0 0
        %949 = vmatpush1.bf16.msra.mxu0 0
        %950 = vmatprep.subr.bf16.mxu0 0
        %951 = vmatpush1.bf16.msra.mxu0 0
        %952 = vmatprep.subr.bf16.mxu0 0
        %953 = vmatpush1.bf16.msra.mxu0 0
        %954 = vmatprep.subr.bf16.mxu0 0
        %955 = vmatpush1.bf16.msra.mxu0 0
        %956 = vmatprep.subr.bf16.mxu0 0
        %957 = vmatpush1.bf16.msra.mxu0 0
        %958 = vmatprep.subr.bf16.mxu0 0
        %959 = vmatpush1.bf16.msra.mxu0 0
        %960 = vmatprep.subr.bf16.mxu0 0
        %961 = vmatpush1.bf16.msra.mxu0 0
        %962 = vmatprep.subr.bf16.mxu0 0
        %963 = vmatpush1.bf16.msra.mxu0 0
        %964 = vmatprep.subr.bf16.mxu0 0
        %965 = vmatpush1.bf16.msra.mxu0 0
        %966 = vmatprep.subr.bf16.mxu0 0
        %967 = vmatpush1.bf16.msra.mxu0 0
        %968 = vmatprep.subr.bf16.mxu0 0
        %969 = vmatpush1.bf16.msra.mxu0 0
        %970 = vmatprep.subr.bf16.mxu0 0
        %971 = vmatpush1.bf16.msra.mxu0 0
        %972 = vmatprep.mubr.bf16.mxu0 0
        %973 = vmatmul.mubr.bf16.gmra.mrb[0].mxu0 %v938
        %v974 = vpop.f32.mrb[0].mxu0
        %v975 = vadd.f32 %v923, %v974
        %v976 = vpop.f32.mrb[0].mxu0
        %v977 = vpop.f32.mrb[0].mxu0
        %v978 = vpop.f32.mrb[0].mxu0
        %979 = vdwg.mxu0
        %v980 = vld [vmem:[#allocation2] sm:$0xf]
        %s981 = smul.u32 %s48, 8
        %v982 = vlaneseq
        %v983 = vshrl.u32 %v982, 7
        %v984 = vstv %s981
        %v985 = vadd.s32 %v984, %v983
        %v986 = vlaneseq
        %v987 = vand.u32 %v986, 127
        %vm988 = vcmp.le.s32.totalorder %v987, %v985
        %v989 = vpack.c.bf16 %v975, %v975
        %vm990 = vcmask 64512
        %v992 = vsel %vm990, %v989, 0
        %v995 = vsel %vm990, %v980, 0
        %997 = vmatprep.subr.bf16.mxu0 0
        %998 = vmatpush1.bf16.xpose.msra.mxu0 %v995
        %999 = vmatprep.subr.bf16.mxu0 0
        %1000 = vmatpush1.bf16.xpose.msra.mxu0 0
        %1001 = vmatprep.subr.bf16.mxu0 0
        %1002 = vmatpush1.bf16.xpose.msra.mxu0 0
        %1003 = vmatprep.subr.bf16.mxu0 0
        %1004 = vmatpush1.bf16.xpose.msra.mxu0 0
        %1005 = vmatprep.subr.bf16.mxu0 0
        %1006 = vmatpush1.bf16.xpose.msra.mxu0 0
        %1007 = vmatprep.subr.bf16.mxu0 0
        %1008 = vmatpush1.bf16.xpose.msra.mxu0 0
        %1009 = vmatprep.subr.bf16.mxu0 0
        %1010 = vmatpush1.bf16.xpose.msra.mxu0 0
        %1011 = vmatprep.subr.bf16.mxu0 0
        %1012 = vmatpush1.bf16.xpose.msra.mxu0 0
        %1013 = vmatprep.subr.bf16.mxu0 0
        %1014 = vmatpush1.bf16.xpose.msra.mxu0 0
        %1015 = vmatprep.subr.bf16.mxu0 0
        %1016 = vmatpush1.bf16.xpose.msra.mxu0 0
        %1017 = vmatprep.subr.bf16.mxu0 0
        %1018 = vmatpush1.bf16.xpose.msra.mxu0 0
        %1019 = vmatprep.subr.bf16.mxu0 0
        %1020 = vmatpush1.bf16.xpose.msra.mxu0 0
        %1021 = vmatprep.subr.bf16.mxu0 0
        %1022 = vmatpush1.bf16.xpose.msra.mxu0 0
        %1023 = vmatprep.subr.bf16.mxu0 0
        %1024 = vmatpush1.bf16.xpose.msra.mxu0 0
        %1025 = vmatprep.subr.bf16.mxu0 0
        %1026 = vmatpush1.bf16.xpose.msra.mxu0 0
        %1027 = vmatprep.subr.bf16.mxu0 0
        %1028 = vmatpush1.bf16.xpose.msra.mxu0 0
        %1029 = vmatprep.mubr.bf16.mxu0 0
        %1030 = vmatmul.mubr.bf16.gmra.mrb[0].mxu0 %v992
        %v1031 = vpop.f32.mrb[0].mxu0
        %v1032 = vadd.f32 0.0, %v1031
        %v1033 = vpop.f32.mrb[0].mxu0
        %v1034 = vpop.f32.mrb[0].mxu0
        %v1035 = vpop.f32.mrb[0].mxu0
        %1036 = vdwg.mxu0
        %v1037 = vmul.f32 %v1032, 0.35355338
        %v1038 = vsel %vm988, %v1037, -1e+30
        %v1039 = vsel %vm990, %v1038, -inf
        %1040 = vmax.xlane.f32.xlu0 %v1039
        %v1041 = vpop.xlane.xlu0 %1040
        %v1042 = vsub.f32 %v1038, %v1041
        %v1043 = vmul.f32 %v1042, 1.442695
        %v1044 = vpow.pop %v1043
        %v1045 = vsel %vm990, %v1044, 0.0
        %1046 = vadd.xlane.f32.xlu0 %v1045
        %v1047 = vpop.xlane.xlu0 %1046
        %v1048 = vpack.c.bf16 %v1044, %v1044
        %v1050 = vunpack.c.l.b16 %v980
        %v1051 = vpack.c.b16 %v1050, %v1050
        %1052 = vrot.lane.b32.xlu0 %v1051, 96
        %v1053 = vpop.permute.xlu0 %1052
        %v1055 = vsel %vm990, %v1048, 0
        %vm1057 = vcmask 1043456
        %v1059 = vsel %vm1057, %v1053, 0
        %1061 = vmatprep.subr.bf16.mxu0 0
        %1062 = vmatpush1.bf16.msra.mxu0 %v1059
        %1063 = vmatprep.subr.bf16.mxu0 0
        %1064 = vmatpush1.bf16.msra.mxu0 0
        %1065 = vmatprep.subr.bf16.mxu0 0
        %1066 = vmatpush1.bf16.msra.mxu0 0
        %1067 = vmatprep.subr.bf16.mxu0 0
        %1068 = vmatpush1.bf16.msra.mxu0 0
        %1069 = vmatprep.subr.bf16.mxu0 0
        %1070 = vmatpush1.bf16.msra.mxu0 0
        %1071 = vmatprep.subr.bf16.mxu0 0
        %1072 = vmatpush1.bf16.msra.mxu0 0
        %1073 = vmatprep.subr.bf16.mxu0 0
        %1074 = vmatpush1.bf16.msra.mxu0 0
        %1075 = vmatprep.subr.bf16.mxu0 0
        %1076 = vmatpush1.bf16.msra.mxu0 0
        %1077 = vmatprep.subr.bf16.mxu0 0
        %1078 = vmatpush1.bf16.msra.mxu0 0
        %1079 = vmatprep.subr.bf16.mxu0 0
        %1080 = vmatpush1.bf16.msra.mxu0 0
        %1081 = vmatprep.subr.bf16.mxu0 0
        %1082 = vmatpush1.bf16.msra.mxu0 0
        %1083 = vmatprep.subr.bf16.mxu0 0
        %1084 = vmatpush1.bf16.msra.mxu0 0
        %1085 = vmatprep.subr.bf16.mxu0 0
        %1086 = vmatpush1.bf16.msra.mxu0 0
        %1087 = vmatprep.subr.bf16.mxu0 0
        %1088 = vmatpush1.bf16.msra.mxu0 0
        %1089 = vmatprep.subr.bf16.mxu0 0
        %1090 = vmatpush1.bf16.msra.mxu0 0
        %1091 = vmatprep.subr.bf16.mxu0 0
        %1092 = vmatpush1.bf16.msra.mxu0 0
        %1093 = vmatprep.mubr.bf16.mxu0 0
        %1094 = vmatmul.mubr.bf16.gmra.mrb[0].mxu0 %v1055
        %v1095 = vpop.f32.mrb[0].mxu0
        %v1096 = vadd.f32 0.0, %v1095
        %v1097 = vpop.f32.mrb[0].mxu0
        %v1098 = vpop.f32.mrb[0].mxu0
        %v1099 = vpop.f32.mrb[0].mxu0
        %1100 = vdwg.mxu0
        %v1101 = vrcp.pop %v1047
        %v1102 = vmul.f32 %v1096, %v1101
        %v1103 = vpack.c.bf16 %v1102, %v1102
        %1105 = vrot.lane.b32.xlu0 %v989, 120
        %v1106 = vpop.permute.xlu0 %1105
        %1107 = vrot.lane.b32.xlu0 %v1051, 120
        %v1108 = vpop.permute.xlu0 %1107
        %v1110 = vsel %vm990, %v1106, 0
        %v1113 = vsel %vm990, %v1108, 0
        %1115 = vmatprep.subr.bf16.mxu0 0
        %1116 = vmatpush1.bf16.xpose.msra.mxu0 %v1113
        %1117 = vmatprep.subr.bf16.mxu0 0
        %1118 = vmatpush1.bf16.xpose.msra.mxu0 0
        %1119 = vmatprep.subr.bf16.mxu0 0
        %1120 = vmatpush1.bf16.xpose.msra.mxu0 0
        %1121 = vmatprep.subr.bf16.mxu0 0
        %1122 = vmatpush1.bf16.xpose.msra.mxu0 0
        %1123 = vmatprep.subr.bf16.mxu0 0
        %1124 = vmatpush1.bf16.xpose.msra.mxu0 0
        %1125 = vmatprep.subr.bf16.mxu0 0
        %1126 = vmatpush1.bf16.xpose.msra.mxu0 0
        %1127 = vmatprep.subr.bf16.mxu0 0
        %1128 = vmatpush1.bf16.xpose.msra.mxu0 0
        %1129 = vmatprep.subr.bf16.mxu0 0
        %1130 = vmatpush1.bf16.xpose.msra.mxu0 0
        %1131 = vmatprep.subr.bf16.mxu0 0
        %1132 = vmatpush1.bf16.xpose.msra.mxu0 0
        %1133 = vmatprep.subr.bf16.mxu0 0
        %1134 = vmatpush1.bf16.xpose.msra.mxu0 0
        %1135 = vmatprep.subr.bf16.mxu0 0
        %1136 = vmatpush1.bf16.xpose.msra.mxu0 0
        %1137 = vmatprep.subr.bf16.mxu0 0
        %1138 = vmatpush1.bf16.xpose.msra.mxu0 0
        %1139 = vmatprep.subr.bf16.mxu0 0
        %1140 = vmatpush1.bf16.xpose.msra.mxu0 0
        %1141 = vmatprep.subr.bf16.mxu0 0
        %1142 = vmatpush1.bf16.xpose.msra.mxu0 0
        %1143 = vmatprep.subr.bf16.mxu0 0
        %1144 = vmatpush1.bf16.xpose.msra.mxu0 0
        %1145 = vmatprep.subr.bf16.mxu0 0
        %1146 = vmatpush1.bf16.xpose.msra.mxu0 0
        %1147 = vmatprep.mubr.bf16.mxu0 0
        %1148 = vmatmul.mubr.bf16.gmra.mrb[0].mxu0 %v1110
        %v1149 = vpop.f32.mrb[0].mxu0
        %v1150 = vadd.f32 0.0, %v1149
        %v1151 = vpop.f32.mrb[0].mxu0
        %v1152 = vpop.f32.mrb[0].mxu0
        %v1153 = vpop.f32.mrb[0].mxu0
        %1154 = vdwg.mxu0
        %v1155 = vmul.f32 %v1150, 0.35355338
        %v1156 = vsel %vm988, %v1155, -1e+30
        %v1157 = vsel %vm990, %v1156, -inf
        %1158 = vmax.xlane.f32.xlu0 %v1157
        %v1159 = vpop.xlane.xlu0 %1158
        %v1160 = vsub.f32 %v1156, %v1159
        %v1161 = vmul.f32 %v1160, 1.442695
        %v1162 = vpow.pop %v1161
        %v1163 = vsel %vm990, %v1162, 0.0
        %1164 = vadd.xlane.f32.xlu0 %v1163
        %v1165 = vpop.xlane.xlu0 %1164
        %v1166 = vpack.c.bf16 %v1162, %v1162
        %1167 = vrot.lane.b32.xlu0 %v1051, 88
        %v1168 = vpop.permute.xlu0 %1167
        %v1170 = vsel %vm990, %v1166, 0
        %v1173 = vsel %vm1057, %v1168, 0
        %1175 = vmatprep.subr.bf16.mxu0 0
        %1176 = vmatpush1.bf16.msra.mxu0 %v1173
        %1177 = vmatprep.subr.bf16.mxu0 0
        %1178 = vmatpush1.bf16.msra.mxu0 0
        %1179 = vmatprep.subr.bf16.mxu0 0
        %1180 = vmatpush1.bf16.msra.mxu0 0
        %1181 = vmatprep.subr.bf16.mxu0 0
        %1182 = vmatpush1.bf16.msra.mxu0 0
        %1183 = vmatprep.subr.bf16.mxu0 0
        %1184 = vmatpush1.bf16.msra.mxu0 0
        %1185 = vmatprep.subr.bf16.mxu0 0
        %1186 = vmatpush1.bf16.msra.mxu0 0
        %1187 = vmatprep.subr.bf16.mxu0 0
        %1188 = vmatpush1.bf16.msra.mxu0 0
        %1189 = vmatprep.subr.bf16.mxu0 0
        %1190 = vmatpush1.bf16.msra.mxu0 0
        %1191 = vmatprep.subr.bf16.mxu0 0
        %1192 = vmatpush1.bf16.msra.mxu0 0
        %1193 = vmatprep.subr.bf16.mxu0 0
        %1194 = vmatpush1.bf16.msra.mxu0 0
        %1195 = vmatprep.subr.bf16.mxu0 0
        %1196 = vmatpush1.bf16.msra.mxu0 0
        %1197 = vmatprep.subr.bf16.mxu0 0
        %1198 = vmatpush1.bf16.msra.mxu0 0
        %1199 = vmatprep.subr.bf16.mxu0 0
        %1200 = vmatpush1.bf16.msra.mxu0 0
        %1201 = vmatprep.subr.bf16.mxu0 0
        %1202 = vmatpush1.bf16.msra.mxu0 0
        %1203 = vmatprep.subr.bf16.mxu0 0
        %1204 = vmatpush1.bf16.msra.mxu0 0
        %1205 = vmatprep.subr.bf16.mxu0 0
        %1206 = vmatpush1.bf16.msra.mxu0 0
        %1207 = vmatprep.mubr.bf16.mxu0 0
        %1208 = vmatmul.mubr.bf16.gmra.mrb[0].mxu0 %v1170
        %v1209 = vpop.f32.mrb[0].mxu0
        %v1210 = vadd.f32 0.0, %v1209
        %v1211 = vpop.f32.mrb[0].mxu0
        %v1212 = vpop.f32.mrb[0].mxu0
        %v1213 = vpop.f32.mrb[0].mxu0
        %1214 = vdwg.mxu0
        %v1215 = vrcp.pop %v1165
        %v1216 = vmul.f32 %v1210, %v1215
        %v1217 = vpack.c.bf16 %v1216, %v1216
        %1218 = vrot.lane.b32.xlu0 %v989, 112
        %v1219 = vpop.permute.xlu0 %1218
        %1220 = vrot.lane.b32.xlu0 %v1051, 112
        %v1221 = vpop.permute.xlu0 %1220
        %v1223 = vsel %vm990, %v1219, 0
        %v1226 = vsel %vm990, %v1221, 0
        %1228 = vmatprep.subr.bf16.mxu0 0
        %1229 = vmatpush1.bf16.xpose.msra.mxu0 %v1226
        %1230 = vmatprep.subr.bf16.mxu0 0
        %1231 = vmatpush1.bf16.xpose.msra.mxu0 0
        %1232 = vmatprep.subr.bf16.mxu0 0
        %1233 = vmatpush1.bf16.xpose.msra.mxu0 0
        %1234 = vmatprep.subr.bf16.mxu0 0
        %1235 = vmatpush1.bf16.xpose.msra.mxu0 0
        %1236 = vmatprep.subr.bf16.mxu0 0
        %1237 = vmatpush1.bf16.xpose.msra.mxu0 0
        %1238 = vmatprep.subr.bf16.mxu0 0
        %1239 = vmatpush1.bf16.xpose.msra.mxu0 0
        %1240 = vmatprep.subr.bf16.mxu0 0
        %1241 = vmatpush1.bf16.xpose.msra.mxu0 0
        %1242 = vmatprep.subr.bf16.mxu0 0
        %1243 = vmatpush1.bf16.xpose.msra.mxu0 0
        %1244 = vmatprep.subr.bf16.mxu0 0
        %1245 = vmatpush1.bf16.xpose.msra.mxu0 0
        %1246 = vmatprep.subr.bf16.mxu0 0
        %1247 = vmatpush1.bf16.xpose.msra.mxu0 0
        %1248 = vmatprep.subr.bf16.mxu0 0
        %1249 = vmatpush1.bf16.xpose.msra.mxu0 0
        %1250 = vmatprep.subr.bf16.mxu0 0
        %1251 = vmatpush1.bf16.xpose.msra.mxu0 0
        %1252 = vmatprep.subr.bf16.mxu0 0
        %1253 = vmatpush1.bf16.xpose.msra.mxu0 0
        %1254 = vmatprep.subr.bf16.mxu0 0
        %1255 = vmatpush1.bf16.xpose.msra.mxu0 0
        %1256 = vmatprep.subr.bf16.mxu0 0
        %1257 = vmatpush1.bf16.xpose.msra.mxu0 0
        %1258 = vmatprep.subr.bf16.mxu0 0
        %1259 = vmatpush1.bf16.xpose.msra.mxu0 0
        %1260 = vmatprep.mubr.bf16.mxu0 0
        %1261 = vmatmul.mubr.bf16.gmra.mrb[0].mxu0 %v1223
        %v1262 = vpop.f32.mrb[0].mxu0
        %v1263 = vadd.f32 0.0, %v1262
        %v1264 = vpop.f32.mrb[0].mxu0
        %v1265 = vpop.f32.mrb[0].mxu0
        %v1266 = vpop.f32.mrb[0].mxu0
        %1267 = vdwg.mxu0
        %v1268 = vmul.f32 %v1263, 0.35355338
        %v1269 = vsel %vm988, %v1268, -1e+30
        %v1270 = vsel %vm990, %v1269, -inf
        %1271 = vmax.xlane.f32.xlu0 %v1270
        %v1272 = vpop.xlane.xlu0 %1271
        %v1273 = vsub.f32 %v1269, %v1272
        %v1274 = vmul.f32 %v1273, 1.442695
        %v1275 = vpow.pop %v1274
        %v1276 = vsel %vm990, %v1275, 0.0
        %1277 = vadd.xlane.f32.xlu0 %v1276
        %v1278 = vpop.xlane.xlu0 %1277
        %v1279 = vpack.c.bf16 %v1275, %v1275
        %1280 = vrot.lane.b32.xlu0 %v1051, 80
        %v1281 = vpop.permute.xlu0 %1280
        %v1283 = vsel %vm990, %v1279, 0
        %v1286 = vsel %vm1057, %v1281, 0
        %1288 = vmatprep.subr.bf16.mxu0 0
        %1289 = vmatpush1.bf16.msra.mxu0 %v1286
        %1290 = vmatprep.subr.bf16.mxu0 0
        %1291 = vmatpush1.bf16.msra.mxu0 0
        %1292 = vmatprep.subr.bf16.mxu0 0
        %1293 = vmatpush1.bf16.msra.mxu0 0
        %1294 = vmatprep.subr.bf16.mxu0 0
        %1295 = vmatpush1.bf16.msra.mxu0 0
        %1296 = vmatprep.subr.bf16.mxu0 0
        %1297 = vmatpush1.bf16.msra.mxu0 0
        %1298 = vmatprep.subr.bf16.mxu0 0
        %1299 = vmatpush1.bf16.msra.mxu0 0
        %1300 = vmatprep.subr.bf16.mxu0 0
        %1301 = vmatpush1.bf16.msra.mxu0 0
        %1302 = vmatprep.subr.bf16.mxu0 0
        %1303 = vmatpush1.bf16.msra.mxu0 0
        %1304 = vmatprep.subr.bf16.mxu0 0
        %1305 = vmatpush1.bf16.msra.mxu0 0
        %1306 = vmatprep.subr.bf16.mxu0 0
        %1307 = vmatpush1.bf16.msra.mxu0 0
        %1308 = vmatprep.subr.bf16.mxu0 0
        %1309 = vmatpush1.bf16.msra.mxu0 0
        %1310 = vmatprep.subr.bf16.mxu0 0
        %1311 = vmatpush1.bf16.msra.mxu0 0
        %1312 = vmatprep.subr.bf16.mxu0 0
        %1313 = vmatpush1.bf16.msra.mxu0 0
        %1314 = vmatprep.subr.bf16.mxu0 0
        %1315 = vmatpush1.bf16.msra.mxu0 0
        %1316 = vmatprep.subr.bf16.mxu0 0
        %1317 = vmatpush1.bf16.msra.mxu0 0
        %1318 = vmatprep.subr.bf16.mxu0 0
        %1319 = vmatpush1.bf16.msra.mxu0 0
        %1320 = vmatprep.mubr.bf16.mxu0 0
        %1321 = vmatmul.mubr.bf16.gmra.mrb[0].mxu0 %v1283
        %v1322 = vpop.f32.mrb[0].mxu0
        %v1323 = vadd.f32 0.0, %v1322
        %v1324 = vpop.f32.mrb[0].mxu0
        %v1325 = vpop.f32.mrb[0].mxu0
        %v1326 = vpop.f32.mrb[0].mxu0
        %1327 = vdwg.mxu0
        %v1328 = vrcp.pop %v1278
        %v1329 = vmul.f32 %v1323, %v1328
        %v1330 = vpack.c.bf16 %v1329, %v1329
        %1331 = vrot.lane.b32.xlu0 %v989, 104
        %v1332 = vpop.permute.xlu0 %1331
        %1333 = vrot.lane.b32.xlu0 %v1051, 104
        %v1334 = vpop.permute.xlu0 %1333
        %v1336 = vsel %vm990, %v1332, 0
        %v1339 = vsel %vm990, %v1334, 0
        %1341 = vmatprep.subr.bf16.mxu0 0
        %1342 = vmatpush1.bf16.xpose.msra.mxu0 %v1339
        %1343 = vmatprep.subr.bf16.mxu0 0
        %1344 = vmatpush1.bf16.xpose.msra.mxu0 0
        %1345 = vmatprep.subr.bf16.mxu0 0
        %1346 = vmatpush1.bf16.xpose.msra.mxu0 0
        %1347 = vmatprep.subr.bf16.mxu0 0
        %1348 = vmatpush1.bf16.xpose.msra.mxu0 0
        %1349 = vmatprep.subr.bf16.mxu0 0
        %1350 = vmatpush1.bf16.xpose.msra.mxu0 0
        %1351 = vmatprep.subr.bf16.mxu0 0
        %1352 = vmatpush1.bf16.xpose.msra.mxu0 0
        %1353 = vmatprep.subr.bf16.mxu0 0
        %1354 = vmatpush1.bf16.xpose.msra.mxu0 0
        %1355 = vmatprep.subr.bf16.mxu0 0
        %1356 = vmatpush1.bf16.xpose.msra.mxu0 0
        %1357 = vmatprep.subr.bf16.mxu0 0
        %1358 = vmatpush1.bf16.xpose.msra.mxu0 0
        %1359 = vmatprep.subr.bf16.mxu0 0
        %1360 = vmatpush1.bf16.xpose.msra.mxu0 0
        %1361 = vmatprep.subr.bf16.mxu0 0
        %1362 = vmatpush1.bf16.xpose.msra.mxu0 0
        %1363 = vmatprep.subr.bf16.mxu0 0
        %1364 = vmatpush1.bf16.xpose.msra.mxu0 0
        %1365 = vmatprep.subr.bf16.mxu0 0
        %1366 = vmatpush1.bf16.xpose.msra.mxu0 0
        %1367 = vmatprep.subr.bf16.mxu0 0
        %1368 = vmatpush1.bf16.xpose.msra.mxu0 0
        %1369 = vmatprep.subr.bf16.mxu0 0
        %1370 = vmatpush1.bf16.xpose.msra.mxu0 0
        %1371 = vmatprep.subr.bf16.mxu0 0
        %1372 = vmatpush1.bf16.xpose.msra.mxu0 0
        %1373 = vmatprep.mubr.bf16.mxu0 0
        %1374 = vmatmul.mubr.bf16.gmra.mrb[0].mxu0 %v1336
        %v1375 = vpop.f32.mrb[0].mxu0
        %v1376 = vadd.f32 0.0, %v1375
        %v1377 = vpop.f32.mrb[0].mxu0
        %v1378 = vpop.f32.mrb[0].mxu0
        %v1379 = vpop.f32.mrb[0].mxu0
        %1380 = vdwg.mxu0
        %v1381 = vmul.f32 %v1376, 0.35355338
        %v1382 = vsel %vm988, %v1381, -1e+30
        %v1383 = vsel %vm990, %v1382, -inf
        %1384 = vmax.xlane.f32.xlu0 %v1383
        %v1385 = vpop.xlane.xlu0 %1384
        %v1386 = vsub.f32 %v1382, %v1385
        %v1387 = vmul.f32 %v1386, 1.442695
        %v1388 = vpow.pop %v1387
        %v1389 = vsel %vm990, %v1388, 0.0
        %1390 = vadd.xlane.f32.xlu0 %v1389
        %v1391 = vpop.xlane.xlu0 %1390
        %v1392 = vpack.c.bf16 %v1388, %v1388
        %1393 = vrot.lane.b32.xlu0 %v1051, 72
        %v1394 = vpop.permute.xlu0 %1393
        %v1396 = vsel %vm990, %v1392, 0
        %v1399 = vsel %vm1057, %v1394, 0
        %1401 = vmatprep.subr.bf16.mxu0 0
        %1402 = vmatpush1.bf16.msra.mxu0 %v1399
        %1403 = vmatprep.subr.bf16.mxu0 0
        %1404 = vmatpush1.bf16.msra.mxu0 0
        %1405 = vmatprep.subr.bf16.mxu0 0
        %1406 = vmatpush1.bf16.msra.mxu0 0
        %1407 = vmatprep.subr.bf16.mxu0 0
        %1408 = vmatpush1.bf16.msra.mxu0 0
        %1409 = vmatprep.subr.bf16.mxu0 0
        %1410 = vmatpush1.bf16.msra.mxu0 0
        %1411 = vmatprep.subr.bf16.mxu0 0
        %1412 = vmatpush1.bf16.msra.mxu0 0
        %1413 = vmatprep.subr.bf16.mxu0 0
        %1414 = vmatpush1.bf16.msra.mxu0 0
        %1415 = vmatprep.subr.bf16.mxu0 0
        %1416 = vmatpush1.bf16.msra.mxu0 0
        %1417 = vmatprep.subr.bf16.mxu0 0
        %1418 = vmatpush1.bf16.msra.mxu0 0
        %1419 = vmatprep.subr.bf16.mxu0 0
        %1420 = vmatpush1.bf16.msra.mxu0 0
        %1421 = vmatprep.subr.bf16.mxu0 0
        %1422 = vmatpush1.bf16.msra.mxu0 0
        %1423 = vmatprep.subr.bf16.mxu0 0
        %1424 = vmatpush1.bf16.msra.mxu0 0
        %1425 = vmatprep.subr.bf16.mxu0 0
        %1426 = vmatpush1.bf16.msra.mxu0 0
        %1427 = vmatprep.subr.bf16.mxu0 0
        %1428 = vmatpush1.bf16.msra.mxu0 0
        %1429 = vmatprep.subr.bf16.mxu0 0
        %1430 = vmatpush1.bf16.msra.mxu0 0
        %1431 = vmatprep.subr.bf16.mxu0 0
        %1432 = vmatpush1.bf16.msra.mxu0 0
        %1433 = vmatprep.mubr.bf16.mxu0 0
        %1434 = vmatmul.mubr.bf16.gmra.mrb[0].mxu0 %v1396
        %v1435 = vpop.f32.mrb[0].mxu0
        %v1436 = vadd.f32 0.0, %v1435
        %v1437 = vpop.f32.mrb[0].mxu0
        %v1438 = vpop.f32.mrb[0].mxu0
        %v1439 = vpop.f32.mrb[0].mxu0
        %1440 = vdwg.mxu0
        %v1441 = vrcp.pop %v1391
        %v1442 = vmul.f32 %v1436, %v1441
        %v1443 = vpack.c.bf16 %v1442, %v1442
        %1445 = vrot.lane.b32.xlu0 %v1217, 8
        %v1446 = vpop.permute.xlu0 %1445
        %1448 = vrot.lane.b32.xlu0 %v1330, 16
        %v1449 = vpop.permute.xlu0 %1448
        %1451 = vrot.lane.b32.xlu0 %v1443, 24
        %v1452 = vpop.permute.xlu0 %1451
        %v1455 = vsel %vm990, %v1103, %v1446
        %vm1456 = vcmask 130048
        %v1458 = vsel %vm1456, %v1455, %v1449
        %vm1459 = vcmask 195584
        %v1461 = vsel %vm1459, %v1458, %v1452
        %v1462 = vld [vmem:[#allocation20] sm:$0xf]
        %v1463 = vld [vmem:[#allocation20 + $0x4] sm:$0xf]
        %v1464 = vld [vmem:[#allocation20 + $0x8] sm:$0xf]
        %v1465 = vld [vmem:[#allocation20 + $0xc] sm:$0xf]
        %v1466 = vld [vmem:[#allocation21] sm:$0x1]
        %v1468 = vlaneseq
        %v1469 = vshrl.u32 %v1468, 7
        %v1470 = vsub.s32 0, %v1469
        %v1471 = vrot.slane %v1466, %v1470
        %v1477 = vunpack.c.l.b16 %v1462
        %v1478 = vunpack.c.l.b16 %v1463
        %v1479 = vunpack.c.l.b16 %v1464
        %v1480 = vunpack.c.l.b16 %v1465
        %v1481 = vpack.c.b16 %v1478, %v1477
        %v1482 = vpack.c.b16 %v1480, %v1479
        %v1485 = vsel %vm884, %v1461, 0
        %1487 = vmatprep.subr.bf16.mxu0 0
        %1488 = vmatpush1.bf16.msra.mxu0 %v1481
        %1489 = vmatprep.subr.bf16.mxu0 0
        %1490 = vmatpush1.bf16.msra.mxu0 %v1482
        %1491 = vmatprep.subr.bf16.mxu0 0
        %1492 = vmatpush1.bf16.msra.mxu0 0
        %1493 = vmatprep.subr.bf16.mxu0 0
        %1494 = vmatpush1.bf16.msra.mxu0 0
        %1495 = vmatprep.subr.bf16.mxu0 0
        %1496 = vmatpush1.bf16.msra.mxu0 0
        %1497 = vmatprep.subr.bf16.mxu0 0
        %1498 = vmatpush1.bf16.msra.mxu0 0
        %1499 = vmatprep.subr.bf16.mxu0 0
        %1500 = vmatpush1.bf16.msra.mxu0 0
        %1501 = vmatprep.subr.bf16.mxu0 0
        %1502 = vmatpush1.bf16.msra.mxu0 0
        %1503 = vmatprep.subr.bf16.mxu0 0
        %1504 = vmatpush1.bf16.msra.mxu0 0
        %1505 = vmatprep.subr.bf16.mxu0 0
        %1506 = vmatpush1.bf16.msra.mxu0 0
        %1507 = vmatprep.subr.bf16.mxu0 0
        %1508 = vmatpush1.bf16.msra.mxu0 0
        %1509 = vmatprep.subr.bf16.mxu0 0
        %1510 = vmatpush1.bf16.msra.mxu0 0
        %1511 = vmatprep.subr.bf16.mxu0 0
        %1512 = vmatpush1.bf16.msra.mxu0 0
        %1513 = vmatprep.subr.bf16.mxu0 0
        %1514 = vmatpush1.bf16.msra.mxu0 0
        %1515 = vmatprep.subr.bf16.mxu0 0
        %1516 = vmatpush1.bf16.msra.mxu0 0
        %1517 = vmatprep.subr.bf16.mxu0 0
        %1518 = vmatpush1.bf16.msra.mxu0 0
        %1519 = vmatprep.mubr.bf16.mxu0 0
        %1520 = vmatmul.mubr.bf16.gmra.mrb[0].mxu0 %v1485
        %v1521 = vpop.f32.mrb[0].mxu0
        %v1522 = vadd.f32 %v1471, %v1521
        %v1523 = vpop.f32.mrb[0].mxu0
        %v1524 = vpop.f32.mrb[0].mxu0
        %v1525 = vpop.f32.mrb[0].mxu0
        %1526 = vdwg.mxu0
        %v1527 = vadd.f32 %v777, %v1522
        %v1528 = vld [vmem:[#allocation11] sm:$0x1]
        %v1529 = vld [vmem:[#allocation12] sm:$0x1]
        %v1530 = vsel %vm884, %v1527, 0.0
        %1531 = vadd.xlane.f32.xlu0 %v1530
        %v1532 = vpop.xlane.xlu0 %1531
        %v1533 = vmul.f32 %v1532, %v888
        %v1534 = vsub.f32 %v1527, %v1533
        %v1535 = vmul.f32 %v1534, %v1534
        %v1536 = vsel %vm884, %v1535, 0.0
        %1537 = vadd.xlane.f32.xlu0 %v1536
        %v1538 = vpop.xlane.xlu0 %1537
        %v1539 = vmul.f32 %v1538, %v888
        %v1540 = vadd.f32 %v1539, 1e-05
        %v1541 = vrsqrt.pop %v1540
        %v1542 = vmul.f32 %v1534, %v1541
        %v1544 = vlaneseq
        %v1545 = vshrl.u32 %v1544, 7
        %v1546 = vsub.s32 0, %v1545
        %v1547 = vrot.slane %v1528, %v1546
        %v1549 = vmul.f32 %v1542, %v1547
        %v1551 = vlaneseq
        %v1552 = vshrl.u32 %v1551, 7
        %v1553 = vsub.s32 0, %v1552
        %v1554 = vrot.slane %v1529, %v1553
        %v1556 = vadd.f32 %v1549, %v1554
        %v1557 = vpack.c.bf16 %v1556, %v1556
        %v1558 = vld [vmem:[#allocation23] sm:$0xf]
        %v1559 = vld [vmem:[#allocation23 + $0x4] sm:$0xf]
        %v1560 = vld [vmem:[#allocation23 + $0x8] sm:$0xf]
        %v1561 = vld [vmem:[#allocation23 + $0xc] sm:$0xf]
        %v1562 = vld [vmem:[#allocation24] sm:$0x1]
        %v1564 = vlaneseq
        %v1565 = vshrl.u32 %v1564, 7
        %v1566 = vsub.s32 0, %v1565
        %v1567 = vrot.slane %v1562, %v1566
        %v1573 = vunpack.c.l.b16 %v1558
        %v1574 = vunpack.c.l.b16 %v1559
        %v1575 = vunpack.c.l.b16 %v1560
        %v1576 = vunpack.c.l.b16 %v1561
        %v1577 = vpack.c.b16 %v1574, %v1573
        %v1578 = vpack.c.b16 %v1576, %v1575
        %v1582 = vsel %vm884, %v1557, 0
        %1584 = vmatprep.subr.bf16.mxu0 0
        %1585 = vmatpush1.bf16.msra.mxu0 %v1577
        %1586 = vmatprep.subr.bf16.mxu0 0
        %1587 = vmatpush1.bf16.msra.mxu0 %v1578
        %1588 = vmatprep.subr.bf16.mxu0 0
        %1589 = vmatpush1.bf16.msra.mxu0 0
        %1590 = vmatprep.subr.bf16.mxu0 0
        %1591 = vmatpush1.bf16.msra.mxu0 0
        %1592 = vmatprep.subr.bf16.mxu0 0
        %1593 = vmatpush1.bf16.msra.mxu0 0
        %1594 = vmatprep.subr.bf16.mxu0 0
        %1595 = vmatpush1.bf16.msra.mxu0 0
        %1596 = vmatprep.subr.bf16.mxu0 0
        %1597 = vmatpush1.bf16.msra.mxu0 0
        %1598 = vmatprep.subr.bf16.mxu0 0
        %1599 = vmatpush1.bf16.msra.mxu0 0
        %1600 = vmatprep.subr.bf16.mxu0 0
        %1601 = vmatpush1.bf16.msra.mxu0 0
        %1602 = vmatprep.subr.bf16.mxu0 0
        %1603 = vmatpush1.bf16.msra.mxu0 0
        %1604 = vmatprep.subr.bf16.mxu0 0
        %1605 = vmatpush1.bf16.msra.mxu0 0
        %1606 = vmatprep.subr.bf16.mxu0 0
        %1607 = vmatpush1.bf16.msra.mxu0 0
        %1608 = vmatprep.subr.bf16.mxu0 0
        %1609 = vmatpush1.bf16.msra.mxu0 0
        %1610 = vmatprep.subr.bf16.mxu0 0
        %1611 = vmatpush1.bf16.msra.mxu0 0
        %1612 = vmatprep.subr.bf16.mxu0 0
        %1613 = vmatpush1.bf16.msra.mxu0 0
        %1614 = vmatprep.subr.bf16.mxu0 0
        %1615 = vmatpush1.bf16.msra.mxu0 0
        %1616 = vmatprep.mubr.bf16.mxu0 0
        %1617 = vmatmul.mubr.bf16.gmra.mrb[0].mxu0 %v1582
        %v1618 = vpop.f32.mrb[0].mxu0
        %v1619 = vadd.f32 %v1567, %v1618
        %v1620 = vpop.f32.mrb[0].mxu0
        %v1621 = vpop.f32.mrb[0].mxu0
        %v1622 = vpop.f32.mrb[0].mxu0
        %1623 = vdwg.mxu0
        %v1624 = vmul.f32 %v1619, 0.5
        %v1625 = vmul.f32 %v1619, 0.70710677
        %v1626 = verf.f32.pop %v1625
        %v1627 = vadd.f32 %v1626, 1.0
        %v1628 = vmul.f32 %v1624, %v1627
        %v1629 = vpack.c.bf16 %v1628, %v1628
        %v1630 = vld [vmem:[#allocation26] sm:$0xf]
        %v1631 = vld [vmem:[#allocation26 + $0x4] sm:$0xf]
        %v1632 = vld [vmem:[#allocation26 + $0x8] sm:$0xf]
        %v1633 = vld [vmem:[#allocation26 + $0xc] sm:$0xf]
        %v1634 = vld [vmem:[#allocation26 + $0x10] sm:$0xf]
        %v1635 = vld [vmem:[#allocation26 + $0x14] sm:$0xf]
        %v1636 = vld [vmem:[#allocation26 + $0x18] sm:$0xf]
        %v1637 = vld [vmem:[#allocation26 + $0x1c] sm:$0xf]
        %v1638 = vld [vmem:[#allocation26 + $0x20] sm:$0xf]
        %v1639 = vld [vmem:[#allocation26 + $0x24] sm:$0xf]
        %v1640 = vld [vmem:[#allocation26 + $0x28] sm:$0xf]
        %v1641 = vld [vmem:[#allocation26 + $0x2c] sm:$0xf]
        %v1642 = vld [vmem:[#allocation26 + $0x30] sm:$0xf]
        %v1643 = vld [vmem:[#allocation26 + $0x34] sm:$0xf]
        %v1644 = vld [vmem:[#allocation26 + $0x38] sm:$0xf]
        %v1645 = vld [vmem:[#allocation26 + $0x3c] sm:$0xf]
        %v1662 = vunpack.c.l.b16 %v1630
        %v1663 = vunpack.c.l.b16 %v1631
        %v1664 = vunpack.c.l.b16 %v1632
        %v1665 = vunpack.c.l.b16 %v1633
        %v1666 = vunpack.c.l.b16 %v1634
        %v1667 = vunpack.c.l.b16 %v1635
        %v1668 = vunpack.c.l.b16 %v1636
        %v1669 = vunpack.c.l.b16 %v1637
        %v1670 = vunpack.c.l.b16 %v1638
        %v1671 = vunpack.c.l.b16 %v1639
        %v1672 = vunpack.c.l.b16 %v1640
        %v1673 = vunpack.c.l.b16 %v1641
        %v1674 = vunpack.c.l.b16 %v1642
        %v1675 = vunpack.c.l.b16 %v1643
        %v1676 = vunpack.c.l.b16 %v1644
        %v1677 = vunpack.c.l.b16 %v1645
        %v1678 = vpack.c.b16 %v1663, %v1662
        %v1679 = vpack.c.b16 %v1665, %v1664
        %v1680 = vpack.c.b16 %v1667, %v1666
        %v1681 = vpack.c.b16 %v1669, %v1668
        %v1682 = vpack.c.b16 %v1671, %v1670
        %v1683 = vpack.c.b16 %v1673, %v1672
        %v1684 = vpack.c.b16 %v1675, %v1674
        %v1685 = vpack.c.b16 %v1677, %v1676
        %1694 = vmatprep.subr.bf16.mxu0 0
        %1695 = vmatpush1.bf16.msra.mxu0 %v1678
        %1696 = vmatprep.subr.bf16.mxu0 0
        %1697 = vmatpush1.bf16.msra.mxu0 %v1679
        %1698 = vmatprep.subr.bf16.mxu0 0
        %1699 = vmatpush1.bf16.msra.mxu0 %v1680
        %1700 = vmatprep.subr.bf16.mxu0 0
        %1701 = vmatpush1.bf16.msra.mxu0 %v1681
        %1702 = vmatprep.subr.bf16.mxu0 0
        %1703 = vmatpush1.bf16.msra.mxu0 %v1682
        %1704 = vmatprep.subr.bf16.mxu0 0
        %1705 = vmatpush1.bf16.msra.mxu0 %v1683
        %1706 = vmatprep.subr.bf16.mxu0 0
        %1707 = vmatpush1.bf16.msra.mxu0 %v1684
        %1708 = vmatprep.subr.bf16.mxu0 0
        %1709 = vmatpush1.bf16.msra.mxu0 %v1685
        %1710 = vmatprep.subr.bf16.mxu0 0
        %1711 = vmatpush1.bf16.msra.mxu0 0
        %1712 = vmatprep.subr.bf16.mxu0 0
        %1713 = vmatpush1.bf16.msra.mxu0 0
        %1714 = vmatprep.subr.bf16.mxu0 0
        %1715 = vmatpush1.bf16.msra.mxu0 0
        %1716 = vmatprep.subr.bf16.mxu0 0
        %1717 = vmatpush1.bf16.msra.mxu0 0
        %1718 = vmatprep.subr.bf16.mxu0 0
        %1719 = vmatpush1.bf16.msra.mxu0 0
        %1720 = vmatprep.subr.bf16.mxu0 0
        %1721 = vmatpush1.bf16.msra.mxu0 0
        %1722 = vmatprep.subr.bf16.mxu0 0
        %1723 = vmatpush1.bf16.msra.mxu0 0
        %1724 = vmatprep.subr.bf16.mxu0 0
        %1725 = vmatpush1.bf16.msra.mxu0 0
        %1726 = vmatprep.mubr.bf16.mxu0 0
        %1727 = vmatmul.mubr.bf16.gmra.mrb[0].mxu0 %v1629
        %v1728 = vpop.f32.mrb[0].mxu0
        %v1729 = vadd.f32 0.0, %v1728
        %v1730 = vpop.f32.mrb[0].mxu0
        %v1731 = vpop.f32.mrb[0].mxu0
        %v1732 = vpop.f32.mrb[0].mxu0
        %1733 = vdwg.mxu0
        %v1734 = vadd.f32 %v1527, %v1729
        %v1735 = vld [vmem:[#allocation27] sm:$0x1]
        %v1737 = vlaneseq
        %v1738 = vshrl.u32 %v1737, 7
        %v1739 = vsub.s32 0, %v1738
        %v1740 = vrot.slane %v1735, %v1739
        %v1742 = vadd.f32 %v1734, %v1740
        %1743 = vst.msk [vmem:[%s775] sm:$0xff] %vm884, %v1742
        %s1744 = sand.u32 %s413, 1
        %s1745 = scalar_lea.sflag [#allocation5], %s1744
        %s1746 = sand.u32 %s413, 1
        %s1747 = smul.addr %s1746, 8
        %s1748 = scalar_lea.vmem [#allocation29], %s1747
        // Predicated region
        $region153: #{tpu_custom_call.1} parent=83 // pred_check
          %p1749 = pneg %p423
        $region154: #{tpu_custom_call.1} parent=83 // pred_check_branch
          %1751 = sbr.rel (%p1749) target = $region156
        $region155: #{tpu_custom_call.1} parent=83 // pred_region
          %s1753 = ssub.s32 128, 128
          %1754 = vsyncadd %s1745, %s1753
          %s1755 = sadd.s32 %s48, %s47
          %s1756 = smul.addr %s1755, 128
          %s1757 = scalar_lea.hbm %s16, %s1756
          %s1759 = sshll.u32 %s1748, 4
          %s1760 = int_to_ptr.vmem [resolvable:$true] %s1759
          %1762 = dma.vmem_to_hbm [thread:$0]  %s1760, 128, %s1757, %s1745
        $region156: #{tpu_custom_call.1} parent=83 // pred_fallthru
          _
      $region84: #{tpu_custom_call.1} parent=5 // pred_fallthru
        _
      %p1763 = scmp.le.s32.totalorder 2, %s38
      // Predicated region
      $region157: #{tpu_custom_call.1} parent=5 // pred_check
        %p1764 = pneg %p1763
      $region158: #{tpu_custom_call.1} parent=5 // pred_check_branch
        %1766 = sbr.rel (%p1764) target = $region160
      $region159: #{tpu_custom_call.1} parent=5 // pred_region
        %s1767 = ssub.s32 %s38, 2
        // Predicated region
        $region161: #{tpu_custom_call.1} parent=159 // pred_check
          %p1768 = pneg %p429
        $region162: #{tpu_custom_call.1} parent=159 // pred_check_branch
          %1770 = sbr.rel (%p1768) target = $region164
        $region163: #{tpu_custom_call.1} parent=159 // pred_region
          %s1771 = sand.u32 %s414, 1
          %s1772 = scalar_lea.sflag [#allocation5], %s1771
          %s1773 = sand.u32 %s414, 1
          %s1774 = smul.addr %s1773, 8
          %s1775 = scalar_lea.vmem [#allocation29], %s1774
          %1776 = dma.done %s1772, 128
        $region164: #{tpu_custom_call.1} parent=159 // pred_fallthru
          _
      $region160: #{tpu_custom_call.1} parent=5 // pred_fallthru
        _
    $region6: #{tpu_custom_call.1} parent=1 // loop_footer
      %s42 = sadd.s32 1, %s38
    $region7: #{tpu_custom_call.1} parent=1 // loop_footer_branch
      %37 = sbr.rel target = $region3
    $region8: #{tpu_custom_call.1} parent=1 // loop_exit
      _
    %1777 = vsyncpa [#allocation4], 1
    %s1778 = scalar_lea.sflag [#allocation4], 1
    %1779 = vsyncpa %s1778, 1
    %1780 = vsyncpa [#allocation7], 1
    %s1781 = scalar_lea.sflag [#allocation7], 1
    %1782 = vsyncpa %s1781, 1
    %1783 = vsyncpa [#allocation10], 1
    %1784 = vsyncpa [#allocation13], 1
    %1785 = vsyncpa [#allocation16], 1
    %1786 = vsyncpa [#allocation19], 1
    %1787 = vsyncpa [#allocation22], 1
    %1788 = vsyncpa [#allocation25], 1
    %1789 = vsyncpa [#allocation28], 1
    %1790 = vsyncpa [#allocation5], 1
    %s1791 = scalar_lea.sflag [#allocation5], 1
    %1792 = vsyncpa %s1791, 1

</llo_original>
